<compile_context>
chip_gen: v7x
topology: tpu7x:2x2x1
jax: 0.10.0
libtpu: 0.0.40
codegen_flags: <defaults>
</compile_context>

<pallas_src>
import functools

import jax
import jax.numpy as jnp
import numpy as np
from jax import lax
from jax.experimental import pallas as pl
from jax.experimental.pallas import tpu as pltpu


# --------------------------------------------------------------------------
# Host-side construction of the separable pooling / upsampling operators
# --------------------------------------------------------------------------
def _avgpool3_matrix(n_in, stride):
    """1-D operator R (n_out, n_in) for AvgPool(kernel=3, stride, padding=1,
    count_include_pad=True): pooled = R @ x  (padded zeros contribute 0, /3)."""
    n_out = (n_in + 2 - 3) // stride + 1
    R = np.zeros((n_out, n_in), np.float32)
    for i in range(n_out):
        for dy in (-1, 0, 1):
            y = i * stride + dy
            if 0 <= y < n_in:
                R[i, y] += 1.0 / 3.0
    return R


def _bilinear_matrix(n_out, n_in):
    """1-D operator A (n_out, n_in) for bilinear resize with
    align_corners=False (PyTorch nn.Upsample default): up = A @ x."""
    A = np.zeros((n_out, n_in), np.float32)
    sc = n_in / n_out
    for i in range(n_out):
        src = max((i + 0.5) * sc - 0.5, 0.0)
        i0 = min(int(np.floor(src)), n_in - 1)
        i1 = min(i0 + 1, n_in - 1)
        w = src - i0
        A[i, i0] += 1.0 - w
        A[i, i1] += w
    return A


# --------------------------------------------------------------------------
# Fused Pallas kernel: one grid step == one batch element, channels-first.
# --------------------------------------------------------------------------
def _cross_attention_v2_kernel(u1_ref, u2_ref, pkT_ref, pqT_ref, upT_ref,
                               wq_ref, wk_ref, wv_ref, wp_ref, bp_ref, o_ref,
                               *, num_heads, head_dim, scale):
    f32 = jnp.float32
    u1c = u1_ref[0]                                   # (C, S1)  NCHW-flattened
    u2c = u2_ref[0]                                   # (C, S0)

    # AvgPool2d folded into a dense spatial operator -> one MXU matmul each.
    kvT = jnp.dot(u1c, pkT_ref[...], preferred_element_type=f32)   # (C, Sk)
    qT = jnp.dot(u2c, pqT_ref[...], preferred_element_type=f32)    # (C, Sq)

    # Q/K/V Linear projections (bias=False), channels-first:  W @ tokens^T.
    qp = jnp.dot(wq_ref[...], qT, preferred_element_type=f32)      # (C, Sq)
    kp = jnp.dot(wk_ref[...], kvT, preferred_element_type=f32)     # (C, Sk)
    vp = jnp.dot(wv_ref[...], kvT, preferred_element_type=f32)     # (C, Sk)

    # Per-head attention (heads are contiguous channel blocks, head-major).
    # Unrolled python loop keeps every matmul a plain 2-D MXU op.
    y_heads = []
    for h in range(num_heads):
        sl = slice(h * head_dim, (h + 1) * head_dim)
        qh, kh, vh = qp[sl, :], kp[sl, :], vp[sl, :]                # (d, Sq/Sk)
        logits = jnp.dot(qh.T, kh, preferred_element_type=f32) * scale  # (Sq, Sk)
        m = jnp.max(logits, axis=-1, keepdims=True)
        p = jnp.exp(logits - m)
        l = jnp.sum(p, axis=-1, keepdims=True)
        attn = p * pl.reciprocal(l, approx=True)                    # softmax
        # attn_drop has p=0.0 -> identity (inference semantics).
        y_heads.append(jnp.dot(vh, attn.T, preferred_element_type=f32))  # (d, Sq)
    yT = jnp.concatenate(y_heads, axis=0)                           # (C, Sq)

    # Output projection (Linear with bias), then bilinear upsample as one
    # lane-dense matmul, then residual add with the original u2.
    projT = jnp.dot(wp_ref[...], yT, preferred_element_type=f32) + bp_ref[...]
    outT = jnp.dot(projT, upT_ref[...], preferred_element_type=f32)  # (C, S0)
    o_ref[0] = (outT + u2c).astype(o_ref.dtype)


# --------------------------------------------------------------------------
# Wrapper (glue around pallas_call)
# --------------------------------------------------------------------------
def cross_attention_v2_forward(u1, u2, params, *, q_size_ratio, k_size_ratio,
                               num_heads=8, qk_scale=None):
    """u1: (B, C, H1, W1) builds K/V;  u2: (B, C, H, W) builds Q + residual."""
    B, C, H1, W1 = u1.shape
    B2, C2, H, W = u2.shape
    assert (B, C) == (B2, C2) and C % num_heads == 0

    resized_img_ratio = 64
    stride = min(resized_img_ratio // q_size_ratio,
                 resized_img_ratio // k_size_ratio)

    # Separable pool / upsample operators -> kron'd dense spatial matrices.
    rk_h, rk_w = _avgpool3_matrix(H1, stride), _avgpool3_matrix(W1, stride)
    rq_h, rq_w = _avgpool3_matrix(H, stride), _avgpool3_matrix(W, stride)
    hq, wq = rq_h.shape[0], rq_w.shape[0]
    pkT = jnp.asarray(np.kron(rk_h, rk_w).T)                       # (H1*W1, Sk)
    pqT = jnp.asarray(np.kron(rq_h, rq_w).T)                       # (H*W,  Sq)
    upT = jnp.asarray(np.kron(_bilinear_matrix(H, hq),
                              _bilinear_matrix(W, wq)).T)          # (Sq, H*W)

    S1, S0 = H1 * W1, H * W
    Sk, Sq = pkT.shape[1], pqT.shape[1]
    head_dim = C // num_heads
    scale = qk_scale if qk_scale is not None else head_dim ** (-0.5)

    u1f = u1.reshape(B, C, S1)        # stays channels-first: free reshape
    u2f = u2.reshape(B, C, S0)
    bp = params["bp"].reshape(C, 1)

    kern = functools.partial(_cross_attention_v2_kernel,
                             num_heads=num_heads, head_dim=head_dim, scale=scale)
    full = lambda b: (0, 0)
    out = pl.pallas_call(
        kern,
        out_shape=jax.ShapeDtypeStruct((B, C, S0), u2.dtype),
        grid=(B,),
        in_specs=[
            pl.BlockSpec((1, C, S1), lambda b: (b, 0, 0)),   # u1 (K/V source)
            pl.BlockSpec((1, C, S0), lambda b: (b, 0, 0)),   # u2 (Q + residual)
            pl.BlockSpec((S1, Sk), full),                    # pool_k^T
            pl.BlockSpec((S0, Sq), full),                    # pool_q^T
            pl.BlockSpec((Sq, S0), full),                    # upsample^T
            pl.BlockSpec((C, C), full),                      # Wq
            pl.BlockSpec((C, C), full),                      # Wk
            pl.BlockSpec((C, C), full),                      # Wv
            pl.BlockSpec((C, C), full),                      # Wproj
            pl.BlockSpec((C, 1), full),                      # bproj
        ],
        out_specs=pl.BlockSpec((1, C, S0), lambda b: (b, 0, 0)),
        compiler_params=pltpu.CompilerParams(dimension_semantics=("parallel",)),
    )(u1f, u2f, pkT, pqT, upT,
      params["wq"], params["wk"], params["wv"], params["wp"], bp)
    return out.reshape(B, C, H, W)


# --------------------------------------------------------------------------
# Deterministic parameters (PyTorch Linear layout: W is (out, in), y = x W^T)
# --------------------------------------------------------------------------
def make_params(key, dim):
    kq, kk, kv, kp, kb = jax.random.split(key, 5)
    bound = 1.0 / np.sqrt(dim)
    init = lambda k: jax.random.uniform(k, (dim, dim), jnp.float32, -bound, bound)
    return {
        "wq": init(kq), "wk": init(kk), "wv": init(kv), "wp": init(kp),
        "bp": jax.random.uniform(kb, (dim,), jnp.float32, -bound, bound),
    }


# --------------------------------------------------------------------------
# Pure-JAX reference (independent ops: reduce_window pool, gather bilinear)
# --------------------------------------------------------------------------
def _ref_avgpool3(x, stride):
    s = lax.reduce_window(x, 0.0, lax.add, (1, 1, 3, 3), (1, 1, stride, stride),
                          [(0, 0), (0, 0), (1, 1), (1, 1)])
    return s / 9.0                      # count_include_pad=True -> always /9


def _ref_bilinear_upsample(x, H_out, W_out):
    _, _, h, w = x.shape

    def coords(n_in, n_out):
        src = jnp.maximum(
            (jnp.arange(n_out, dtype=jnp.float32) + 0.5) * (n_in / n_out) - 0.5, 0.0)
        i0 = jnp.minimum(jnp.floor(src).astype(jnp.int32), n_in - 1)
        i1 = jnp.minimum(i0 + 1, n_in - 1)
        lam = src - i0.astype(jnp.float32)
        return i0, i1, lam

    y0, y1, ly = coords(h, H_out)
    x0, x1, lx = coords(w, W_out)
    rows = (x[:, :, y0, :] * (1.0 - ly)[None, None, :, None]
            + x[:, :, y1, :] * ly[None, None, :, None])
    return (rows[:, :, :, x0] * (1.0 - lx)[None, None, None, :]
            + rows[:, :, :, x1] * lx[None, None, None, :])


def cross_attention_v2_reference(u1, u2, params, *, q_size_ratio, k_size_ratio,
                                 num_heads=8, qk_scale=None):
    B, C, H, W = u2.shape
    stride = min(64 // q_size_ratio, 64 // k_size_ratio)
    ku = _ref_avgpool3(u1, stride)
    qu = _ref_avgpool3(u2, stride)
    hq, wq = qu.shape[2:4]
    k_tok = ku.transpose(0, 2, 3, 1).reshape(B, -1, C)
    q_tok = qu.transpose(0, 2, 3, 1).reshape(B, -1, C)
    d = C // num_heads
    scale = qk_scale if qk_scale is not None else d ** (-0.5)

    def lin(x, w, b=None):
        y = jnp.einsum("bsc,oc->bso", x, w)
        return y if b is None else y + b

    q, k, v = lin(q_tok, params["wq"]), lin(k_tok, params["wk"]), lin(k_tok, params["wv"])
    heads = lambda x: x.reshape(B, -1, num_heads, d).transpose(0, 2, 1, 3)
    qh, kh, vh = heads(q), heads(k), heads(v)
    attn = jax.nn.softmax(jnp.einsum("bhqd,bhkd->bhqk", qh, kh) * scale, axis=-1)
    y = jnp.einsum("bhqk,bhkd->bhqd", attn, vh)
    y = y.transpose(0, 2, 1, 3).reshape(B, -1, C)
    y = lin(y, params["wp"], params["bp"])
    y = y.transpose(0, 2, 1).reshape(B, C, hq, wq)
    return _ref_bilinear_upsample(y, H, W) + u2


# --------------------------------------------------------------------------
if __name__ == "__main__":
    key = jax.random.PRNGKey(0)
    k1, k2, kp = jax.random.split(key, 3)

    # CrossAttentionV2(dim=32, q_size_ratio=16, k_size_ratio=32, num_heads=8)
    #   -> scale_factor = min(64//16, 64//32) = 2
    #   u2 (2,32,16,16) -> q tokens 8x8=64 ;  u1 (2,32,8,8) -> kv tokens 4x4=16
    dim, num_heads = 32, 8
    q_size_ratio, k_size_ratio = 16, 32
    u1 = jax.random.normal(k1, (2, dim, 8, 8), jnp.float32)     # K / V source
    u2 = jax.random.normal(k2, (2, dim, 16, 16), jnp.float32)   # Q source + residual
    params = make_params(kp, dim)

    out = cross_attention_v2_forward(u1, u2, params,
                                     q_size_ratio=q_size_ratio,
                                     k_size_ratio=k_size_ratio,
                                     num_heads=num_heads)
    out = jax.block_until_ready(out)

    ref = jax.block_until_ready(cross_attention_v2_reference(
        u1, u2, params, q_size_ratio=q_size_ratio, k_size_ratio=k_size_ratio,
        num_heads=num_heads))

    assert out.shape == (2, dim, 16, 16)
    # Tolerance covers MXU default-precision matmul rounding + approx reciprocal.
    np.testing.assert_allclose(np.asarray(out), np.asarray(ref), rtol=1e-2, atol=1e-2)
    print("KERNEL_OK")
</pallas_src>

<mosaic_0001>
module attributes {stable_mosaic.version = 11 : i64} {
  func.func @_cross_attention_v2_kernel(%arg0: i32, %arg1: memref<1x32x64xf32, #tpu.memory_space<vmem>>, %arg2: memref<1x32x256xf32, #tpu.memory_space<vmem>>, %arg3: memref<64x16xf32, #tpu.memory_space<vmem>>, %arg4: memref<256x64xf32, #tpu.memory_space<vmem>>, %arg5: memref<64x256xf32, #tpu.memory_space<vmem>>, %arg6: memref<32x32xf32, #tpu.memory_space<vmem>>, %arg7: memref<32x32xf32, #tpu.memory_space<vmem>>, %arg8: memref<32x32xf32, #tpu.memory_space<vmem>>, %arg9: memref<32x32xf32, #tpu.memory_space<vmem>>, %arg10: memref<32x1xf32, #tpu.memory_space<vmem>>, %arg11: memref<1x32x256xf32, #tpu.memory_space<vmem>>) attributes {dimension_semantics = [#tpu.dimension_semantics<parallel>], iteration_bounds = array<i64: 2>, scalar_prefetch = 0 : i64, scratch_operands = 0 : i64, tpu.core_type = #tpu.core_type<tc>, window_params = [{transform_indices = @transform_0, window_bounds = array<i64: 1, 32, 64>}, {transform_indices = @transform_1, window_bounds = array<i64: 1, 32, 256>}, {pipeline_mode = #tpu.pipeline_mode<synchronous>, transform_indices = @transform_2, window_bounds = array<i64: 64, 16>}, {pipeline_mode = #tpu.pipeline_mode<synchronous>, transform_indices = @transform_3, window_bounds = array<i64: 256, 64>}, {pipeline_mode = #tpu.pipeline_mode<synchronous>, transform_indices = @transform_4, window_bounds = array<i64: 64, 256>}, {pipeline_mode = #tpu.pipeline_mode<synchronous>, transform_indices = @transform_5, window_bounds = array<i64: 32, 32>}, {pipeline_mode = #tpu.pipeline_mode<synchronous>, transform_indices = @transform_6, window_bounds = array<i64: 32, 32>}, {pipeline_mode = #tpu.pipeline_mode<synchronous>, transform_indices = @transform_7, window_bounds = array<i64: 32, 32>}, {pipeline_mode = #tpu.pipeline_mode<synchronous>, transform_indices = @transform_8, window_bounds = array<i64: 32, 32>}, {pipeline_mode = #tpu.pipeline_mode<synchronous>, transform_indices = @transform_9, window_bounds = array<i64: 32, 1>}, {transform_indices = @transform_10, window_bounds = array<i64: 1, 32, 256>}]} {
    %c0 = arith.constant 0 : index
    %c0_0 = arith.constant 0 : index
    %c0_1 = arith.constant 0 : index
    %0 = vector.load %arg1[%c0, %c0_0, %c0_1] : memref<1x32x64xf32, #tpu.memory_space<vmem>>, vector<1x32x64xf32>
    %1 = vector.shape_cast %0 : vector<1x32x64xf32> to vector<32x64xf32>
    %c0_2 = arith.constant 0 : index
    %c0_3 = arith.constant 0 : index
    %c0_4 = arith.constant 0 : index
    %2 = vector.load %arg2[%c0_2, %c0_3, %c0_4] : memref<1x32x256xf32, #tpu.memory_space<vmem>>, vector<1x32x256xf32>
    %3 = vector.shape_cast %2 : vector<1x32x256xf32> to vector<32x256xf32>
    %c0_5 = arith.constant 0 : index
    %c0_6 = arith.constant 0 : index
    %4 = vector.load %arg3[%c0_5, %c0_6] : memref<64x16xf32, #tpu.memory_space<vmem>>, vector<64x16xf32>
    %cst = arith.constant dense<0.000000e+00> : vector<32x16xf32>
    %5 = tpu.matmul %1, %4, %cst {dimension_numbers = #tpu.dot_dimension_numbers<[1], [0], [0], [1], [0, 0, 1, 1], [], []>} : vector<32x64xf32>, vector<64x16xf32>, vector<32x16xf32> -> vector<32x16xf32>
    %c0_7 = arith.constant 0 : index
    %c0_8 = arith.constant 0 : index
    %6 = vector.load %arg4[%c0_7, %c0_8] : memref<256x64xf32, #tpu.memory_space<vmem>>, vector<256x64xf32>
    %cst_9 = arith.constant dense<0.000000e+00> : vector<32x64xf32>
    %7 = tpu.matmul %3, %6, %cst_9 {dimension_numbers = #tpu.dot_dimension_numbers<[1], [0], [0], [1], [0, 0, 1, 1], [], []>} : vector<32x256xf32>, vector<256x64xf32>, vector<32x64xf32> -> vector<32x64xf32>
    %c0_10 = arith.constant 0 : index
    %c0_11 = arith.constant 0 : index
    %8 = vector.load %arg6[%c0_10, %c0_11] : memref<32x32xf32, #tpu.memory_space<vmem>>, vector<32x32xf32>
    %cst_12 = arith.constant dense<0.000000e+00> : vector<32x64xf32>
    %9 = tpu.matmul %8, %7, %cst_12 {dimension_numbers = #tpu.dot_dimension_numbers<[1], [0], [0], [1], [0, 0, 1, 1], [], []>} : vector<32x32xf32>, vector<32x64xf32>, vector<32x64xf32> -> vector<32x64xf32>
    %c0_13 = arith.constant 0 : index
    %c0_14 = arith.constant 0 : index
    %10 = vector.load %arg7[%c0_13, %c0_14] : memref<32x32xf32, #tpu.memory_space<vmem>>, vector<32x32xf32>
    %cst_15 = arith.constant dense<0.000000e+00> : vector<32x16xf32>
    %11 = tpu.matmul %10, %5, %cst_15 {dimension_numbers = #tpu.dot_dimension_numbers<[1], [0], [0], [1], [0, 0, 1, 1], [], []>} : vector<32x32xf32>, vector<32x16xf32>, vector<32x16xf32> -> vector<32x16xf32>
    %c0_16 = arith.constant 0 : index
    %c0_17 = arith.constant 0 : index
    %12 = vector.load %arg8[%c0_16, %c0_17] : memref<32x32xf32, #tpu.memory_space<vmem>>, vector<32x32xf32>
    %cst_18 = arith.constant dense<0.000000e+00> : vector<32x16xf32>
    %13 = tpu.matmul %12, %5, %cst_18 {dimension_numbers = #tpu.dot_dimension_numbers<[1], [0], [0], [1], [0, 0, 1, 1], [], []>} : vector<32x32xf32>, vector<32x16xf32>, vector<32x16xf32> -> vector<32x16xf32>
    %14 = vector.extract_strided_slice %9 {offsets = [0, 0], sizes = [4, 64], strides = [1, 1]} : vector<32x64xf32> to vector<4x64xf32>
    %15 = vector.extract_strided_slice %11 {offsets = [0, 0], sizes = [4, 16], strides = [1, 1]} : vector<32x16xf32> to vector<4x16xf32>
    %16 = vector.extract_strided_slice %13 {offsets = [0, 0], sizes = [4, 16], strides = [1, 1]} : vector<32x16xf32> to vector<4x16xf32>
    %17 = tpu.transpose %14, [1, 0] : vector<4x64xf32> -> vector<64x4xf32>
    %cst_19 = arith.constant dense<0.000000e+00> : vector<64x16xf32>
    %18 = tpu.matmul %17, %15, %cst_19 {dimension_numbers = #tpu.dot_dimension_numbers<[1], [0], [0], [1], [0, 0, 1, 1], [], []>} : vector<64x4xf32>, vector<4x16xf32>, vector<64x16xf32> -> vector<64x16xf32>
    %cst_20 = arith.constant 5.000000e-01 : f32
    %19 = vector.broadcast %cst_20 : f32 to vector<64x16xf32>
    %20 = arith.mulf %18, %19 : vector<64x16xf32>
    %cst_21 = arith.constant dense<0xFF800000> : vector<64xf32>
    %21 = vector.multi_reduction <maximumf>, %20, %cst_21 [1] : vector<64x16xf32> to vector<64xf32>
    %22 = vector.shape_cast %21 : vector<64xf32> to vector<64x1xf32>
    %23 = vector.broadcast %22 : vector<64x1xf32> to vector<64x16xf32>
    %24 = arith.subf %20, %23 : vector<64x16xf32>
    %25 = math.exp %24 : vector<64x16xf32>
    %cst_22 = arith.constant dense<0.000000e+00> : vector<64xf32>
    %26 = vector.multi_reduction <add>, %25, %cst_22 [1] : vector<64x16xf32> to vector<64xf32>
    %27 = vector.shape_cast %26 : vector<64xf32> to vector<64x1xf32>
    %28 = tpu.reciprocal %27 {approx = true} : vector<64x1xf32> -> vector<64x1xf32>
    %29 = vector.broadcast %28 : vector<64x1xf32> to vector<64x16xf32>
    %30 = arith.mulf %25, %29 : vector<64x16xf32>
    %31 = tpu.transpose %30, [1, 0] : vector<64x16xf32> -> vector<16x64xf32>
    %cst_23 = arith.constant dense<0.000000e+00> : vector<4x64xf32>
    %32 = tpu.matmul %16, %31, %cst_23 {dimension_numbers = #tpu.dot_dimension_numbers<[1], [0], [0], [1], [0, 0, 1, 1], [], []>} : vector<4x16xf32>, vector<16x64xf32>, vector<4x64xf32> -> vector<4x64xf32>
    %33 = vector.extract_strided_slice %9 {offsets = [4, 0], sizes = [4, 64], strides = [1, 1]} : vector<32x64xf32> to vector<4x64xf32>
    %34 = vector.extract_strided_slice %11 {offsets = [4, 0], sizes = [4, 16], strides = [1, 1]} : vector<32x16xf32> to vector<4x16xf32>
    %35 = vector.extract_strided_slice %13 {offsets = [4, 0], sizes = [4, 16], strides = [1, 1]} : vector<32x16xf32> to vector<4x16xf32>
    %36 = tpu.transpose %33, [1, 0] : vector<4x64xf32> -> vector<64x4xf32>
    %cst_24 = arith.constant dense<0.000000e+00> : vector<64x16xf32>
    %37 = tpu.matmul %36, %34, %cst_24 {dimension_numbers = #tpu.dot_dimension_numbers<[1], [0], [0], [1], [0, 0, 1, 1], [], []>} : vector<64x4xf32>, vector<4x16xf32>, vector<64x16xf32> -> vector<64x16xf32>
    %cst_25 = arith.constant 5.000000e-01 : f32
    %38 = vector.broadcast %cst_25 : f32 to vector<64x16xf32>
    %39 = arith.mulf %37, %38 : vector<64x16xf32>
    %cst_26 = arith.constant dense<0xFF800000> : vector<64xf32>
    %40 = vector.multi_reduction <maximumf>, %39, %cst_26 [1] : vector<64x16xf32> to vector<64xf32>
    %41 = vector.shape_cast %40 : vector<64xf32> to vector<64x1xf32>
    %42 = vector.broadcast %41 : vector<64x1xf32> to vector<64x16xf32>
    %43 = arith.subf %39, %42 : vector<64x16xf32>
    %44 = math.exp %43 : vector<64x16xf32>
    %cst_27 = arith.constant dense<0.000000e+00> : vector<64xf32>
    %45 = vector.multi_reduction <add>, %44, %cst_27 [1] : vector<64x16xf32> to vector<64xf32>
    %46 = vector.shape_cast %45 : vector<64xf32> to vector<64x1xf32>
    %47 = tpu.reciprocal %46 {approx = true} : vector<64x1xf32> -> vector<64x1xf32>
    %48 = vector.broadcast %47 : vector<64x1xf32> to vector<64x16xf32>
    %49 = arith.mulf %44, %48 : vector<64x16xf32>
    %50 = tpu.transpose %49, [1, 0] : vector<64x16xf32> -> vector<16x64xf32>
    %cst_28 = arith.constant dense<0.000000e+00> : vector<4x64xf32>
    %51 = tpu.matmul %35, %50, %cst_28 {dimension_numbers = #tpu.dot_dimension_numbers<[1], [0], [0], [1], [0, 0, 1, 1], [], []>} : vector<4x16xf32>, vector<16x64xf32>, vector<4x64xf32> -> vector<4x64xf32>
    %52 = vector.extract_strided_slice %9 {offsets = [8, 0], sizes = [4, 64], strides = [1, 1]} : vector<32x64xf32> to vector<4x64xf32>
    %53 = vector.extract_strided_slice %11 {offsets = [8, 0], sizes = [4, 16], strides = [1, 1]} : vector<32x16xf32> to vector<4x16xf32>
    %54 = vector.extract_strided_slice %13 {offsets = [8, 0], sizes = [4, 16], strides = [1, 1]} : vector<32x16xf32> to vector<4x16xf32>
    %55 = tpu.transpose %52, [1, 0] : vector<4x64xf32> -> vector<64x4xf32>
    %cst_29 = arith.constant dense<0.000000e+00> : vector<64x16xf32>
    %56 = tpu.matmul %55, %53, %cst_29 {dimension_numbers = #tpu.dot_dimension_numbers<[1], [0], [0], [1], [0, 0, 1, 1], [], []>} : vector<64x4xf32>, vector<4x16xf32>, vector<64x16xf32> -> vector<64x16xf32>
    %cst_30 = arith.constant 5.000000e-01 : f32
    %57 = vector.broadcast %cst_30 : f32 to vector<64x16xf32>
    %58 = arith.mulf %56, %57 : vector<64x16xf32>
    %cst_31 = arith.constant dense<0xFF800000> : vector<64xf32>
    %59 = vector.multi_reduction <maximumf>, %58, %cst_31 [1] : vector<64x16xf32> to vector<64xf32>
    %60 = vector.shape_cast %59 : vector<64xf32> to vector<64x1xf32>
    %61 = vector.broadcast %60 : vector<64x1xf32> to vector<64x16xf32>
    %62 = arith.subf %58, %61 : vector<64x16xf32>
    %63 = math.exp %62 : vector<64x16xf32>
    %cst_32 = arith.constant dense<0.000000e+00> : vector<64xf32>
    %64 = vector.multi_reduction <add>, %63, %cst_32 [1] : vector<64x16xf32> to vector<64xf32>
    %65 = vector.shape_cast %64 : vector<64xf32> to vector<64x1xf32>
    %66 = tpu.reciprocal %65 {approx = true} : vector<64x1xf32> -> vector<64x1xf32>
    %67 = vector.broadcast %66 : vector<64x1xf32> to vector<64x16xf32>
    %68 = arith.mulf %63, %67 : vector<64x16xf32>
    %69 = tpu.transpose %68, [1, 0] : vector<64x16xf32> -> vector<16x64xf32>
    %cst_33 = arith.constant dense<0.000000e+00> : vector<4x64xf32>
    %70 = tpu.matmul %54, %69, %cst_33 {dimension_numbers = #tpu.dot_dimension_numbers<[1], [0], [0], [1], [0, 0, 1, 1], [], []>} : vector<4x16xf32>, vector<16x64xf32>, vector<4x64xf32> -> vector<4x64xf32>
    %71 = vector.extract_strided_slice %9 {offsets = [12, 0], sizes = [4, 64], strides = [1, 1]} : vector<32x64xf32> to vector<4x64xf32>
    %72 = vector.extract_strided_slice %11 {offsets = [12, 0], sizes = [4, 16], strides = [1, 1]} : vector<32x16xf32> to vector<4x16xf32>
    %73 = vector.extract_strided_slice %13 {offsets = [12, 0], sizes = [4, 16], strides = [1, 1]} : vector<32x16xf32> to vector<4x16xf32>
    %74 = tpu.transpose %71, [1, 0] : vector<4x64xf32> -> vector<64x4xf32>
    %cst_34 = arith.constant dense<0.000000e+00> : vector<64x16xf32>
    %75 = tpu.matmul %74, %72, %cst_34 {dimension_numbers = #tpu.dot_dimension_numbers<[1], [0], [0], [1], [0, 0, 1, 1], [], []>} : vector<64x4xf32>, vector<4x16xf32>, vector<64x16xf32> -> vector<64x16xf32>
    %cst_35 = arith.constant 5.000000e-01 : f32
    %76 = vector.broadcast %cst_35 : f32 to vector<64x16xf32>
    %77 = arith.mulf %75, %76 : vector<64x16xf32>
    %cst_36 = arith.constant dense<0xFF800000> : vector<64xf32>
    %78 = vector.multi_reduction <maximumf>, %77, %cst_36 [1] : vector<64x16xf32> to vector<64xf32>
    %79 = vector.shape_cast %78 : vector<64xf32> to vector<64x1xf32>
    %80 = vector.broadcast %79 : vector<64x1xf32> to vector<64x16xf32>
    %81 = arith.subf %77, %80 : vector<64x16xf32>
    %82 = math.exp %81 : vector<64x16xf32>
    %cst_37 = arith.constant dense<0.000000e+00> : vector<64xf32>
    %83 = vector.multi_reduction <add>, %82, %cst_37 [1] : vector<64x16xf32> to vector<64xf32>
    %84 = vector.shape_cast %83 : vector<64xf32> to vector<64x1xf32>
    %85 = tpu.reciprocal %84 {approx = true} : vector<64x1xf32> -> vector<64x1xf32>
    %86 = vector.broadcast %85 : vector<64x1xf32> to vector<64x16xf32>
    %87 = arith.mulf %82, %86 : vector<64x16xf32>
    %88 = tpu.transpose %87, [1, 0] : vector<64x16xf32> -> vector<16x64xf32>
    %cst_38 = arith.constant dense<0.000000e+00> : vector<4x64xf32>
    %89 = tpu.matmul %73, %88, %cst_38 {dimension_numbers = #tpu.dot_dimension_numbers<[1], [0], [0], [1], [0, 0, 1, 1], [], []>} : vector<4x16xf32>, vector<16x64xf32>, vector<4x64xf32> -> vector<4x64xf32>
    %90 = vector.extract_strided_slice %9 {offsets = [16, 0], sizes = [4, 64], strides = [1, 1]} : vector<32x64xf32> to vector<4x64xf32>
    %91 = vector.extract_strided_slice %11 {offsets = [16, 0], sizes = [4, 16], strides = [1, 1]} : vector<32x16xf32> to vector<4x16xf32>
    %92 = vector.extract_strided_slice %13 {offsets = [16, 0], sizes = [4, 16], strides = [1, 1]} : vector<32x16xf32> to vector<4x16xf32>
    %93 = tpu.transpose %90, [1, 0] : vector<4x64xf32> -> vector<64x4xf32>
    %cst_39 = arith.constant dense<0.000000e+00> : vector<64x16xf32>
    %94 = tpu.matmul %93, %91, %cst_39 {dimension_numbers = #tpu.dot_dimension_numbers<[1], [0], [0], [1], [0, 0, 1, 1], [], []>} : vector<64x4xf32>, vector<4x16xf32>, vector<64x16xf32> -> vector<64x16xf32>
    %cst_40 = arith.constant 5.000000e-01 : f32
    %95 = vector.broadcast %cst_40 : f32 to vector<64x16xf32>
    %96 = arith.mulf %94, %95 : vector<64x16xf32>
    %cst_41 = arith.constant dense<0xFF800000> : vector<64xf32>
    %97 = vector.multi_reduction <maximumf>, %96, %cst_41 [1] : vector<64x16xf32> to vector<64xf32>
    %98 = vector.shape_cast %97 : vector<64xf32> to vector<64x1xf32>
    %99 = vector.broadcast %98 : vector<64x1xf32> to vector<64x16xf32>
    %100 = arith.subf %96, %99 : vector<64x16xf32>
    %101 = math.exp %100 : vector<64x16xf32>
    %cst_42 = arith.constant dense<0.000000e+00> : vector<64xf32>
    %102 = vector.multi_reduction <add>, %101, %cst_42 [1] : vector<64x16xf32> to vector<64xf32>
    %103 = vector.shape_cast %102 : vector<64xf32> to vector<64x1xf32>
    %104 = tpu.reciprocal %103 {approx = true} : vector<64x1xf32> -> vector<64x1xf32>
    %105 = vector.broadcast %104 : vector<64x1xf32> to vector<64x16xf32>
    %106 = arith.mulf %101, %105 : vector<64x16xf32>
    %107 = tpu.transpose %106, [1, 0] : vector<64x16xf32> -> vector<16x64xf32>
    %cst_43 = arith.constant dense<0.000000e+00> : vector<4x64xf32>
    %108 = tpu.matmul %92, %107, %cst_43 {dimension_numbers = #tpu.dot_dimension_numbers<[1], [0], [0], [1], [0, 0, 1, 1], [], []>} : vector<4x16xf32>, vector<16x64xf32>, vector<4x64xf32> -> vector<4x64xf32>
    %109 = vector.extract_strided_slice %9 {offsets = [20, 0], sizes = [4, 64], strides = [1, 1]} : vector<32x64xf32> to vector<4x64xf32>
    %110 = vector.extract_strided_slice %11 {offsets = [20, 0], sizes = [4, 16], strides = [1, 1]} : vector<32x16xf32> to vector<4x16xf32>
    %111 = vector.extract_strided_slice %13 {offsets = [20, 0], sizes = [4, 16], strides = [1, 1]} : vector<32x16xf32> to vector<4x16xf32>
    %112 = tpu.transpose %109, [1, 0] : vector<4x64xf32> -> vector<64x4xf32>
    %cst_44 = arith.constant dense<0.000000e+00> : vector<64x16xf32>
    %113 = tpu.matmul %112, %110, %cst_44 {dimension_numbers = #tpu.dot_dimension_numbers<[1], [0], [0], [1], [0, 0, 1, 1], [], []>} : vector<64x4xf32>, vector<4x16xf32>, vector<64x16xf32> -> vector<64x16xf32>
    %cst_45 = arith.constant 5.000000e-01 : f32
    %114 = vector.broadcast %cst_45 : f32 to vector<64x16xf32>
    %115 = arith.mulf %113, %114 : vector<64x16xf32>
    %cst_46 = arith.constant dense<0xFF800000> : vector<64xf32>
    %116 = vector.multi_reduction <maximumf>, %115, %cst_46 [1] : vector<64x16xf32> to vector<64xf32>
    %117 = vector.shape_cast %116 : vector<64xf32> to vector<64x1xf32>
    %118 = vector.broadcast %117 : vector<64x1xf32> to vector<64x16xf32>
    %119 = arith.subf %115, %118 : vector<64x16xf32>
    %120 = math.exp %119 : vector<64x16xf32>
    %cst_47 = arith.constant dense<0.000000e+00> : vector<64xf32>
    %121 = vector.multi_reduction <add>, %120, %cst_47 [1] : vector<64x16xf32> to vector<64xf32>
    %122 = vector.shape_cast %121 : vector<64xf32> to vector<64x1xf32>
    %123 = tpu.reciprocal %122 {approx = true} : vector<64x1xf32> -> vector<64x1xf32>
    %124 = vector.broadcast %123 : vector<64x1xf32> to vector<64x16xf32>
    %125 = arith.mulf %120, %124 : vector<64x16xf32>
    %126 = tpu.transpose %125, [1, 0] : vector<64x16xf32> -> vector<16x64xf32>
    %cst_48 = arith.constant dense<0.000000e+00> : vector<4x64xf32>
    %127 = tpu.matmul %111, %126, %cst_48 {dimension_numbers = #tpu.dot_dimension_numbers<[1], [0], [0], [1], [0, 0, 1, 1], [], []>} : vector<4x16xf32>, vector<16x64xf32>, vector<4x64xf32> -> vector<4x64xf32>
    %128 = vector.extract_strided_slice %9 {offsets = [24, 0], sizes = [4, 64], strides = [1, 1]} : vector<32x64xf32> to vector<4x64xf32>
    %129 = vector.extract_strided_slice %11 {offsets = [24, 0], sizes = [4, 16], strides = [1, 1]} : vector<32x16xf32> to vector<4x16xf32>
    %130 = vector.extract_strided_slice %13 {offsets = [24, 0], sizes = [4, 16], strides = [1, 1]} : vector<32x16xf32> to vector<4x16xf32>
    %131 = tpu.transpose %128, [1, 0] : vector<4x64xf32> -> vector<64x4xf32>
    %cst_49 = arith.constant dense<0.000000e+00> : vector<64x16xf32>
    %132 = tpu.matmul %131, %129, %cst_49 {dimension_numbers = #tpu.dot_dimension_numbers<[1], [0], [0], [1], [0, 0, 1, 1], [], []>} : vector<64x4xf32>, vector<4x16xf32>, vector<64x16xf32> -> vector<64x16xf32>
    %cst_50 = arith.constant 5.000000e-01 : f32
    %133 = vector.broadcast %cst_50 : f32 to vector<64x16xf32>
    %134 = arith.mulf %132, %133 : vector<64x16xf32>
    %cst_51 = arith.constant dense<0xFF800000> : vector<64xf32>
    %135 = vector.multi_reduction <maximumf>, %134, %cst_51 [1] : vector<64x16xf32> to vector<64xf32>
    %136 = vector.shape_cast %135 : vector<64xf32> to vector<64x1xf32>
    %137 = vector.broadcast %136 : vector<64x1xf32> to vector<64x16xf32>
    %138 = arith.subf %134, %137 : vector<64x16xf32>
    %139 = math.exp %138 : vector<64x16xf32>
    %cst_52 = arith.constant dense<0.000000e+00> : vector<64xf32>
    %140 = vector.multi_reduction <add>, %139, %cst_52 [1] : vector<64x16xf32> to vector<64xf32>
    %141 = vector.shape_cast %140 : vector<64xf32> to vector<64x1xf32>
    %142 = tpu.reciprocal %141 {approx = true} : vector<64x1xf32> -> vector<64x1xf32>
    %143 = vector.broadcast %142 : vector<64x1xf32> to vector<64x16xf32>
    %144 = arith.mulf %139, %143 : vector<64x16xf32>
    %145 = tpu.transpose %144, [1, 0] : vector<64x16xf32> -> vector<16x64xf32>
    %cst_53 = arith.constant dense<0.000000e+00> : vector<4x64xf32>
    %146 = tpu.matmul %130, %145, %cst_53 {dimension_numbers = #tpu.dot_dimension_numbers<[1], [0], [0], [1], [0, 0, 1, 1], [], []>} : vector<4x16xf32>, vector<16x64xf32>, vector<4x64xf32> -> vector<4x64xf32>
    %147 = vector.extract_strided_slice %9 {offsets = [28, 0], sizes = [4, 64], strides = [1, 1]} : vector<32x64xf32> to vector<4x64xf32>
    %148 = vector.extract_strided_slice %11 {offsets = [28, 0], sizes = [4, 16], strides = [1, 1]} : vector<32x16xf32> to vector<4x16xf32>
    %149 = vector.extract_strided_slice %13 {offsets = [28, 0], sizes = [4, 16], strides = [1, 1]} : vector<32x16xf32> to vector<4x16xf32>
    %150 = tpu.transpose %147, [1, 0] : vector<4x64xf32> -> vector<64x4xf32>
    %cst_54 = arith.constant dense<0.000000e+00> : vector<64x16xf32>
    %151 = tpu.matmul %150, %148, %cst_54 {dimension_numbers = #tpu.dot_dimension_numbers<[1], [0], [0], [1], [0, 0, 1, 1], [], []>} : vector<64x4xf32>, vector<4x16xf32>, vector<64x16xf32> -> vector<64x16xf32>
    %cst_55 = arith.constant 5.000000e-01 : f32
    %152 = vector.broadcast %cst_55 : f32 to vector<64x16xf32>
    %153 = arith.mulf %151, %152 : vector<64x16xf32>
    %cst_56 = arith.constant dense<0xFF800000> : vector<64xf32>
    %154 = vector.multi_reduction <maximumf>, %153, %cst_56 [1] : vector<64x16xf32> to vector<64xf32>
    %155 = vector.shape_cast %154 : vector<64xf32> to vector<64x1xf32>
    %156 = vector.broadcast %155 : vector<64x1xf32> to vector<64x16xf32>
    %157 = arith.subf %153, %156 : vector<64x16xf32>
    %158 = math.exp %157 : vector<64x16xf32>
    %cst_57 = arith.constant dense<0.000000e+00> : vector<64xf32>
    %159 = vector.multi_reduction <add>, %158, %cst_57 [1] : vector<64x16xf32> to vector<64xf32>
    %160 = vector.shape_cast %159 : vector<64xf32> to vector<64x1xf32>
    %161 = tpu.reciprocal %160 {approx = true} : vector<64x1xf32> -> vector<64x1xf32>
    %162 = vector.broadcast %161 : vector<64x1xf32> to vector<64x16xf32>
    %163 = arith.mulf %158, %162 : vector<64x16xf32>
    %164 = tpu.transpose %163, [1, 0] : vector<64x16xf32> -> vector<16x64xf32>
    %cst_58 = arith.constant dense<0.000000e+00> : vector<4x64xf32>
    %165 = tpu.matmul %149, %164, %cst_58 {dimension_numbers = #tpu.dot_dimension_numbers<[1], [0], [0], [1], [0, 0, 1, 1], [], []>} : vector<4x16xf32>, vector<16x64xf32>, vector<4x64xf32> -> vector<4x64xf32>
    %166 = tpu.concatenate %32, %51, %70, %89, %108, %127, %146, %165 in 0 : vector<4x64xf32>, vector<4x64xf32>, vector<4x64xf32>, vector<4x64xf32>, vector<4x64xf32>, vector<4x64xf32>, vector<4x64xf32>, vector<4x64xf32> -> vector<32x64xf32>
    %c0_59 = arith.constant 0 : index
    %c0_60 = arith.constant 0 : index
    %167 = vector.load %arg9[%c0_59, %c0_60] : memref<32x32xf32, #tpu.memory_space<vmem>>, vector<32x32xf32>
    %cst_61 = arith.constant dense<0.000000e+00> : vector<32x64xf32>
    %168 = tpu.matmul %167, %166, %cst_61 {dimension_numbers = #tpu.dot_dimension_numbers<[1], [0], [0], [1], [0, 0, 1, 1], [], []>} : vector<32x32xf32>, vector<32x64xf32>, vector<32x64xf32> -> vector<32x64xf32>
    %c0_62 = arith.constant 0 : index
    %c0_63 = arith.constant 0 : index
    %169 = vector.load %arg10[%c0_62, %c0_63] : memref<32x1xf32, #tpu.memory_space<vmem>>, vector<32x1xf32>
    %170 = vector.broadcast %169 : vector<32x1xf32> to vector<32x64xf32>
    %171 = arith.addf %168, %170 : vector<32x64xf32>
    %c0_64 = arith.constant 0 : index
    %c0_65 = arith.constant 0 : index
    %172 = vector.load %arg5[%c0_64, %c0_65] : memref<64x256xf32, #tpu.memory_space<vmem>>, vector<64x256xf32>
    %cst_66 = arith.constant dense<0.000000e+00> : vector<32x256xf32>
    %173 = tpu.matmul %171, %172, %cst_66 {dimension_numbers = #tpu.dot_dimension_numbers<[1], [0], [0], [1], [0, 0, 1, 1], [], []>} : vector<32x64xf32>, vector<64x256xf32>, vector<32x256xf32> -> vector<32x256xf32>
    %174 = arith.addf %173, %3 : vector<32x256xf32>
    %c0_67 = arith.constant 0 : index
    %c0_68 = arith.constant 0 : index
    %c0_69 = arith.constant 0 : index
    %175 = vector.load %arg11[%c0_67, %c0_68, %c0_69] : memref<1x32x256xf32, #tpu.memory_space<vmem>>, vector<1x32x256xf32>
    %176 = vector.shape_cast %175 : vector<1x32x256xf32> to vector<32x256xf32>
    %177 = vector.shape_cast %174 : vector<32x256xf32> to vector<1x32x256xf32>
    tpu.vector_store %arg11[%c0_67, %c0_68, %c0_69], %177 {strides = array<i32>} : memref<1x32x256xf32, #tpu.memory_space<vmem>>, vector<1x32x256xf32>,
    return
  }
  func.func @transform_0(%arg0: i32) -> (i32, i32, i32) {
    %c0_i32 = arith.constant 0 : i32
    %c0_i32_0 = arith.constant 0 : i32
    %c0_i32_1 = arith.constant 0 : i32
    return %arg0, %c0_i32, %c0_i32_0 : i32, i32, i32
  }
  func.func @transform_1(%arg0: i32) -> (i32, i32, i32) {
    %c0_i32 = arith.constant 0 : i32
    %c0_i32_0 = arith.constant 0 : i32
    %c0_i32_1 = arith.constant 0 : i32
    return %arg0, %c0_i32, %c0_i32_0 : i32, i32, i32
  }
  func.func @transform_2(%arg0: i32) -> (i32, i32) {
    %c0_i32 = arith.constant 0 : i32
    %c0_i32_0 = arith.constant 0 : i32
    %c0_i32_1 = arith.constant 0 : i32
    return %c0_i32, %c0_i32_0 : i32, i32
  }
  func.func @transform_3(%arg0: i32) -> (i32, i32) {
    %c0_i32 = arith.constant 0 : i32
    %c0_i32_0 = arith.constant 0 : i32
    %c0_i32_1 = arith.constant 0 : i32
    return %c0_i32, %c0_i32_0 : i32, i32
  }
  func.func @transform_4(%arg0: i32) -> (i32, i32) {
    %c0_i32 = arith.constant 0 : i32
    %c0_i32_0 = arith.constant 0 : i32
    %c0_i32_1 = arith.constant 0 : i32
    return %c0_i32, %c0_i32_0 : i32, i32
  }
  func.func @transform_5(%arg0: i32) -> (i32, i32) {
    %c0_i32 = arith.constant 0 : i32
    %c0_i32_0 = arith.constant 0 : i32
    %c0_i32_1 = arith.constant 0 : i32
    return %c0_i32, %c0_i32_0 : i32, i32
  }
  func.func @transform_6(%arg0: i32) -> (i32, i32) {
    %c0_i32 = arith.constant 0 : i32
    %c0_i32_0 = arith.constant 0 : i32
    %c0_i32_1 = arith.constant 0 : i32
    return %c0_i32, %c0_i32_0 : i32, i32
  }
  func.func @transform_7(%arg0: i32) -> (i32, i32) {
    %c0_i32 = arith.constant 0 : i32
    %c0_i32_0 = arith.constant 0 : i32
    %c0_i32_1 = arith.constant 0 : i32
    return %c0_i32, %c0_i32_0 : i32, i32
  }
  func.func @transform_8(%arg0: i32) -> (i32, i32) {
    %c0_i32 = arith.constant 0 : i32
    %c0_i32_0 = arith.constant 0 : i32
    %c0_i32_1 = arith.constant 0 : i32
    return %c0_i32, %c0_i32_0 : i32, i32
  }
  func.func @transform_9(%arg0: i32) -> (i32, i32) {
    %c0_i32 = arith.constant 0 : i32
    %c0_i32_0 = arith.constant 0 : i32
    %c0_i32_1 = arith.constant 0 : i32
    return %c0_i32, %c0_i32_0 : i32, i32
  }
  func.func @transform_10(%arg0: i32) -> (i32, i32, i32) {
    %c0_i32 = arith.constant 0 : i32
    %c0_i32_0 = arith.constant 0 : i32
    %c0_i32_1 = arith.constant 0 : i32
    return %arg0, %c0_i32, %c0_i32_0 : i32, i32, i32
  }
}

</mosaic_0001>

<llo_original>
// kernel: tpu_custom_call.1
$region0: #{tpu_custom_call.1}
  #allocation0 [shape = 'u32[]', space=smem, size = 0x4, offset = 0x4, fixed_abs, tag = 'smem constant byte address 0x4 - core index']
  #allocation1 [shape = 'u32[144,128]{1,0:T(1,128)}', space=vmem, size = 0x12000, scoped, tag = 'internal scratch']
  %s0 = inlined_call_operand.vmem [shape: f32[2,32,64], index: 0, kind: input, shape index: {}]
  %s1 = inlined_call_operand.vmem [shape: f32[2,32,256], index: 1, kind: input, shape index: {}]
  %s2 = inlined_call_operand.vmem [shape: f32[64,16], index: 2, kind: input, shape index: {}]
  %s3 = inlined_call_operand.vmem [shape: f32[256,64], index: 3, kind: input, shape index: {}]
  %s4 = inlined_call_operand.vmem [shape: f32[64,256], index: 4, kind: input, shape index: {}]
  %s5 = inlined_call_operand.vmem [shape: f32[32,32], index: 5, kind: input, shape index: {}]
  %s6 = inlined_call_operand.vmem [shape: f32[32,32], index: 6, kind: input, shape index: {}]
  %s7 = inlined_call_operand.vmem [shape: f32[32,32], index: 7, kind: input, shape index: {}]
  %s8 = inlined_call_operand.vmem [shape: f32[32,32], index: 8, kind: input, shape index: {}]
  %s9 = inlined_call_operand.vmem [shape: f32[32,1], index: 9, kind: input, shape index: {}]
  %s10 = inlined_call_operand.hbm [shape: f32[2,32,256], index: 10, kind: output, shape index: {}]
  %s11 = sld [smem:[#allocation0]]
  $region73: #{tpu_custom_call.1} parent=0
    _
  %s13 = ssub.s32 1, %s11
  %s14 = scalar_select 0, %s13, %s11
  $region1: #{tpu_custom_call.1} parent=0
    #allocation2 [shape = 'u8[65536]{0}', space=vmem, size = 0x10000, scoped, tag = 'output window, operand 0']
    #allocation3 [shape = 's32[2]{0}', space=sflag, size = 0x8, scoped, tag = 'scoped memory for tpu_custom_call.1']
    %15 = vsyncpa [#allocation3], 0
    %s16 = scalar_lea.sflag [#allocation3], 1
    %17 = vsyncpa %s16, 0
    loop: start=0, step=1, limit=4
    $region2: #{tpu_custom_call.1} parent=1 // loop_pre_header
      _
    $region3: #{tpu_custom_call.1} parent=1 // loop_header
      %s19 = sphi 0, %s23
      %p20 = scmp.ge.s32.totalorder %s19, 4
      %s29 = sphi 0, %s31
      %s32 = sphi 0, %s29
      %s33 = sphi 0, %s32
      %s49 = sphi 0, %s33
      %s55 = sphi 0, %s57
      %s58 = sphi 0, %s55
      %s59 = sphi 0, %s58
      %s75 = sphi 0, %s59
      %s79 = sphi 0, %s79
      %s81 = sphi 0, %s79
      %s82 = sphi 0, %s81
      %s96 = sphi 0, %s82
      %s100 = sphi 0, %s100
      %s102 = sphi 0, %s100
      %s103 = sphi 0, %s102
      %s117 = sphi 0, %s103
      %s121 = sphi 0, %s121
      %s123 = sphi 0, %s121
      %s124 = sphi 0, %s123
      %s138 = sphi 0, %s124
      %s142 = sphi 0, %s142
      %s144 = sphi 0, %s142
      %s145 = sphi 0, %s144
      %s159 = sphi 0, %s145
      %s163 = sphi 0, %s163
      %s165 = sphi 0, %s163
      %s166 = sphi 0, %s165
      %s180 = sphi 0, %s166
      %s184 = sphi 0, %s184
      %s186 = sphi 0, %s184
      %s187 = sphi 0, %s186
      %s201 = sphi 0, %s187
      %s205 = sphi 0, %s205
      %s207 = sphi 0, %s205
      %s208 = sphi 0, %s207
      %s222 = sphi 0, %s208
      %s226 = sphi 0, %s226
      %s228 = sphi 0, %s226
      %s229 = sphi 0, %s228
      %s243 = sphi 0, %s229
      %s249 = sphi 0, %s251
      %s252 = sphi 0, %s249
      %s253 = sphi 0, %s252
      %s269 = sphi 0, %s253
    $region4: #{tpu_custom_call.1} parent=1 // loop_header_branch
      %22 = sbr.rel (%p20) target = $region8
    $region5: #{tpu_custom_call.1} parent=1 // loop_body
      %s24 = ssub.s32 %s19, 1
      %s25 = ssub.s32 %s19, 2
      %s26 = sadd.s32 %s19, 1
      %s27 = ssub.s32 %s19, %s26
      %p28 = scmp.eq.s32.totalorder %s27, 0
      %s30 = sadd.s32 %s29, 1
      %s31 = scalar_select %p28, %s29, %s30
      %p34 = pneg %p28
      %p35 = scmp.eq.s32.totalorder %s19, 1
      %p36 = por %p34, %p35
      %p37 = scmp.ne.s32.totalorder %s29, %s32
      %p38 = scmp.eq.s32.totalorder %s19, 0
      %p39 = por %p37, %p38
      %p40 = scmp.ne.s32.totalorder %s29, %s32
      %p41 = scmp.eq.s32.totalorder %s24, 1
      %p42 = por %p40, %p41
      %p43 = scmp.ne.s32.totalorder %s32, %s33
      %p44 = scmp.eq.s32.totalorder %s24, 0
      %p45 = por %p43, %p44
      %p46 = scmp.ne.s32.totalorder %s32, %s33
      %p47 = scmp.eq.s32.totalorder %s25, 1
      %p48 = por %p46, %p47
      %p50 = scmp.ne.s32.totalorder %s33, %s49
      %p51 = scmp.eq.s32.totalorder %s25, 0
      %p52 = por %p50, %p51
      %s53 = ssub.s32 %s19, %s26
      %p54 = scmp.eq.s32.totalorder %s53, 0
      %s56 = sadd.s32 %s55, 1
      %s57 = scalar_select %p54, %s55, %s56
      %p60 = pneg %p54
      %p61 = scmp.eq.s32.totalorder %s19, 1
      %p62 = por %p60, %p61
      %p63 = scmp.ne.s32.totalorder %s55, %s58
      %p64 = scmp.eq.s32.totalorder %s19, 0
      %p65 = por %p63, %p64
      %p66 = scmp.ne.s32.totalorder %s55, %s58
      %p67 = scmp.eq.s32.totalorder %s24, 1
      %p68 = por %p66, %p67
      %p69 = scmp.ne.s32.totalorder %s58, %s59
      %p70 = scmp.eq.s32.totalorder %s24, 0
      %p71 = por %p69, %p70
      %p72 = scmp.ne.s32.totalorder %s58, %s59
      %p73 = scmp.eq.s32.totalorder %s25, 1
      %p74 = por %p72, %p73
      %p76 = scmp.ne.s32.totalorder %s59, %s75
      %p77 = scmp.eq.s32.totalorder %s25, 0
      %p78 = por %p76, %p77
      %s80 = sadd.s32 %s79, 1
      %p83 = scmp.eq.s32.totalorder %s19, 1
      %p84 = scmp.ne.s32.totalorder %s79, %s81
      %p85 = scmp.eq.s32.totalorder %s19, 0
      %p86 = por %p84, %p85
      %p87 = scmp.ne.s32.totalorder %s79, %s81
      %p88 = scmp.eq.s32.totalorder %s24, 1
      %p89 = por %p87, %p88
      %p90 = scmp.ne.s32.totalorder %s81, %s82
      %p91 = scmp.eq.s32.totalorder %s24, 0
      %p92 = por %p90, %p91
      %p93 = scmp.ne.s32.totalorder %s81, %s82
      %p94 = scmp.eq.s32.totalorder %s25, 1
      %p95 = por %p93, %p94
      %p97 = scmp.ne.s32.totalorder %s82, %s96
      %p98 = scmp.eq.s32.totalorder %s25, 0
      %p99 = por %p97, %p98
      %s101 = sadd.s32 %s100, 1
      %p104 = scmp.eq.s32.totalorder %s19, 1
      %p105 = scmp.ne.s32.totalorder %s100, %s102
      %p106 = scmp.eq.s32.totalorder %s19, 0
      %p107 = por %p105, %p106
      %p108 = scmp.ne.s32.totalorder %s100, %s102
      %p109 = scmp.eq.s32.totalorder %s24, 1
      %p110 = por %p108, %p109
      %p111 = scmp.ne.s32.totalorder %s102, %s103
      %p112 = scmp.eq.s32.totalorder %s24, 0
      %p113 = por %p111, %p112
      %p114 = scmp.ne.s32.totalorder %s102, %s103
      %p115 = scmp.eq.s32.totalorder %s25, 1
      %p116 = por %p114, %p115
      %p118 = scmp.ne.s32.totalorder %s103, %s117
      %p119 = scmp.eq.s32.totalorder %s25, 0
      %p120 = por %p118, %p119
      %s122 = sadd.s32 %s121, 1
      %p125 = scmp.eq.s32.totalorder %s19, 1
      %p126 = scmp.ne.s32.totalorder %s121, %s123
      %p127 = scmp.eq.s32.totalorder %s19, 0
      %p128 = por %p126, %p127
      %p129 = scmp.ne.s32.totalorder %s121, %s123
      %p130 = scmp.eq.s32.totalorder %s24, 1
      %p131 = por %p129, %p130
      %p132 = scmp.ne.s32.totalorder %s123, %s124
      %p133 = scmp.eq.s32.totalorder %s24, 0
      %p134 = por %p132, %p133
      %p135 = scmp.ne.s32.totalorder %s123, %s124
      %p136 = scmp.eq.s32.totalorder %s25, 1
      %p137 = por %p135, %p136
      %p139 = scmp.ne.s32.totalorder %s124, %s138
      %p140 = scmp.eq.s32.totalorder %s25, 0
      %p141 = por %p139, %p140
      %s143 = sadd.s32 %s142, 1
      %p146 = scmp.eq.s32.totalorder %s19, 1
      %p147 = scmp.ne.s32.totalorder %s142, %s144
      %p148 = scmp.eq.s32.totalorder %s19, 0
      %p149 = por %p147, %p148
      %p150 = scmp.ne.s32.totalorder %s142, %s144
      %p151 = scmp.eq.s32.totalorder %s24, 1
      %p152 = por %p150, %p151
      %p153 = scmp.ne.s32.totalorder %s144, %s145
      %p154 = scmp.eq.s32.totalorder %s24, 0
      %p155 = por %p153, %p154
      %p156 = scmp.ne.s32.totalorder %s144, %s145
      %p157 = scmp.eq.s32.totalorder %s25, 1
      %p158 = por %p156, %p157
      %p160 = scmp.ne.s32.totalorder %s145, %s159
      %p161 = scmp.eq.s32.totalorder %s25, 0
      %p162 = por %p160, %p161
      %s164 = sadd.s32 %s163, 1
      %p167 = scmp.eq.s32.totalorder %s19, 1
      %p168 = scmp.ne.s32.totalorder %s163, %s165
      %p169 = scmp.eq.s32.totalorder %s19, 0
      %p170 = por %p168, %p169
      %p171 = scmp.ne.s32.totalorder %s163, %s165
      %p172 = scmp.eq.s32.totalorder %s24, 1
      %p173 = por %p171, %p172
      %p174 = scmp.ne.s32.totalorder %s165, %s166
      %p175 = scmp.eq.s32.totalorder %s24, 0
      %p176 = por %p174, %p175
      %p177 = scmp.ne.s32.totalorder %s165, %s166
      %p178 = scmp.eq.s32.totalorder %s25, 1
      %p179 = por %p177, %p178
      %p181 = scmp.ne.s32.totalorder %s166, %s180
      %p182 = scmp.eq.s32.totalorder %s25, 0
      %p183 = por %p181, %p182
      %s185 = sadd.s32 %s184, 1
      %p188 = scmp.eq.s32.totalorder %s19, 1
      %p189 = scmp.ne.s32.totalorder %s184, %s186
      %p190 = scmp.eq.s32.totalorder %s19, 0
      %p191 = por %p189, %p190
      %p192 = scmp.ne.s32.totalorder %s184, %s186
      %p193 = scmp.eq.s32.totalorder %s24, 1
      %p194 = por %p192, %p193
      %p195 = scmp.ne.s32.totalorder %s186, %s187
      %p196 = scmp.eq.s32.totalorder %s24, 0
      %p197 = por %p195, %p196
      %p198 = scmp.ne.s32.totalorder %s186, %s187
      %p199 = scmp.eq.s32.totalorder %s25, 1
      %p200 = por %p198, %p199
      %p202 = scmp.ne.s32.totalorder %s187, %s201
      %p203 = scmp.eq.s32.totalorder %s25, 0
      %p204 = por %p202, %p203
      %s206 = sadd.s32 %s205, 1
      %p209 = scmp.eq.s32.totalorder %s19, 1
      %p210 = scmp.ne.s32.totalorder %s205, %s207
      %p211 = scmp.eq.s32.totalorder %s19, 0
      %p212 = por %p210, %p211
      %p213 = scmp.ne.s32.totalorder %s205, %s207
      %p214 = scmp.eq.s32.totalorder %s24, 1
      %p215 = por %p213, %p214
      %p216 = scmp.ne.s32.totalorder %s207, %s208
      %p217 = scmp.eq.s32.totalorder %s24, 0
      %p218 = por %p216, %p217
      %p219 = scmp.ne.s32.totalorder %s207, %s208
      %p220 = scmp.eq.s32.totalorder %s25, 1
      %p221 = por %p219, %p220
      %p223 = scmp.ne.s32.totalorder %s208, %s222
      %p224 = scmp.eq.s32.totalorder %s25, 0
      %p225 = por %p223, %p224
      %s227 = sadd.s32 %s226, 1
      %p230 = scmp.eq.s32.totalorder %s19, 1
      %p231 = scmp.ne.s32.totalorder %s226, %s228
      %p232 = scmp.eq.s32.totalorder %s19, 0
      %p233 = por %p231, %p232
      %p234 = scmp.ne.s32.totalorder %s226, %s228
      %p235 = scmp.eq.s32.totalorder %s24, 1
      %p236 = por %p234, %p235
      %p237 = scmp.ne.s32.totalorder %s228, %s229
      %p238 = scmp.eq.s32.totalorder %s24, 0
      %p239 = por %p237, %p238
      %p240 = scmp.ne.s32.totalorder %s228, %s229
      %p241 = scmp.eq.s32.totalorder %s25, 1
      %p242 = por %p240, %p241
      %p244 = scmp.ne.s32.totalorder %s229, %s243
      %p245 = scmp.eq.s32.totalorder %s25, 0
      %p246 = por %p244, %p245
      %s247 = ssub.s32 %s19, %s26
      %p248 = scmp.eq.s32.totalorder %s247, 0
      %s250 = sadd.s32 %s249, 1
      %s251 = scalar_select %p248, %s249, %s250
      %p254 = pneg %p248
      %p255 = scmp.eq.s32.totalorder %s19, 1
      %p256 = por %p254, %p255
      %p257 = scmp.ne.s32.totalorder %s249, %s252
      %p258 = scmp.eq.s32.totalorder %s19, 0
      %p259 = por %p257, %p258
      %p260 = scmp.ne.s32.totalorder %s249, %s252
      %p261 = scmp.eq.s32.totalorder %s24, 1
      %p262 = por %p260, %p261
      %p263 = scmp.ne.s32.totalorder %s252, %s253
      %p264 = scmp.eq.s32.totalorder %s24, 0
      %p265 = por %p263, %p264
      %p266 = scmp.ne.s32.totalorder %s252, %s253
      %p267 = scmp.eq.s32.totalorder %s25, 1
      %p268 = por %p266, %p267
      %p270 = scmp.ne.s32.totalorder %s253, %s269
      %p271 = scmp.eq.s32.totalorder %s25, 0
      %p272 = por %p270, %p271
      %p273 = scmp.le.s32.totalorder 1, %s19
      %p274 = scmp.lt.s32.totalorder %s19, 3
      %p275 = pnand %p273, %p274
      %p276 = pneg %p275
      // Predicated region
      $region9: #{tpu_custom_call.1} parent=5 // pred_check
        _
      $region10: #{tpu_custom_call.1} parent=5 // pred_check_branch
        %278 = sbr.rel (%p275) target = $region12
      $region11: #{tpu_custom_call.1} parent=5 // pred_region
        %s279 = ssub.s32 %s19, 1
        // Predicated region
        $region13: #{tpu_custom_call.1} parent=11 // pred_check
          %p280 = pneg %p92
        $region14: #{tpu_custom_call.1} parent=11 // pred_check_branch
          %282 = sbr.rel (%p280) target = $region16
        $region15: #{tpu_custom_call.1} parent=11 // pred_region
          _
        $region16: #{tpu_custom_call.1} parent=11 // pred_fallthru
          _
        // Predicated region
        $region17: #{tpu_custom_call.1} parent=11 // pred_check
          %p283 = pneg %p113
        $region18: #{tpu_custom_call.1} parent=11 // pred_check_branch
          %285 = sbr.rel (%p283) target = $region20
        $region19: #{tpu_custom_call.1} parent=11 // pred_region
          _
        $region20: #{tpu_custom_call.1} parent=11 // pred_fallthru
          _
        // Predicated region
        $region21: #{tpu_custom_call.1} parent=11 // pred_check
          %p286 = pneg %p134
        $region22: #{tpu_custom_call.1} parent=11 // pred_check_branch
          %288 = sbr.rel (%p286) target = $region24
        $region23: #{tpu_custom_call.1} parent=11 // pred_region
          _
        $region24: #{tpu_custom_call.1} parent=11 // pred_fallthru
          _
        // Predicated region
        $region25: #{tpu_custom_call.1} parent=11 // pred_check
          %p289 = pneg %p155
        $region26: #{tpu_custom_call.1} parent=11 // pred_check_branch
          %291 = sbr.rel (%p289) target = $region28
        $region27: #{tpu_custom_call.1} parent=11 // pred_region
          _
        $region28: #{tpu_custom_call.1} parent=11 // pred_fallthru
          _
        // Predicated region
        $region29: #{tpu_custom_call.1} parent=11 // pred_check
          %p292 = pneg %p176
        $region30: #{tpu_custom_call.1} parent=11 // pred_check_branch
          %294 = sbr.rel (%p292) target = $region32
        $region31: #{tpu_custom_call.1} parent=11 // pred_region
          _
        $region32: #{tpu_custom_call.1} parent=11 // pred_fallthru
          _
        // Predicated region
        $region33: #{tpu_custom_call.1} parent=11 // pred_check
          %p295 = pneg %p197
        $region34: #{tpu_custom_call.1} parent=11 // pred_check_branch
          %297 = sbr.rel (%p295) target = $region36
        $region35: #{tpu_custom_call.1} parent=11 // pred_region
          _
        $region36: #{tpu_custom_call.1} parent=11 // pred_fallthru
          _
        // Predicated region
        $region37: #{tpu_custom_call.1} parent=11 // pred_check
          %p298 = pneg %p218
        $region38: #{tpu_custom_call.1} parent=11 // pred_check_branch
          %300 = sbr.rel (%p298) target = $region40
        $region39: #{tpu_custom_call.1} parent=11 // pred_region
          _
        $region40: #{tpu_custom_call.1} parent=11 // pred_fallthru
          _
        // Predicated region
        $region41: #{tpu_custom_call.1} parent=11 // pred_check
          %p301 = pneg %p239
        $region42: #{tpu_custom_call.1} parent=11 // pred_check_branch
          %303 = sbr.rel (%p301) target = $region44
        $region43: #{tpu_custom_call.1} parent=11 // pred_region
          _
        $region44: #{tpu_custom_call.1} parent=11 // pred_fallthru
          _
      $region12: #{tpu_custom_call.1} parent=5 // pred_fallthru
        _
      %p304 = scmp.lt.s32.totalorder %s19, 2
      // Predicated region
      $region45: #{tpu_custom_call.1} parent=5 // pred_check
        %p305 = pneg %p304
      $region46: #{tpu_custom_call.1} parent=5 // pred_check_branch
        %307 = sbr.rel (%p305) target = $region48
      $region47: #{tpu_custom_call.1} parent=5 // pred_region
        // Predicated region
        $region49: #{tpu_custom_call.1} parent=47 // pred_check
          %p308 = pneg %p39
        $region50: #{tpu_custom_call.1} parent=47 // pred_check_branch
          %310 = sbr.rel (%p308) target = $region52
        $region51: #{tpu_custom_call.1} parent=47 // pred_region
          %p311 = scmp.lt.s32.totalorder %s19, 1
          %s312 = scalar_select %p311, %s19, 1
          %s313 = smul.addr %s312, 4
          %s314 = smul.addr %s313, 8
          %s315 = scalar_lea.vmem %s0, %s314
        $region52: #{tpu_custom_call.1} parent=47 // pred_fallthru
          _
        // Predicated region
        $region53: #{tpu_custom_call.1} parent=47 // pred_check
          %p316 = pneg %p65
        $region54: #{tpu_custom_call.1} parent=47 // pred_check_branch
          %318 = sbr.rel (%p316) target = $region56
        $region55: #{tpu_custom_call.1} parent=47 // pred_region
          %p319 = scmp.lt.s32.totalorder %s19, 1
          %s320 = scalar_select %p319, %s19, 1
          %s321 = smul.addr %s320, 8
          %s322 = smul.addr %s321, 8
          %s323 = scalar_lea.vmem %s1, %s322
        $region56: #{tpu_custom_call.1} parent=47 // pred_fallthru
          _
      $region48: #{tpu_custom_call.1} parent=5 // pred_fallthru
        _
      %p324 = scmp.le.s32.totalorder 1, %s19
      %p325 = scmp.lt.s32.totalorder %s19, 3
      %p326 = pnand %p324, %p325
      %p327 = pneg %p326
      // Predicated region
      $region57: #{tpu_custom_call.1} parent=5 // pred_check
        _
      $region58: #{tpu_custom_call.1} parent=5 // pred_check_branch
        %329 = sbr.rel (%p326) target = $region60
      $region59: #{tpu_custom_call.1} parent=5 // pred_region
        %s330 = ssub.s32 %s19, 1
        %p331 = scmp.lt.s32.totalorder %s24, 1
        %s332 = scalar_select %p331, %s24, 1
        %s333 = smul.addr %s332, 4
        %s334 = smul.addr %s333, 8
        %s335 = scalar_lea.vmem %s0, %s334
        %p336 = pneg %p45
        %p337 = pneg %p42
        %p338 = scmp.lt.s32.totalorder %s24, 1
        %s339 = scalar_select %p338, %s24, 1
        %s340 = smul.addr %s339, 8
        %s341 = smul.addr %s340, 8
        %s342 = scalar_lea.vmem %s1, %s341
        %p343 = pneg %p71
        %p344 = pneg %p68
        %p345 = pneg %p92
        %p346 = pneg %p89
        %p347 = pneg %p113
        %p348 = pneg %p110
        %p349 = pneg %p134
        %p350 = pneg %p131
        %p351 = pneg %p155
        %p352 = pneg %p152
        %p353 = pneg %p176
        %p354 = pneg %p173
        %p355 = pneg %p197
        %p356 = pneg %p194
        %p357 = pneg %p218
        %p358 = pneg %p215
        %p359 = pneg %p239
        %p360 = pneg %p236
        %p361 = pneg %p265
        %p362 = pneg %p262
        %s363 = sand.u32 %s252, 1
        %s364 = scalar_lea.sflag [#allocation3], %s363
        %s365 = sand.u32 %s252, 1
        %s366 = smul.addr %s365, 64
        %s367 = scalar_lea.vmem [#allocation2], %s366
        %p368 = scmp.lt.s32.totalorder %s24, 1
        %s369 = scalar_select %p368, %s24, 1
        %s370 = smul.addr %s369, 4
        %s371 = smul.addr %s370, 8
        %s372 = scalar_lea.vmem %s0, %s371
        %p373 = scmp.lt.s32.totalorder %s24, 1
        %s374 = scalar_select %p373, %s24, 1
        %s375 = smul.addr %s374, 8
        %s376 = smul.addr %s375, 8
        %s377 = scalar_lea.vmem %s1, %s376
        %v378 = vld [vmem:[%s372] sm:$0xff]
        %v379 = vld [vmem:[%s372 + $0x8] sm:$0xff]
        %v380 = vld [vmem:[%s372 + $0x10] sm:$0xff]
        %v381 = vld [vmem:[%s372 + $0x18] sm:$0xff]
        %v382 = vld [vmem:[%s377] sm:$0xff]
        %v383 = vld [vmem:[%s377 + $0x8] sm:$0xff]
        %v384 = vld [vmem:[%s377 + $0x10] sm:$0xff]
        %v385 = vld [vmem:[%s377 + $0x18] sm:$0xff]
        %v386 = vld [vmem:[%s377 + $0x20] sm:$0xff]
        %v387 = vld [vmem:[%s377 + $0x28] sm:$0xff]
        %v388 = vld [vmem:[%s377 + $0x30] sm:$0xff]
        %v389 = vld [vmem:[%s377 + $0x38] sm:$0xff]
        %v390 = vld [vmem:[%s2] sm:$0xff]
        %v391 = vld [vmem:[%s2 + $0x8] sm:$0xff]
        %v392 = vld [vmem:[%s2 + $0x10] sm:$0xff]
        %v393 = vld [vmem:[%s2 + $0x18] sm:$0xff]
        %v394 = vld [vmem:[%s2 + $0x20] sm:$0xff]
        %v395 = vld [vmem:[%s2 + $0x28] sm:$0xff]
        %v396 = vld [vmem:[%s2 + $0x30] sm:$0xff]
        %v397 = vld [vmem:[%s2 + $0x38] sm:$0xff]
        %vm398 = vcmask 523264
        %v400 = vsel %vm398, %v378, 0
        %v403 = vsel %vm398, %v379, 0
        %v406 = vsel %vm398, %v380, 0
        %v409 = vsel %vm398, %v381, 0
        %411 = vmatprep.subr.mxu0 0.0
        %412 = vmatpush1.msra.mxu0 %v390
        %413 = vmatprep.subr.mxu0 0.0
        %414 = vmatpush1.msra.mxu0 %v391
        %415 = vmatprep.subr.mxu0 0.0
        %416 = vmatpush1.msra.mxu0 %v392
        %417 = vmatprep.subr.mxu0 0.0
        %418 = vmatpush1.msra.mxu0 %v393
        %419 = vmatprep.subr.mxu0 0.0
        %420 = vmatpush1.msra.mxu0 %v394
        %421 = vmatprep.subr.mxu0 0.0
        %422 = vmatpush1.msra.mxu0 %v395
        %423 = vmatprep.subr.mxu0 0.0
        %424 = vmatpush1.msra.mxu0 %v396
        %425 = vmatprep.subr.mxu0 0.0
        %426 = vmatpush1.msra.mxu0 %v397
        %427 = vmatprep.subr.mxu0 0.0
        %428 = vmatpush1.msra.mxu0 0.0
        %429 = vmatprep.subr.mxu0 0.0
        %430 = vmatpush1.msra.mxu0 0.0
        %431 = vmatprep.subr.mxu0 0.0
        %432 = vmatpush1.msra.mxu0 0.0
        %433 = vmatprep.subr.mxu0 0.0
        %434 = vmatpush1.msra.mxu0 0.0
        %435 = vmatprep.subr.mxu0 0.0
        %436 = vmatpush1.msra.mxu0 0.0
        %437 = vmatprep.subr.mxu0 0.0
        %438 = vmatpush1.msra.mxu0 0.0
        %439 = vmatprep.subr.mxu0 0.0
        %440 = vmatpush1.msra.mxu0 0.0
        %441 = vmatprep.subr.mxu0 0.0
        %442 = vmatpush1.msra.mxu0 0.0
        %443 = vmatprep.subr.mxu0 0.0
        %444 = vmatpush1.msra.mxu0 0.0
        %445 = vmatprep.subr.mxu0 0.0
        %446 = vmatpush1.msra.mxu0 0.0
        %447 = vmatprep.subr.mxu0 0.0
        %448 = vmatpush1.msra.mxu0 0.0
        %449 = vmatprep.subr.mxu0 0.0
        %450 = vmatpush1.msra.mxu0 0.0
        %451 = vmatprep.subr.mxu0 0.0
        %452 = vmatpush1.msra.mxu0 0.0
        %453 = vmatprep.subr.mxu0 0.0
        %454 = vmatpush1.msra.mxu0 0.0
        %455 = vmatprep.subr.mxu0 0.0
        %456 = vmatpush1.msra.mxu0 0.0
        %457 = vmatprep.subr.mxu0 0.0
        %458 = vmatpush1.msra.mxu0 0.0
        %459 = vmatprep.subr.mxu0 0.0
        %460 = vmatpush1.msra.mxu0 0.0
        %461 = vmatprep.subr.mxu0 0.0
        %462 = vmatpush1.msra.mxu0 0.0
        %463 = vmatprep.subr.mxu0 0.0
        %464 = vmatpush1.msra.mxu0 0.0
        %465 = vmatprep.subr.mxu0 0.0
        %466 = vmatpush1.msra.mxu0 0.0
        %467 = vmatprep.subr.mxu0 0.0
        %468 = vmatpush1.msra.mxu0 0.0
        %469 = vmatprep.subr.mxu0 0.0
        %470 = vmatpush1.msra.mxu0 0.0
        %471 = vmatprep.subr.mxu0 0.0
        %472 = vmatpush1.msra.mxu0 0.0
        %473 = vmatprep.subr.mxu0 0.0
        %474 = vmatpush1.msra.mxu0 0.0
        %475 = vmatprep.mubr.f32.mxu0 0.0
        %476 = vmatmul.mubr.f32.gmra.mrb[0].mxu0 %v400
        %v477 = vpop.f32.mrb[0].mxu0
        %v478 = vadd.f32 0.0, %v477
        %v479 = vpop.f32.mrb[0].mxu0
        %480 = vmatprep.mubr.f32.mxu0 0.0
        %481 = vmatmul.mubr.f32.gmra.mrb[0].mxu0 %v403
        %v482 = vpop.f32.mrb[0].mxu0
        %v483 = vadd.f32 0.0, %v482
        %v484 = vpop.f32.mrb[0].mxu0
        %485 = vmatprep.mubr.f32.mxu0 0.0
        %486 = vmatmul.mubr.f32.gmra.mrb[0].mxu0 %v406
        %v487 = vpop.f32.mrb[0].mxu0
        %v488 = vadd.f32 0.0, %v487
        %v489 = vpop.f32.mrb[0].mxu0
        %490 = vmatprep.mubr.f32.mxu0 0.0
        %491 = vmatmul.mubr.f32.gmra.mrb[0].mxu0 %v409
        %v492 = vpop.f32.mrb[0].mxu0
        %v493 = vadd.f32 0.0, %v492
        %v494 = vpop.f32.mrb[0].mxu0
        %495 = vdwg.mxu0
        %v496 = vld [vmem:[%s3] sm:$0xff]
        %v497 = vld [vmem:[%s3 + $0x8] sm:$0xff]
        %v498 = vld [vmem:[%s3 + $0x10] sm:$0xff]
        %v499 = vld [vmem:[%s3 + $0x18] sm:$0xff]
        %v500 = vld [vmem:[%s3 + $0x20] sm:$0xff]
        %v501 = vld [vmem:[%s3 + $0x28] sm:$0xff]
        %v502 = vld [vmem:[%s3 + $0x30] sm:$0xff]
        %v503 = vld [vmem:[%s3 + $0x38] sm:$0xff]
        %v504 = vld [vmem:[%s3 + $0x40] sm:$0xff]
        %v505 = vld [vmem:[%s3 + $0x48] sm:$0xff]
        %v506 = vld [vmem:[%s3 + $0x50] sm:$0xff]
        %v507 = vld [vmem:[%s3 + $0x58] sm:$0xff]
        %v508 = vld [vmem:[%s3 + $0x60] sm:$0xff]
        %v509 = vld [vmem:[%s3 + $0x68] sm:$0xff]
        %v510 = vld [vmem:[%s3 + $0x70] sm:$0xff]
        %v511 = vld [vmem:[%s3 + $0x78] sm:$0xff]
        %v512 = vld [vmem:[%s3 + $0x80] sm:$0xff]
        %v513 = vld [vmem:[%s3 + $0x88] sm:$0xff]
        %v514 = vld [vmem:[%s3 + $0x90] sm:$0xff]
        %v515 = vld [vmem:[%s3 + $0x98] sm:$0xff]
        %v516 = vld [vmem:[%s3 + $0xa0] sm:$0xff]
        %v517 = vld [vmem:[%s3 + $0xa8] sm:$0xff]
        %v518 = vld [vmem:[%s3 + $0xb0] sm:$0xff]
        %v519 = vld [vmem:[%s3 + $0xb8] sm:$0xff]
        %v520 = vld [vmem:[%s3 + $0xc0] sm:$0xff]
        %v521 = vld [vmem:[%s3 + $0xc8] sm:$0xff]
        %v522 = vld [vmem:[%s3 + $0xd0] sm:$0xff]
        %v523 = vld [vmem:[%s3 + $0xd8] sm:$0xff]
        %v524 = vld [vmem:[%s3 + $0xe0] sm:$0xff]
        %v525 = vld [vmem:[%s3 + $0xe8] sm:$0xff]
        %v526 = vld [vmem:[%s3 + $0xf0] sm:$0xff]
        %v527 = vld [vmem:[%s3 + $0xf8] sm:$0xff]
        %528 = vmatprep.subr.mxu0 0.0
        %529 = vmatpush1.msra.mxu0 %v496
        %530 = vmatprep.subr.mxu0 0.0
        %531 = vmatpush1.msra.mxu0 %v497
        %532 = vmatprep.subr.mxu0 0.0
        %533 = vmatpush1.msra.mxu0 %v498
        %534 = vmatprep.subr.mxu0 0.0
        %535 = vmatpush1.msra.mxu0 %v499
        %536 = vmatprep.subr.mxu0 0.0
        %537 = vmatpush1.msra.mxu0 %v500
        %538 = vmatprep.subr.mxu0 0.0
        %539 = vmatpush1.msra.mxu0 %v501
        %540 = vmatprep.subr.mxu0 0.0
        %541 = vmatpush1.msra.mxu0 %v502
        %542 = vmatprep.subr.mxu0 0.0
        %543 = vmatpush1.msra.mxu0 %v503
        %544 = vmatprep.subr.mxu0 0.0
        %545 = vmatpush1.msra.mxu0 %v504
        %546 = vmatprep.subr.mxu0 0.0
        %547 = vmatpush1.msra.mxu0 %v505
        %548 = vmatprep.subr.mxu0 0.0
        %549 = vmatpush1.msra.mxu0 %v506
        %550 = vmatprep.subr.mxu0 0.0
        %551 = vmatpush1.msra.mxu0 %v507
        %552 = vmatprep.subr.mxu0 0.0
        %553 = vmatpush1.msra.mxu0 %v508
        %554 = vmatprep.subr.mxu0 0.0
        %555 = vmatpush1.msra.mxu0 %v509
        %556 = vmatprep.subr.mxu0 0.0
        %557 = vmatpush1.msra.mxu0 %v510
        %558 = vmatprep.subr.mxu0 0.0
        %559 = vmatpush1.msra.mxu0 %v511
        %560 = vmatprep.subr.mxu0 0.0
        %561 = vmatpush1.msra.mxu0 %v512
        %562 = vmatprep.subr.mxu0 0.0
        %563 = vmatpush1.msra.mxu0 %v513
        %564 = vmatprep.subr.mxu0 0.0
        %565 = vmatpush1.msra.mxu0 %v514
        %566 = vmatprep.subr.mxu0 0.0
        %567 = vmatpush1.msra.mxu0 %v515
        %568 = vmatprep.subr.mxu0 0.0
        %569 = vmatpush1.msra.mxu0 %v516
        %570 = vmatprep.subr.mxu0 0.0
        %571 = vmatpush1.msra.mxu0 %v517
        %572 = vmatprep.subr.mxu0 0.0
        %573 = vmatpush1.msra.mxu0 %v518
        %574 = vmatprep.subr.mxu0 0.0
        %575 = vmatpush1.msra.mxu0 %v519
        %576 = vmatprep.subr.mxu0 0.0
        %577 = vmatpush1.msra.mxu0 %v520
        %578 = vmatprep.subr.mxu0 0.0
        %579 = vmatpush1.msra.mxu0 %v521
        %580 = vmatprep.subr.mxu0 0.0
        %581 = vmatpush1.msra.mxu0 %v522
        %582 = vmatprep.subr.mxu0 0.0
        %583 = vmatpush1.msra.mxu0 %v523
        %584 = vmatprep.subr.mxu0 0.0
        %585 = vmatpush1.msra.mxu0 %v524
        %586 = vmatprep.subr.mxu0 0.0
        %587 = vmatpush1.msra.mxu0 %v525
        %588 = vmatprep.subr.mxu0 0.0
        %589 = vmatpush1.msra.mxu0 %v526
        %590 = vmatprep.subr.mxu0 0.0
        %591 = vmatpush1.msra.mxu0 %v527
        %592 = vmatprep.mubr.f32.mxu0 %v383
        %593 = vmatmul.mubr.f32.gmra.mrb[0].mxu0 %v382
        %v594 = vpop.f32.mrb[0].mxu0
        %v595 = vadd.f32 0.0, %v594
        %v596 = vpop.f32.mrb[0].mxu0
        %597 = vmatprep.mubr.f32.mxu0 %v385
        %598 = vmatmul.mubr.f32.gmra.mrb[0].mxu0 %v384
        %v599 = vpop.f32.mrb[0].mxu0
        %v600 = vadd.f32 0.0, %v599
        %v601 = vpop.f32.mrb[0].mxu0
        %602 = vmatprep.mubr.f32.mxu0 %v387
        %603 = vmatmul.mubr.f32.gmra.mrb[0].mxu0 %v386
        %v604 = vpop.f32.mrb[0].mxu0
        %v605 = vadd.f32 0.0, %v604
        %v606 = vpop.f32.mrb[0].mxu0
        %607 = vmatprep.mubr.f32.mxu0 %v389
        %608 = vmatmul.mubr.f32.gmra.mrb[0].mxu0 %v388
        %v609 = vpop.f32.mrb[0].mxu0
        %v610 = vadd.f32 0.0, %v609
        %v611 = vpop.f32.mrb[0].mxu0
        %612 = vdwg.mxu0
        %v613 = vld [vmem:[%s5] sm:$0xff]
        %v614 = vld [vmem:[%s5 + $0x8] sm:$0xff]
        %v615 = vld [vmem:[%s5 + $0x10] sm:$0xff]
        %v616 = vld [vmem:[%s5 + $0x18] sm:$0xff]
        %vm617 = vcmask 261120
        %v619 = vsel %vm617, %v613, 0
        %v622 = vsel %vm617, %v614, 0
        %v625 = vsel %vm617, %v615, 0
        %v628 = vsel %vm617, %v616, 0
        %630 = vmatprep.subr.mxu0 0.0
        %631 = vmatpush1.msra.mxu0 %v595
        %632 = vmatprep.subr.mxu0 0.0
        %633 = vmatpush1.msra.mxu0 %v600
        %634 = vmatprep.subr.mxu0 0.0
        %635 = vmatpush1.msra.mxu0 %v605
        %636 = vmatprep.subr.mxu0 0.0
        %637 = vmatpush1.msra.mxu0 %v610
        %638 = vmatprep.subr.mxu0 0.0
        %639 = vmatpush1.msra.mxu0 0.0
        %640 = vmatprep.subr.mxu0 0.0
        %641 = vmatpush1.msra.mxu0 0.0
        %642 = vmatprep.subr.mxu0 0.0
        %643 = vmatpush1.msra.mxu0 0.0
        %644 = vmatprep.subr.mxu0 0.0
        %645 = vmatpush1.msra.mxu0 0.0
        %646 = vmatprep.subr.mxu0 0.0
        %647 = vmatpush1.msra.mxu0 0.0
        %648 = vmatprep.subr.mxu0 0.0
        %649 = vmatpush1.msra.mxu0 0.0
        %650 = vmatprep.subr.mxu0 0.0
        %651 = vmatpush1.msra.mxu0 0.0
        %652 = vmatprep.subr.mxu0 0.0
        %653 = vmatpush1.msra.mxu0 0.0
        %654 = vmatprep.subr.mxu0 0.0
        %655 = vmatpush1.msra.mxu0 0.0
        %656 = vmatprep.subr.mxu0 0.0
        %657 = vmatpush1.msra.mxu0 0.0
        %658 = vmatprep.subr.mxu0 0.0
        %659 = vmatpush1.msra.mxu0 0.0
        %660 = vmatprep.subr.mxu0 0.0
        %661 = vmatpush1.msra.mxu0 0.0
        %662 = vmatprep.subr.mxu0 0.0
        %663 = vmatpush1.msra.mxu0 0.0
        %664 = vmatprep.subr.mxu0 0.0
        %665 = vmatpush1.msra.mxu0 0.0
        %666 = vmatprep.subr.mxu0 0.0
        %667 = vmatpush1.msra.mxu0 0.0
        %668 = vmatprep.subr.mxu0 0.0
        %669 = vmatpush1.msra.mxu0 0.0
        %670 = vmatprep.subr.mxu0 0.0
        %671 = vmatpush1.msra.mxu0 0.0
        %672 = vmatprep.subr.mxu0 0.0
        %673 = vmatpush1.msra.mxu0 0.0
        %674 = vmatprep.subr.mxu0 0.0
        %675 = vmatpush1.msra.mxu0 0.0
        %676 = vmatprep.subr.mxu0 0.0
        %677 = vmatpush1.msra.mxu0 0.0
        %678 = vmatprep.subr.mxu0 0.0
        %679 = vmatpush1.msra.mxu0 0.0
        %680 = vmatprep.subr.mxu0 0.0
        %681 = vmatpush1.msra.mxu0 0.0
        %682 = vmatprep.subr.mxu0 0.0
        %683 = vmatpush1.msra.mxu0 0.0
        %684 = vmatprep.subr.mxu0 0.0
        %685 = vmatpush1.msra.mxu0 0.0
        %686 = vmatprep.subr.mxu0 0.0
        %687 = vmatpush1.msra.mxu0 0.0
        %688 = vmatprep.subr.mxu0 0.0
        %689 = vmatpush1.msra.mxu0 0.0
        %690 = vmatprep.subr.mxu0 0.0
        %691 = vmatpush1.msra.mxu0 0.0
        %692 = vmatprep.subr.mxu0 0.0
        %693 = vmatpush1.msra.mxu0 0.0
        %694 = vmatprep.mubr.f32.mxu0 0.0
        %695 = vmatmul.mubr.f32.gmra.mrb[0].mxu0 %v619
        %v696 = vpop.f32.mrb[0].mxu0
        %v697 = vadd.f32 0.0, %v696
        %v698 = vpop.f32.mrb[0].mxu0
        %699 = vmatprep.mubr.f32.mxu0 0.0
        %700 = vmatmul.mubr.f32.gmra.mrb[0].mxu0 %v622
        %v701 = vpop.f32.mrb[0].mxu0
        %v702 = vadd.f32 0.0, %v701
        %v703 = vpop.f32.mrb[0].mxu0
        %704 = vmatprep.mubr.f32.mxu0 0.0
        %705 = vmatmul.mubr.f32.gmra.mrb[0].mxu0 %v625
        %v706 = vpop.f32.mrb[0].mxu0
        %v707 = vadd.f32 0.0, %v706
        %v708 = vpop.f32.mrb[0].mxu0
        %709 = vmatprep.mubr.f32.mxu0 0.0
        %710 = vmatmul.mubr.f32.gmra.mrb[0].mxu0 %v628
        %v711 = vpop.f32.mrb[0].mxu0
        %v712 = vadd.f32 0.0, %v711
        %v713 = vpop.f32.mrb[0].mxu0
        %714 = vdwg.mxu0
        %v715 = vld [vmem:[%s6] sm:$0xff]
        %v716 = vld [vmem:[%s6 + $0x8] sm:$0xff]
        %v717 = vld [vmem:[%s6 + $0x10] sm:$0xff]
        %v718 = vld [vmem:[%s6 + $0x18] sm:$0xff]
        %v720 = vsel %vm617, %v715, 0
        %v723 = vsel %vm617, %v716, 0
        %v726 = vsel %vm617, %v717, 0
        %v729 = vsel %vm617, %v718, 0
        %731 = vmatprep.subr.mxu0 0.0
        %732 = vmatpush1.msra.mxu0 %v478
        %733 = vmatprep.subr.mxu0 0.0
        %734 = vmatpush1.msra.mxu0 %v483
        %735 = vmatprep.subr.mxu0 0.0
        %736 = vmatpush1.msra.mxu0 %v488
        %737 = vmatprep.subr.mxu0 0.0
        %738 = vmatpush1.msra.mxu0 %v493
        %739 = vmatprep.subr.mxu0 0.0
        %740 = vmatpush1.msra.mxu0 0.0
        %741 = vmatprep.subr.mxu0 0.0
        %742 = vmatpush1.msra.mxu0 0.0
        %743 = vmatprep.subr.mxu0 0.0
        %744 = vmatpush1.msra.mxu0 0.0
        %745 = vmatprep.subr.mxu0 0.0
        %746 = vmatpush1.msra.mxu0 0.0
        %747 = vmatprep.subr.mxu0 0.0
        %748 = vmatpush1.msra.mxu0 0.0
        %749 = vmatprep.subr.mxu0 0.0
        %750 = vmatpush1.msra.mxu0 0.0
        %751 = vmatprep.subr.mxu0 0.0
        %752 = vmatpush1.msra.mxu0 0.0
        %753 = vmatprep.subr.mxu0 0.0
        %754 = vmatpush1.msra.mxu0 0.0
        %755 = vmatprep.subr.mxu0 0.0
        %756 = vmatpush1.msra.mxu0 0.0
        %757 = vmatprep.subr.mxu0 0.0
        %758 = vmatpush1.msra.mxu0 0.0
        %759 = vmatprep.subr.mxu0 0.0
        %760 = vmatpush1.msra.mxu0 0.0
        %761 = vmatprep.subr.mxu0 0.0
        %762 = vmatpush1.msra.mxu0 0.0
        %763 = vmatprep.subr.mxu0 0.0
        %764 = vmatpush1.msra.mxu0 0.0
        %765 = vmatprep.subr.mxu0 0.0
        %766 = vmatpush1.msra.mxu0 0.0
        %767 = vmatprep.subr.mxu0 0.0
        %768 = vmatpush1.msra.mxu0 0.0
        %769 = vmatprep.subr.mxu0 0.0
        %770 = vmatpush1.msra.mxu0 0.0
        %771 = vmatprep.subr.mxu0 0.0
        %772 = vmatpush1.msra.mxu0 0.0
        %773 = vmatprep.subr.mxu0 0.0
        %774 = vmatpush1.msra.mxu0 0.0
        %775 = vmatprep.subr.mxu0 0.0
        %776 = vmatpush1.msra.mxu0 0.0
        %777 = vmatprep.subr.mxu0 0.0
        %778 = vmatpush1.msra.mxu0 0.0
        %779 = vmatprep.subr.mxu0 0.0
        %780 = vmatpush1.msra.mxu0 0.0
        %781 = vmatprep.subr.mxu0 0.0
        %782 = vmatpush1.msra.mxu0 0.0
        %783 = vmatprep.subr.mxu0 0.0
        %784 = vmatpush1.msra.mxu0 0.0
        %785 = vmatprep.subr.mxu0 0.0
        %786 = vmatpush1.msra.mxu0 0.0
        %787 = vmatprep.subr.mxu0 0.0
        %788 = vmatpush1.msra.mxu0 0.0
        %789 = vmatprep.subr.mxu0 0.0
        %790 = vmatpush1.msra.mxu0 0.0
        %791 = vmatprep.subr.mxu0 0.0
        %792 = vmatpush1.msra.mxu0 0.0
        %793 = vmatprep.subr.mxu0 0.0
        %794 = vmatpush1.msra.mxu0 0.0
        %795 = vmatprep.mubr.f32.mxu0 0.0
        %796 = vmatmul.mubr.f32.gmra.mrb[0].mxu0 %v720
        %v797 = vpop.f32.mrb[0].mxu0
        %v798 = vadd.f32 0.0, %v797
        %v799 = vpop.f32.mrb[0].mxu0
        %800 = vmatprep.mubr.f32.mxu0 0.0
        %801 = vmatmul.mubr.f32.gmra.mrb[0].mxu0 %v723
        %v802 = vpop.f32.mrb[0].mxu0
        %v803 = vadd.f32 0.0, %v802
        %v804 = vpop.f32.mrb[0].mxu0
        %805 = vmatprep.mubr.f32.mxu0 0.0
        %806 = vmatmul.mubr.f32.gmra.mrb[0].mxu0 %v726
        %v807 = vpop.f32.mrb[0].mxu0
        %v808 = vadd.f32 0.0, %v807
        %v809 = vpop.f32.mrb[0].mxu0
        %810 = vmatprep.mubr.f32.mxu0 0.0
        %811 = vmatmul.mubr.f32.gmra.mrb[0].mxu0 %v729
        %v812 = vpop.f32.mrb[0].mxu0
        %v813 = vadd.f32 0.0, %v812
        %v814 = vpop.f32.mrb[0].mxu0
        %815 = vdwg.mxu0
        %v816 = vld [vmem:[%s7] sm:$0xff]
        %v817 = vld [vmem:[%s7 + $0x8] sm:$0xff]
        %v818 = vld [vmem:[%s7 + $0x10] sm:$0xff]
        %v819 = vld [vmem:[%s7 + $0x18] sm:$0xff]
        %v821 = vsel %vm617, %v816, 0
        %v824 = vsel %vm617, %v817, 0
        %v827 = vsel %vm617, %v818, 0
        %v830 = vsel %vm617, %v819, 0
        %832 = vmatprep.subr.mxu0 0.0
        %833 = vmatpush1.msra.mxu0 %v478
        %834 = vmatprep.subr.mxu0 0.0
        %835 = vmatpush1.msra.mxu0 %v483
        %836 = vmatprep.subr.mxu0 0.0
        %837 = vmatpush1.msra.mxu0 %v488
        %838 = vmatprep.subr.mxu0 0.0
        %839 = vmatpush1.msra.mxu0 %v493
        %840 = vmatprep.subr.mxu0 0.0
        %841 = vmatpush1.msra.mxu0 0.0
        %842 = vmatprep.subr.mxu0 0.0
        %843 = vmatpush1.msra.mxu0 0.0
        %844 = vmatprep.subr.mxu0 0.0
        %845 = vmatpush1.msra.mxu0 0.0
        %846 = vmatprep.subr.mxu0 0.0
        %847 = vmatpush1.msra.mxu0 0.0
        %848 = vmatprep.subr.mxu0 0.0
        %849 = vmatpush1.msra.mxu0 0.0
        %850 = vmatprep.subr.mxu0 0.0
        %851 = vmatpush1.msra.mxu0 0.0
        %852 = vmatprep.subr.mxu0 0.0
        %853 = vmatpush1.msra.mxu0 0.0
        %854 = vmatprep.subr.mxu0 0.0
        %855 = vmatpush1.msra.mxu0 0.0
        %856 = vmatprep.subr.mxu0 0.0
        %857 = vmatpush1.msra.mxu0 0.0
        %858 = vmatprep.subr.mxu0 0.0
        %859 = vmatpush1.msra.mxu0 0.0
        %860 = vmatprep.subr.mxu0 0.0
        %861 = vmatpush1.msra.mxu0 0.0
        %862 = vmatprep.subr.mxu0 0.0
        %863 = vmatpush1.msra.mxu0 0.0
        %864 = vmatprep.subr.mxu0 0.0
        %865 = vmatpush1.msra.mxu0 0.0
        %866 = vmatprep.subr.mxu0 0.0
        %867 = vmatpush1.msra.mxu0 0.0
        %868 = vmatprep.subr.mxu0 0.0
        %869 = vmatpush1.msra.mxu0 0.0
        %870 = vmatprep.subr.mxu0 0.0
        %871 = vmatpush1.msra.mxu0 0.0
        %872 = vmatprep.subr.mxu0 0.0
        %873 = vmatpush1.msra.mxu0 0.0
        %874 = vmatprep.subr.mxu0 0.0
        %875 = vmatpush1.msra.mxu0 0.0
        %876 = vmatprep.subr.mxu0 0.0
        %877 = vmatpush1.msra.mxu0 0.0
        %878 = vmatprep.subr.mxu0 0.0
        %879 = vmatpush1.msra.mxu0 0.0
        %880 = vmatprep.subr.mxu0 0.0
        %881 = vmatpush1.msra.mxu0 0.0
        %882 = vmatprep.subr.mxu0 0.0
        %883 = vmatpush1.msra.mxu0 0.0
        %884 = vmatprep.subr.mxu0 0.0
        %885 = vmatpush1.msra.mxu0 0.0
        %886 = vmatprep.subr.mxu0 0.0
        %887 = vmatpush1.msra.mxu0 0.0
        %888 = vmatprep.subr.mxu0 0.0
        %889 = vmatpush1.msra.mxu0 0.0
        %890 = vmatprep.subr.mxu0 0.0
        %891 = vmatpush1.msra.mxu0 0.0
        %892 = vmatprep.subr.mxu0 0.0
        %893 = vmatpush1.msra.mxu0 0.0
        %894 = vmatprep.subr.mxu0 0.0
        %895 = vmatpush1.msra.mxu0 0.0
        %896 = vmatprep.mubr.f32.mxu0 0.0
        %897 = vmatmul.mubr.f32.gmra.mrb[0].mxu0 %v821
        %v898 = vpop.f32.mrb[0].mxu0
        %v899 = vadd.f32 0.0, %v898
        %v900 = vpop.f32.mrb[0].mxu0
        %901 = vmatprep.mubr.f32.mxu0 0.0
        %902 = vmatmul.mubr.f32.gmra.mrb[0].mxu0 %v824
        %v903 = vpop.f32.mrb[0].mxu0
        %v904 = vadd.f32 0.0, %v903
        %v905 = vpop.f32.mrb[0].mxu0
        %906 = vmatprep.mubr.f32.mxu0 0.0
        %907 = vmatmul.mubr.f32.gmra.mrb[0].mxu0 %v827
        %v908 = vpop.f32.mrb[0].mxu0
        %v909 = vadd.f32 0.0, %v908
        %v910 = vpop.f32.mrb[0].mxu0
        %911 = vmatprep.mubr.f32.mxu0 0.0
        %912 = vmatmul.mubr.f32.gmra.mrb[0].mxu0 %v830
        %v913 = vpop.f32.mrb[0].mxu0
        %v914 = vadd.f32 0.0, %v913
        %v915 = vpop.f32.mrb[0].mxu0
        %916 = vdwg.mxu0
        %917 = vxpose.xlu0.b32.start [1/16] %v697, 128
        %918 = vxpose.xlu0.b32.cont [2/16] 0.0, 128
        %919 = vxpose.xlu0.b32.cont [3/16] 0.0, 128
        %920 = vxpose.xlu0.b32.cont [4/16] 0.0, 128
        %921 = vxpose.xlu0.b32.cont [5/16] 0.0, 128
        %922 = vxpose.xlu0.b32.cont [6/16] 0.0, 128
        %923 = vxpose.xlu0.b32.cont [7/16] 0.0, 128
        %924 = vxpose.xlu0.b32.cont [8/16] 0.0, 128
        %925 = vxpose.xlu0.b32.cont [9/16] 0.0, 128
        %926 = vxpose.xlu0.b32.cont [10/16] 0.0, 128
        %927 = vxpose.xlu0.b32.cont [11/16] 0.0, 128
        %928 = vxpose.xlu0.b32.cont [12/16] 0.0, 128
        %929 = vxpose.xlu0.b32.cont [13/16] 0.0, 128
        %930 = vxpose.xlu0.b32.cont [14/16] 0.0, 128
        %931 = vxpose.xlu0.b32.cont [15/16] 0.0, 128
        %932 = vxpose.xlu0.b32.end [16/16] 0.0, 128
        %v933 = vpop.trf.xlu0
        %v934 = vpop.trf.xlu0
        %v935 = vpop.trf.xlu0
        %v936 = vpop.trf.xlu0
        %v937 = vpop.trf.xlu0
        %v938 = vpop.trf.xlu0
        %v939 = vpop.trf.xlu0
        %v940 = vpop.trf.xlu0
        %v941 = vpop.trf.xlu0
        %v942 = vpop.trf.xlu0
        %v943 = vpop.trf.xlu0
        %v944 = vpop.trf.xlu0
        %v945 = vpop.trf.xlu0
        %v946 = vpop.trf.xlu0
        %v947 = vpop.trf.xlu0
        %v948 = vpop.trf.xlu0
        %vm949 = vcmask 31744
        %v951 = vsel %vm949, %v933, 0
        %v954 = vsel %vm949, %v934, 0
        %v957 = vsel %vm949, %v935, 0
        %v960 = vsel %vm949, %v936, 0
        %v963 = vsel %vm949, %v937, 0
        %v966 = vsel %vm949, %v938, 0
        %v969 = vsel %vm949, %v939, 0
        %v972 = vsel %vm949, %v940, 0
        %vm974 = vcmask 1043456
        %v976 = vsel %vm974, %v798, 0
        %978 = vmatprep.subr.mxu0 0.0
        %979 = vmatpush1.msra.mxu0 %v976
        %980 = vmatprep.subr.mxu0 0.0
        %981 = vmatpush1.msra.mxu0 0.0
        %982 = vmatprep.subr.mxu0 0.0
        %983 = vmatpush1.msra.mxu0 0.0
        %984 = vmatprep.subr.mxu0 0.0
        %985 = vmatpush1.msra.mxu0 0.0
        %986 = vmatprep.subr.mxu0 0.0
        %987 = vmatpush1.msra.mxu0 0.0
        %988 = vmatprep.subr.mxu0 0.0
        %989 = vmatpush1.msra.mxu0 0.0
        %990 = vmatprep.subr.mxu0 0.0
        %991 = vmatpush1.msra.mxu0 0.0
        %992 = vmatprep.subr.mxu0 0.0
        %993 = vmatpush1.msra.mxu0 0.0
        %994 = vmatprep.subr.mxu0 0.0
        %995 = vmatpush1.msra.mxu0 0.0
        %996 = vmatprep.subr.mxu0 0.0
        %997 = vmatpush1.msra.mxu0 0.0
        %998 = vmatprep.subr.mxu0 0.0
        %999 = vmatpush1.msra.mxu0 0.0
        %1000 = vmatprep.subr.mxu0 0.0
        %1001 = vmatpush1.msra.mxu0 0.0
        %1002 = vmatprep.subr.mxu0 0.0
        %1003 = vmatpush1.msra.mxu0 0.0
        %1004 = vmatprep.subr.mxu0 0.0
        %1005 = vmatpush1.msra.mxu0 0.0
        %1006 = vmatprep.subr.mxu0 0.0
        %1007 = vmatpush1.msra.mxu0 0.0
        %1008 = vmatprep.subr.mxu0 0.0
        %1009 = vmatpush1.msra.mxu0 0.0
        %1010 = vmatprep.subr.mxu0 0.0
        %1011 = vmatpush1.msra.mxu0 0.0
        %1012 = vmatprep.subr.mxu0 0.0
        %1013 = vmatpush1.msra.mxu0 0.0
        %1014 = vmatprep.subr.mxu0 0.0
        %1015 = vmatpush1.msra.mxu0 0.0
        %1016 = vmatprep.subr.mxu0 0.0
        %1017 = vmatpush1.msra.mxu0 0.0
        %1018 = vmatprep.subr.mxu0 0.0
        %1019 = vmatpush1.msra.mxu0 0.0
        %1020 = vmatprep.subr.mxu0 0.0
        %1021 = vmatpush1.msra.mxu0 0.0
        %1022 = vmatprep.subr.mxu0 0.0
        %1023 = vmatpush1.msra.mxu0 0.0
        %1024 = vmatprep.subr.mxu0 0.0
        %1025 = vmatpush1.msra.mxu0 0.0
        %1026 = vmatprep.subr.mxu0 0.0
        %1027 = vmatpush1.msra.mxu0 0.0
        %1028 = vmatprep.subr.mxu0 0.0
        %1029 = vmatpush1.msra.mxu0 0.0
        %1030 = vmatprep.subr.mxu0 0.0
        %1031 = vmatpush1.msra.mxu0 0.0
        %1032 = vmatprep.subr.mxu0 0.0
        %1033 = vmatpush1.msra.mxu0 0.0
        %1034 = vmatprep.subr.mxu0 0.0
        %1035 = vmatpush1.msra.mxu0 0.0
        %1036 = vmatprep.subr.mxu0 0.0
        %1037 = vmatpush1.msra.mxu0 0.0
        %1038 = vmatprep.subr.mxu0 0.0
        %1039 = vmatpush1.msra.mxu0 0.0
        %1040 = vmatprep.subr.mxu0 0.0
        %1041 = vmatpush1.msra.mxu0 0.0
        %1042 = vmatprep.mubr.f32.mxu0 0.0
        %1043 = vmatmul.mubr.f32.gmra.mrb[0].mxu0 %v951
        %v1044 = vpop.f32.mrb[0].mxu0
        %v1045 = vadd.f32 0.0, %v1044
        %v1046 = vpop.f32.mrb[0].mxu0
        %1047 = vmatprep.mubr.f32.mxu0 0.0
        %1048 = vmatmul.mubr.f32.gmra.mrb[0].mxu0 %v954
        %v1049 = vpop.f32.mrb[0].mxu0
        %v1050 = vadd.f32 0.0, %v1049
        %v1051 = vpop.f32.mrb[0].mxu0
        %1052 = vmatprep.mubr.f32.mxu0 0.0
        %1053 = vmatmul.mubr.f32.gmra.mrb[0].mxu0 %v957
        %v1054 = vpop.f32.mrb[0].mxu0
        %v1055 = vadd.f32 0.0, %v1054
        %v1056 = vpop.f32.mrb[0].mxu0
        %1057 = vmatprep.mubr.f32.mxu0 0.0
        %1058 = vmatmul.mubr.f32.gmra.mrb[0].mxu0 %v960
        %v1059 = vpop.f32.mrb[0].mxu0
        %v1060 = vadd.f32 0.0, %v1059
        %v1061 = vpop.f32.mrb[0].mxu0
        %1062 = vmatprep.mubr.f32.mxu0 0.0
        %1063 = vmatmul.mubr.f32.gmra.mrb[0].mxu0 %v963
        %v1064 = vpop.f32.mrb[0].mxu0
        %v1065 = vadd.f32 0.0, %v1064
        %v1066 = vpop.f32.mrb[0].mxu0
        %1067 = vmatprep.mubr.f32.mxu0 0.0
        %1068 = vmatmul.mubr.f32.gmra.mrb[0].mxu0 %v966
        %v1069 = vpop.f32.mrb[0].mxu0
        %v1070 = vadd.f32 0.0, %v1069
        %v1071 = vpop.f32.mrb[0].mxu0
        %1072 = vmatprep.mubr.f32.mxu0 0.0
        %1073 = vmatmul.mubr.f32.gmra.mrb[0].mxu0 %v969
        %v1074 = vpop.f32.mrb[0].mxu0
        %v1075 = vadd.f32 0.0, %v1074
        %v1076 = vpop.f32.mrb[0].mxu0
        %1077 = vmatprep.mubr.f32.mxu0 0.0
        %1078 = vmatmul.mubr.f32.gmra.mrb[0].mxu0 %v972
        %v1079 = vpop.f32.mrb[0].mxu0
        %v1080 = vadd.f32 0.0, %v1079
        %v1081 = vpop.f32.mrb[0].mxu0
        %1082 = vdwg.mxu0
        %v1083 = vmul.f32 %v1045, 0.5
        %v1084 = vmul.f32 %v1050, 0.5
        %v1085 = vmul.f32 %v1055, 0.5
        %v1086 = vmul.f32 %v1060, 0.5
        %v1087 = vmul.f32 %v1065, 0.5
        %v1088 = vmul.f32 %v1070, 0.5
        %v1089 = vmul.f32 %v1075, 0.5
        %v1090 = vmul.f32 %v1080, 0.5
        %vm1091 = vcmask 130048
        %v1092 = vsel %vm1091, %v1083, -inf
        %1093 = vmax.xlane.f32.xlu0 %v1092
        %v1094 = vpop.xlane.xlu0 %1093
        %v1095 = vsel %vm1091, %v1084, -inf
        %1096 = vmax.xlane.f32.xlu0 %v1095
        %v1097 = vpop.xlane.xlu0 %1096
        %v1098 = vsel %vm1091, %v1085, -inf
        %1099 = vmax.xlane.f32.xlu0 %v1098
        %v1100 = vpop.xlane.xlu0 %1099
        %v1101 = vsel %vm1091, %v1086, -inf
        %1102 = vmax.xlane.f32.xlu0 %v1101
        %v1103 = vpop.xlane.xlu0 %1102
        %v1104 = vsel %vm1091, %v1087, -inf
        %1105 = vmax.xlane.f32.xlu0 %v1104
        %v1106 = vpop.xlane.xlu0 %1105
        %v1107 = vsel %vm1091, %v1088, -inf
        %1108 = vmax.xlane.f32.xlu0 %v1107
        %v1109 = vpop.xlane.xlu0 %1108
        %v1110 = vsel %vm1091, %v1089, -inf
        %1111 = vmax.xlane.f32.xlu0 %v1110
        %v1112 = vpop.xlane.xlu0 %1111
        %v1113 = vsel %vm1091, %v1090, -inf
        %1114 = vmax.xlane.f32.xlu0 %v1113
        %v1115 = vpop.xlane.xlu0 %1114
        %v1116 = vsub.f32 %v1083, %v1094
        %v1117 = vsub.f32 %v1084, %v1097
        %v1118 = vsub.f32 %v1085, %v1100
        %v1119 = vsub.f32 %v1086, %v1103
        %v1120 = vsub.f32 %v1087, %v1106
        %v1121 = vsub.f32 %v1088, %v1109
        %v1122 = vsub.f32 %v1089, %v1112
        %v1123 = vsub.f32 %v1090, %v1115
        %v1124 = vmul.f32 %v1116, 1.442695
        %v1125 = vpow.pop %v1124
        %v1126 = vmul.f32 %v1117, 1.442695
        %v1127 = vpow.pop %v1126
        %v1128 = vmul.f32 %v1118, 1.442695
        %v1129 = vpow.pop %v1128
        %v1130 = vmul.f32 %v1119, 1.442695
        %v1131 = vpow.pop %v1130
        %v1132 = vmul.f32 %v1120, 1.442695
        %v1133 = vpow.pop %v1132
        %v1134 = vmul.f32 %v1121, 1.442695
        %v1135 = vpow.pop %v1134
        %v1136 = vmul.f32 %v1122, 1.442695
        %v1137 = vpow.pop %v1136
        %v1138 = vmul.f32 %v1123, 1.442695
        %v1139 = vpow.pop %v1138
        %v1140 = vsel %vm1091, %v1125, 0.0
        %1141 = vadd.xlane.f32.xlu0 %v1140
        %v1142 = vpop.xlane.xlu0 %1141
        %v1143 = vsel %vm1091, %v1127, 0.0
        %1144 = vadd.xlane.f32.xlu0 %v1143
        %v1145 = vpop.xlane.xlu0 %1144
        %v1146 = vsel %vm1091, %v1129, 0.0
        %1147 = vadd.xlane.f32.xlu0 %v1146
        %v1148 = vpop.xlane.xlu0 %1147
        %v1149 = vsel %vm1091, %v1131, 0.0
        %1150 = vadd.xlane.f32.xlu0 %v1149
        %v1151 = vpop.xlane.xlu0 %1150
        %v1152 = vsel %vm1091, %v1133, 0.0
        %1153 = vadd.xlane.f32.xlu0 %v1152
        %v1154 = vpop.xlane.xlu0 %1153
        %v1155 = vsel %vm1091, %v1135, 0.0
        %1156 = vadd.xlane.f32.xlu0 %v1155
        %v1157 = vpop.xlane.xlu0 %1156
        %v1158 = vsel %vm1091, %v1137, 0.0
        %1159 = vadd.xlane.f32.xlu0 %v1158
        %v1160 = vpop.xlane.xlu0 %1159
        %v1161 = vsel %vm1091, %v1139, 0.0
        %1162 = vadd.xlane.f32.xlu0 %v1161
        %v1163 = vpop.xlane.xlu0 %1162
        %v1164 = vrcp.pop %v1142
        %v1165 = vrcp.pop %v1145
        %v1166 = vrcp.pop %v1148
        %v1167 = vrcp.pop %v1151
        %v1168 = vrcp.pop %v1154
        %v1169 = vrcp.pop %v1157
        %v1170 = vrcp.pop %v1160
        %v1171 = vrcp.pop %v1163
        %v1172 = vmul.f32 %v1125, %v1164
        %v1173 = vmul.f32 %v1127, %v1165
        %v1174 = vmul.f32 %v1129, %v1166
        %v1175 = vmul.f32 %v1131, %v1167
        %v1176 = vmul.f32 %v1133, %v1168
        %v1177 = vmul.f32 %v1135, %v1169
        %v1178 = vmul.f32 %v1137, %v1170
        %v1179 = vmul.f32 %v1139, %v1171
        %v1181 = vsel %vm1091, %v899, 0
        %v1184 = vsel %vm1091, %v1172, 0
        %v1187 = vsel %vm1091, %v1173, 0
        %v1190 = vsel %vm1091, %v1174, 0
        %v1193 = vsel %vm1091, %v1175, 0
        %v1196 = vsel %vm1091, %v1176, 0
        %v1199 = vsel %vm1091, %v1177, 0
        %v1202 = vsel %vm1091, %v1178, 0
        %v1205 = vsel %vm1091, %v1179, 0
        %1207 = vmatprep.subr.mxu0 0.0
        %1208 = vmatpush1.xpose.msra.mxu0 %v1184
        %1209 = vmatprep.subr.mxu0 0.0
        %1210 = vmatpush1.xpose.msra.mxu0 %v1187
        %1211 = vmatprep.subr.mxu0 0.0
        %1212 = vmatpush1.xpose.msra.mxu0 %v1190
        %1213 = vmatprep.subr.mxu0 0.0
        %1214 = vmatpush1.xpose.msra.mxu0 %v1193
        %1215 = vmatprep.subr.mxu0 0.0
        %1216 = vmatpush1.xpose.msra.mxu0 %v1196
        %1217 = vmatprep.subr.mxu0 0.0
        %1218 = vmatpush1.xpose.msra.mxu0 %v1199
        %1219 = vmatprep.subr.mxu0 0.0
        %1220 = vmatpush1.xpose.msra.mxu0 %v1202
        %1221 = vmatprep.subr.mxu0 0.0
        %1222 = vmatpush1.xpose.msra.mxu0 %v1205
        %1223 = vmatprep.subr.mxu0 0.0
        %1224 = vmatpush1.xpose.msra.mxu0 0.0
        %1225 = vmatprep.subr.mxu0 0.0
        %1226 = vmatpush1.xpose.msra.mxu0 0.0
        %1227 = vmatprep.subr.mxu0 0.0
        %1228 = vmatpush1.xpose.msra.mxu0 0.0
        %1229 = vmatprep.subr.mxu0 0.0
        %1230 = vmatpush1.xpose.msra.mxu0 0.0
        %1231 = vmatprep.subr.mxu0 0.0
        %1232 = vmatpush1.xpose.msra.mxu0 0.0
        %1233 = vmatprep.subr.mxu0 0.0
        %1234 = vmatpush1.xpose.msra.mxu0 0.0
        %1235 = vmatprep.subr.mxu0 0.0
        %1236 = vmatpush1.xpose.msra.mxu0 0.0
        %1237 = vmatprep.subr.mxu0 0.0
        %1238 = vmatpush1.xpose.msra.mxu0 0.0
        %1239 = vmatprep.subr.mxu0 0.0
        %1240 = vmatpush1.xpose.msra.mxu0 0.0
        %1241 = vmatprep.subr.mxu0 0.0
        %1242 = vmatpush1.xpose.msra.mxu0 0.0
        %1243 = vmatprep.subr.mxu0 0.0
        %1244 = vmatpush1.xpose.msra.mxu0 0.0
        %1245 = vmatprep.subr.mxu0 0.0
        %1246 = vmatpush1.xpose.msra.mxu0 0.0
        %1247 = vmatprep.subr.mxu0 0.0
        %1248 = vmatpush1.xpose.msra.mxu0 0.0
        %1249 = vmatprep.subr.mxu0 0.0
        %1250 = vmatpush1.xpose.msra.mxu0 0.0
        %1251 = vmatprep.subr.mxu0 0.0
        %1252 = vmatpush1.xpose.msra.mxu0 0.0
        %1253 = vmatprep.subr.mxu0 0.0
        %1254 = vmatpush1.xpose.msra.mxu0 0.0
        %1255 = vmatprep.subr.mxu0 0.0
        %1256 = vmatpush1.xpose.msra.mxu0 0.0
        %1257 = vmatprep.subr.mxu0 0.0
        %1258 = vmatpush1.xpose.msra.mxu0 0.0
        %1259 = vmatprep.subr.mxu0 0.0
        %1260 = vmatpush1.xpose.msra.mxu0 0.0
        %1261 = vmatprep.subr.mxu0 0.0
        %1262 = vmatpush1.xpose.msra.mxu0 0.0
        %1263 = vmatprep.subr.mxu0 0.0
        %1264 = vmatpush1.xpose.msra.mxu0 0.0
        %1265 = vmatprep.subr.mxu0 0.0
        %1266 = vmatpush1.xpose.msra.mxu0 0.0
        %1267 = vmatprep.subr.mxu0 0.0
        %1268 = vmatpush1.xpose.msra.mxu0 0.0
        %1269 = vmatprep.subr.mxu0 0.0
        %1270 = vmatpush1.xpose.msra.mxu0 0.0
        %1271 = vmatprep.mubr.f32.mxu0 0.0
        %1272 = vmatmul.mubr.f32.gmra.mrb[0].mxu0 %v1181
        %v1273 = vpop.f32.mrb[0].mxu0
        %v1274 = vadd.f32 0.0, %v1273
        %v1275 = vpop.f32.mrb[0].mxu0
        %1276 = vdwg.mxu0
        %v1278 = vrot.slane %v697, 4
        %1280 = vxpose.xlu0.b32.start [1/16] %v1278, 128
        %1281 = vxpose.xlu0.b32.cont [2/16] 0.0, 128
        %1282 = vxpose.xlu0.b32.cont [3/16] 0.0, 128
        %1283 = vxpose.xlu0.b32.cont [4/16] 0.0, 128
        %1284 = vxpose.xlu0.b32.cont [5/16] 0.0, 128
        %1285 = vxpose.xlu0.b32.cont [6/16] 0.0, 128
        %1286 = vxpose.xlu0.b32.cont [7/16] 0.0, 128
        %1287 = vxpose.xlu0.b32.cont [8/16] 0.0, 128
        %1288 = vxpose.xlu0.b32.cont [9/16] 0.0, 128
        %1289 = vxpose.xlu0.b32.cont [10/16] 0.0, 128
        %1290 = vxpose.xlu0.b32.cont [11/16] 0.0, 128
        %1291 = vxpose.xlu0.b32.cont [12/16] 0.0, 128
        %1292 = vxpose.xlu0.b32.cont [13/16] 0.0, 128
        %1293 = vxpose.xlu0.b32.cont [14/16] 0.0, 128
        %1294 = vxpose.xlu0.b32.cont [15/16] 0.0, 128
        %1295 = vxpose.xlu0.b32.end [16/16] 0.0, 128
        %v1296 = vpop.trf.xlu0
        %v1297 = vpop.trf.xlu0
        %v1298 = vpop.trf.xlu0
        %v1299 = vpop.trf.xlu0
        %v1300 = vpop.trf.xlu0
        %v1301 = vpop.trf.xlu0
        %v1302 = vpop.trf.xlu0
        %v1303 = vpop.trf.xlu0
        %v1304 = vpop.trf.xlu0
        %v1305 = vpop.trf.xlu0
        %v1306 = vpop.trf.xlu0
        %v1307 = vpop.trf.xlu0
        %v1308 = vpop.trf.xlu0
        %v1309 = vpop.trf.xlu0
        %v1310 = vpop.trf.xlu0
        %v1311 = vpop.trf.xlu0
        %v1312 = vrot.slane %v798, 4
        %v1314 = vsel %vm949, %v1296, 0
        %v1317 = vsel %vm949, %v1297, 0
        %v1320 = vsel %vm949, %v1298, 0
        %v1323 = vsel %vm949, %v1299, 0
        %v1326 = vsel %vm949, %v1300, 0
        %v1329 = vsel %vm949, %v1301, 0
        %v1332 = vsel %vm949, %v1302, 0
        %v1335 = vsel %vm949, %v1303, 0
        %v1337 = vsel %vm974, %v1312, 0
        %1339 = vmatprep.subr.mxu0 0.0
        %1340 = vmatpush1.msra.mxu0 %v1337
        %1341 = vmatprep.subr.mxu0 0.0
        %1342 = vmatpush1.msra.mxu0 0.0
        %1343 = vmatprep.subr.mxu0 0.0
        %1344 = vmatpush1.msra.mxu0 0.0
        %1345 = vmatprep.subr.mxu0 0.0
        %1346 = vmatpush1.msra.mxu0 0.0
        %1347 = vmatprep.subr.mxu0 0.0
        %1348 = vmatpush1.msra.mxu0 0.0
        %1349 = vmatprep.subr.mxu0 0.0
        %1350 = vmatpush1.msra.mxu0 0.0
        %1351 = vmatprep.subr.mxu0 0.0
        %1352 = vmatpush1.msra.mxu0 0.0
        %1353 = vmatprep.subr.mxu0 0.0
        %1354 = vmatpush1.msra.mxu0 0.0
        %1355 = vmatprep.subr.mxu0 0.0
        %1356 = vmatpush1.msra.mxu0 0.0
        %1357 = vmatprep.subr.mxu0 0.0
        %1358 = vmatpush1.msra.mxu0 0.0
        %1359 = vmatprep.subr.mxu0 0.0
        %1360 = vmatpush1.msra.mxu0 0.0
        %1361 = vmatprep.subr.mxu0 0.0
        %1362 = vmatpush1.msra.mxu0 0.0
        %1363 = vmatprep.subr.mxu0 0.0
        %1364 = vmatpush1.msra.mxu0 0.0
        %1365 = vmatprep.subr.mxu0 0.0
        %1366 = vmatpush1.msra.mxu0 0.0
        %1367 = vmatprep.subr.mxu0 0.0
        %1368 = vmatpush1.msra.mxu0 0.0
        %1369 = vmatprep.subr.mxu0 0.0
        %1370 = vmatpush1.msra.mxu0 0.0
        %1371 = vmatprep.subr.mxu0 0.0
        %1372 = vmatpush1.msra.mxu0 0.0
        %1373 = vmatprep.subr.mxu0 0.0
        %1374 = vmatpush1.msra.mxu0 0.0
        %1375 = vmatprep.subr.mxu0 0.0
        %1376 = vmatpush1.msra.mxu0 0.0
        %1377 = vmatprep.subr.mxu0 0.0
        %1378 = vmatpush1.msra.mxu0 0.0
        %1379 = vmatprep.subr.mxu0 0.0
        %1380 = vmatpush1.msra.mxu0 0.0
        %1381 = vmatprep.subr.mxu0 0.0
        %1382 = vmatpush1.msra.mxu0 0.0
        %1383 = vmatprep.subr.mxu0 0.0
        %1384 = vmatpush1.msra.mxu0 0.0
        %1385 = vmatprep.subr.mxu0 0.0
        %1386 = vmatpush1.msra.mxu0 0.0
        %1387 = vmatprep.subr.mxu0 0.0
        %1388 = vmatpush1.msra.mxu0 0.0
        %1389 = vmatprep.subr.mxu0 0.0
        %1390 = vmatpush1.msra.mxu0 0.0
        %1391 = vmatprep.subr.mxu0 0.0
        %1392 = vmatpush1.msra.mxu0 0.0
        %1393 = vmatprep.subr.mxu0 0.0
        %1394 = vmatpush1.msra.mxu0 0.0
        %1395 = vmatprep.subr.mxu0 0.0
        %1396 = vmatpush1.msra.mxu0 0.0
        %1397 = vmatprep.subr.mxu0 0.0
        %1398 = vmatpush1.msra.mxu0 0.0
        %1399 = vmatprep.subr.mxu0 0.0
        %1400 = vmatpush1.msra.mxu0 0.0
        %1401 = vmatprep.subr.mxu0 0.0
        %1402 = vmatpush1.msra.mxu0 0.0
        %1403 = vmatprep.mubr.f32.mxu0 0.0
        %1404 = vmatmul.mubr.f32.gmra.mrb[0].mxu0 %v1314
        %v1405 = vpop.f32.mrb[0].mxu0
        %v1406 = vadd.f32 0.0, %v1405
        %v1407 = vpop.f32.mrb[0].mxu0
        %1408 = vmatprep.mubr.f32.mxu0 0.0
        %1409 = vmatmul.mubr.f32.gmra.mrb[0].mxu0 %v1317
        %v1410 = vpop.f32.mrb[0].mxu0
        %v1411 = vadd.f32 0.0, %v1410
        %v1412 = vpop.f32.mrb[0].mxu0
        %1413 = vmatprep.mubr.f32.mxu0 0.0
        %1414 = vmatmul.mubr.f32.gmra.mrb[0].mxu0 %v1320
        %v1415 = vpop.f32.mrb[0].mxu0
        %v1416 = vadd.f32 0.0, %v1415
        %v1417 = vpop.f32.mrb[0].mxu0
        %1418 = vmatprep.mubr.f32.mxu0 0.0
        %1419 = vmatmul.mubr.f32.gmra.mrb[0].mxu0 %v1323
        %v1420 = vpop.f32.mrb[0].mxu0
        %v1421 = vadd.f32 0.0, %v1420
        %v1422 = vpop.f32.mrb[0].mxu0
        %1423 = vmatprep.mubr.f32.mxu0 0.0
        %1424 = vmatmul.mubr.f32.gmra.mrb[0].mxu0 %v1326
        %v1425 = vpop.f32.mrb[0].mxu0
        %v1426 = vadd.f32 0.0, %v1425
        %v1427 = vpop.f32.mrb[0].mxu0
        %1428 = vmatprep.mubr.f32.mxu0 0.0
        %1429 = vmatmul.mubr.f32.gmra.mrb[0].mxu0 %v1329
        %v1430 = vpop.f32.mrb[0].mxu0
        %v1431 = vadd.f32 0.0, %v1430
        %v1432 = vpop.f32.mrb[0].mxu0
        %1433 = vmatprep.mubr.f32.mxu0 0.0
        %1434 = vmatmul.mubr.f32.gmra.mrb[0].mxu0 %v1332
        %v1435 = vpop.f32.mrb[0].mxu0
        %v1436 = vadd.f32 0.0, %v1435
        %v1437 = vpop.f32.mrb[0].mxu0
        %1438 = vmatprep.mubr.f32.mxu0 0.0
        %1439 = vmatmul.mubr.f32.gmra.mrb[0].mxu0 %v1335
        %v1440 = vpop.f32.mrb[0].mxu0
        %v1441 = vadd.f32 0.0, %v1440
        %v1442 = vpop.f32.mrb[0].mxu0
        %1443 = vdwg.mxu0
        %v1444 = vmul.f32 %v1406, 0.5
        %v1445 = vmul.f32 %v1411, 0.5
        %v1446 = vmul.f32 %v1416, 0.5
        %v1447 = vmul.f32 %v1421, 0.5
        %v1448 = vmul.f32 %v1426, 0.5
        %v1449 = vmul.f32 %v1431, 0.5
        %v1450 = vmul.f32 %v1436, 0.5
        %v1451 = vmul.f32 %v1441, 0.5
        %v1452 = vsel %vm1091, %v1444, -inf
        %1453 = vmax.xlane.f32.xlu0 %v1452
        %v1454 = vpop.xlane.xlu0 %1453
        %v1455 = vsel %vm1091, %v1445, -inf
        %1456 = vmax.xlane.f32.xlu0 %v1455
        %v1457 = vpop.xlane.xlu0 %1456
        %v1458 = vsel %vm1091, %v1446, -inf
        %1459 = vmax.xlane.f32.xlu0 %v1458
        %v1460 = vpop.xlane.xlu0 %1459
        %v1461 = vsel %vm1091, %v1447, -inf
        %1462 = vmax.xlane.f32.xlu0 %v1461
        %v1463 = vpop.xlane.xlu0 %1462
        %v1464 = vsel %vm1091, %v1448, -inf
        %1465 = vmax.xlane.f32.xlu0 %v1464
        %v1466 = vpop.xlane.xlu0 %1465
        %v1467 = vsel %vm1091, %v1449, -inf
        %1468 = vmax.xlane.f32.xlu0 %v1467
        %v1469 = vpop.xlane.xlu0 %1468
        %v1470 = vsel %vm1091, %v1450, -inf
        %1471 = vmax.xlane.f32.xlu0 %v1470
        %v1472 = vpop.xlane.xlu0 %1471
        %v1473 = vsel %vm1091, %v1451, -inf
        %1474 = vmax.xlane.f32.xlu0 %v1473
        %v1475 = vpop.xlane.xlu0 %1474
        %v1476 = vsub.f32 %v1444, %v1454
        %v1477 = vsub.f32 %v1445, %v1457
        %v1478 = vsub.f32 %v1446, %v1460
        %v1479 = vsub.f32 %v1447, %v1463
        %v1480 = vsub.f32 %v1448, %v1466
        %v1481 = vsub.f32 %v1449, %v1469
        %v1482 = vsub.f32 %v1450, %v1472
        %v1483 = vsub.f32 %v1451, %v1475
        %v1484 = vmul.f32 %v1476, 1.442695
        %v1485 = vpow.pop %v1484
        %v1486 = vmul.f32 %v1477, 1.442695
        %v1487 = vpow.pop %v1486
        %v1488 = vmul.f32 %v1478, 1.442695
        %v1489 = vpow.pop %v1488
        %v1490 = vmul.f32 %v1479, 1.442695
        %v1491 = vpow.pop %v1490
        %v1492 = vmul.f32 %v1480, 1.442695
        %v1493 = vpow.pop %v1492
        %v1494 = vmul.f32 %v1481, 1.442695
        %v1495 = vpow.pop %v1494
        %v1496 = vmul.f32 %v1482, 1.442695
        %v1497 = vpow.pop %v1496
        %v1498 = vmul.f32 %v1483, 1.442695
        %v1499 = vpow.pop %v1498
        %v1500 = vsel %vm1091, %v1485, 0.0
        %1501 = vadd.xlane.f32.xlu0 %v1500
        %v1502 = vpop.xlane.xlu0 %1501
        %v1503 = vsel %vm1091, %v1487, 0.0
        %1504 = vadd.xlane.f32.xlu0 %v1503
        %v1505 = vpop.xlane.xlu0 %1504
        %v1506 = vsel %vm1091, %v1489, 0.0
        %1507 = vadd.xlane.f32.xlu0 %v1506
        %v1508 = vpop.xlane.xlu0 %1507
        %v1509 = vsel %vm1091, %v1491, 0.0
        %1510 = vadd.xlane.f32.xlu0 %v1509
        %v1511 = vpop.xlane.xlu0 %1510
        %v1512 = vsel %vm1091, %v1493, 0.0
        %1513 = vadd.xlane.f32.xlu0 %v1512
        %v1514 = vpop.xlane.xlu0 %1513
        %v1515 = vsel %vm1091, %v1495, 0.0
        %1516 = vadd.xlane.f32.xlu0 %v1515
        %v1517 = vpop.xlane.xlu0 %1516
        %v1518 = vsel %vm1091, %v1497, 0.0
        %1519 = vadd.xlane.f32.xlu0 %v1518
        %v1520 = vpop.xlane.xlu0 %1519
        %v1521 = vsel %vm1091, %v1499, 0.0
        %1522 = vadd.xlane.f32.xlu0 %v1521
        %v1523 = vpop.xlane.xlu0 %1522
        %v1524 = vrcp.pop %v1502
        %v1525 = vrcp.pop %v1505
        %v1526 = vrcp.pop %v1508
        %v1527 = vrcp.pop %v1511
        %v1528 = vrcp.pop %v1514
        %v1529 = vrcp.pop %v1517
        %v1530 = vrcp.pop %v1520
        %v1531 = vrcp.pop %v1523
        %v1532 = vmul.f32 %v1485, %v1524
        %v1533 = vmul.f32 %v1487, %v1525
        %v1534 = vmul.f32 %v1489, %v1526
        %v1535 = vmul.f32 %v1491, %v1527
        %v1536 = vmul.f32 %v1493, %v1528
        %v1537 = vmul.f32 %v1495, %v1529
        %v1538 = vmul.f32 %v1497, %v1530
        %v1539 = vmul.f32 %v1499, %v1531
        %v1540 = vrot.slane %v899, 4
        %v1541 = vsel %vm1091, %v1540, 0
        %v1544 = vsel %vm1091, %v1532, 0
        %v1547 = vsel %vm1091, %v1533, 0
        %v1550 = vsel %vm1091, %v1534, 0
        %v1553 = vsel %vm1091, %v1535, 0
        %v1556 = vsel %vm1091, %v1536, 0
        %v1559 = vsel %vm1091, %v1537, 0
        %v1562 = vsel %vm1091, %v1538, 0
        %v1565 = vsel %vm1091, %v1539, 0
        %1567 = vmatprep.subr.mxu0 0.0
        %1568 = vmatpush1.xpose.msra.mxu0 %v1544
        %1569 = vmatprep.subr.mxu0 0.0
        %1570 = vmatpush1.xpose.msra.mxu0 %v1547
        %1571 = vmatprep.subr.mxu0 0.0
        %1572 = vmatpush1.xpose.msra.mxu0 %v1550
        %1573 = vmatprep.subr.mxu0 0.0
        %1574 = vmatpush1.xpose.msra.mxu0 %v1553
        %1575 = vmatprep.subr.mxu0 0.0
        %1576 = vmatpush1.xpose.msra.mxu0 %v1556
        %1577 = vmatprep.subr.mxu0 0.0
        %1578 = vmatpush1.xpose.msra.mxu0 %v1559
        %1579 = vmatprep.subr.mxu0 0.0
        %1580 = vmatpush1.xpose.msra.mxu0 %v1562
        %1581 = vmatprep.subr.mxu0 0.0
        %1582 = vmatpush1.xpose.msra.mxu0 %v1565
        %1583 = vmatprep.subr.mxu0 0.0
        %1584 = vmatpush1.xpose.msra.mxu0 0.0
        %1585 = vmatprep.subr.mxu0 0.0
        %1586 = vmatpush1.xpose.msra.mxu0 0.0
        %1587 = vmatprep.subr.mxu0 0.0
        %1588 = vmatpush1.xpose.msra.mxu0 0.0
        %1589 = vmatprep.subr.mxu0 0.0
        %1590 = vmatpush1.xpose.msra.mxu0 0.0
        %1591 = vmatprep.subr.mxu0 0.0
        %1592 = vmatpush1.xpose.msra.mxu0 0.0
        %1593 = vmatprep.subr.mxu0 0.0
        %1594 = vmatpush1.xpose.msra.mxu0 0.0
        %1595 = vmatprep.subr.mxu0 0.0
        %1596 = vmatpush1.xpose.msra.mxu0 0.0
        %1597 = vmatprep.subr.mxu0 0.0
        %1598 = vmatpush1.xpose.msra.mxu0 0.0
        %1599 = vmatprep.subr.mxu0 0.0
        %1600 = vmatpush1.xpose.msra.mxu0 0.0
        %1601 = vmatprep.subr.mxu0 0.0
        %1602 = vmatpush1.xpose.msra.mxu0 0.0
        %1603 = vmatprep.subr.mxu0 0.0
        %1604 = vmatpush1.xpose.msra.mxu0 0.0
        %1605 = vmatprep.subr.mxu0 0.0
        %1606 = vmatpush1.xpose.msra.mxu0 0.0
        %1607 = vmatprep.subr.mxu0 0.0
        %1608 = vmatpush1.xpose.msra.mxu0 0.0
        %1609 = vmatprep.subr.mxu0 0.0
        %1610 = vmatpush1.xpose.msra.mxu0 0.0
        %1611 = vmatprep.subr.mxu0 0.0
        %1612 = vmatpush1.xpose.msra.mxu0 0.0
        %1613 = vmatprep.subr.mxu0 0.0
        %1614 = vmatpush1.xpose.msra.mxu0 0.0
        %1615 = vmatprep.subr.mxu0 0.0
        %1616 = vmatpush1.xpose.msra.mxu0 0.0
        %1617 = vmatprep.subr.mxu0 0.0
        %1618 = vmatpush1.xpose.msra.mxu0 0.0
        %1619 = vmatprep.subr.mxu0 0.0
        %1620 = vmatpush1.xpose.msra.mxu0 0.0
        %1621 = vmatprep.subr.mxu0 0.0
        %1622 = vmatpush1.xpose.msra.mxu0 0.0
        %1623 = vmatprep.subr.mxu0 0.0
        %1624 = vmatpush1.xpose.msra.mxu0 0.0
        %1625 = vmatprep.subr.mxu0 0.0
        %1626 = vmatpush1.xpose.msra.mxu0 0.0
        %1627 = vmatprep.subr.mxu0 0.0
        %1628 = vmatpush1.xpose.msra.mxu0 0.0
        %1629 = vmatprep.subr.mxu0 0.0
        %1630 = vmatpush1.xpose.msra.mxu0 0.0
        %1631 = vmatprep.mubr.f32.mxu0 0.0
        %1632 = vmatmul.mubr.f32.gmra.mrb[0].mxu0 %v1541
        %v1633 = vpop.f32.mrb[0].mxu0
        %v1634 = vadd.f32 0.0, %v1633
        %v1635 = vpop.f32.mrb[0].mxu0
        %1636 = vdwg.mxu0
        %1637 = vxpose.xlu0.b32.start [1/16] %v702, 128
        %1638 = vxpose.xlu0.b32.cont [2/16] 0.0, 128
        %1639 = vxpose.xlu0.b32.cont [3/16] 0.0, 128
        %1640 = vxpose.xlu0.b32.cont [4/16] 0.0, 128
        %1641 = vxpose.xlu0.b32.cont [5/16] 0.0, 128
        %1642 = vxpose.xlu0.b32.cont [6/16] 0.0, 128
        %1643 = vxpose.xlu0.b32.cont [7/16] 0.0, 128
        %1644 = vxpose.xlu0.b32.cont [8/16] 0.0, 128
        %1645 = vxpose.xlu0.b32.cont [9/16] 0.0, 128
        %1646 = vxpose.xlu0.b32.cont [10/16] 0.0, 128
        %1647 = vxpose.xlu0.b32.cont [11/16] 0.0, 128
        %1648 = vxpose.xlu0.b32.cont [12/16] 0.0, 128
        %1649 = vxpose.xlu0.b32.cont [13/16] 0.0, 128
        %1650 = vxpose.xlu0.b32.cont [14/16] 0.0, 128
        %1651 = vxpose.xlu0.b32.cont [15/16] 0.0, 128
        %1652 = vxpose.xlu0.b32.end [16/16] 0.0, 128
        %v1653 = vpop.trf.xlu0
        %v1654 = vpop.trf.xlu0
        %v1655 = vpop.trf.xlu0
        %v1656 = vpop.trf.xlu0
        %v1657 = vpop.trf.xlu0
        %v1658 = vpop.trf.xlu0
        %v1659 = vpop.trf.xlu0
        %v1660 = vpop.trf.xlu0
        %v1661 = vpop.trf.xlu0
        %v1662 = vpop.trf.xlu0
        %v1663 = vpop.trf.xlu0
        %v1664 = vpop.trf.xlu0
        %v1665 = vpop.trf.xlu0
        %v1666 = vpop.trf.xlu0
        %v1667 = vpop.trf.xlu0
        %v1668 = vpop.trf.xlu0
        %v1670 = vsel %vm949, %v1653, 0
        %v1673 = vsel %vm949, %v1654, 0
        %v1676 = vsel %vm949, %v1655, 0
        %v1679 = vsel %vm949, %v1656, 0
        %v1682 = vsel %vm949, %v1657, 0
        %v1685 = vsel %vm949, %v1658, 0
        %v1688 = vsel %vm949, %v1659, 0
        %v1691 = vsel %vm949, %v1660, 0
        %v1694 = vsel %vm974, %v803, 0
        %1696 = vmatprep.subr.mxu0 0.0
        %1697 = vmatpush1.msra.mxu0 %v1694
        %1698 = vmatprep.subr.mxu0 0.0
        %1699 = vmatpush1.msra.mxu0 0.0
        %1700 = vmatprep.subr.mxu0 0.0
        %1701 = vmatpush1.msra.mxu0 0.0
        %1702 = vmatprep.subr.mxu0 0.0
        %1703 = vmatpush1.msra.mxu0 0.0
        %1704 = vmatprep.subr.mxu0 0.0
        %1705 = vmatpush1.msra.mxu0 0.0
        %1706 = vmatprep.subr.mxu0 0.0
        %1707 = vmatpush1.msra.mxu0 0.0
        %1708 = vmatprep.subr.mxu0 0.0
        %1709 = vmatpush1.msra.mxu0 0.0
        %1710 = vmatprep.subr.mxu0 0.0
        %1711 = vmatpush1.msra.mxu0 0.0
        %1712 = vmatprep.subr.mxu0 0.0
        %1713 = vmatpush1.msra.mxu0 0.0
        %1714 = vmatprep.subr.mxu0 0.0
        %1715 = vmatpush1.msra.mxu0 0.0
        %1716 = vmatprep.subr.mxu0 0.0
        %1717 = vmatpush1.msra.mxu0 0.0
        %1718 = vmatprep.subr.mxu0 0.0
        %1719 = vmatpush1.msra.mxu0 0.0
        %1720 = vmatprep.subr.mxu0 0.0
        %1721 = vmatpush1.msra.mxu0 0.0
        %1722 = vmatprep.subr.mxu0 0.0
        %1723 = vmatpush1.msra.mxu0 0.0
        %1724 = vmatprep.subr.mxu0 0.0
        %1725 = vmatpush1.msra.mxu0 0.0
        %1726 = vmatprep.subr.mxu0 0.0
        %1727 = vmatpush1.msra.mxu0 0.0
        %1728 = vmatprep.subr.mxu0 0.0
        %1729 = vmatpush1.msra.mxu0 0.0
        %1730 = vmatprep.subr.mxu0 0.0
        %1731 = vmatpush1.msra.mxu0 0.0
        %1732 = vmatprep.subr.mxu0 0.0
        %1733 = vmatpush1.msra.mxu0 0.0
        %1734 = vmatprep.subr.mxu0 0.0
        %1735 = vmatpush1.msra.mxu0 0.0
        %1736 = vmatprep.subr.mxu0 0.0
        %1737 = vmatpush1.msra.mxu0 0.0
        %1738 = vmatprep.subr.mxu0 0.0
        %1739 = vmatpush1.msra.mxu0 0.0
        %1740 = vmatprep.subr.mxu0 0.0
        %1741 = vmatpush1.msra.mxu0 0.0
        %1742 = vmatprep.subr.mxu0 0.0
        %1743 = vmatpush1.msra.mxu0 0.0
        %1744 = vmatprep.subr.mxu0 0.0
        %1745 = vmatpush1.msra.mxu0 0.0
        %1746 = vmatprep.subr.mxu0 0.0
        %1747 = vmatpush1.msra.mxu0 0.0
        %1748 = vmatprep.subr.mxu0 0.0
        %1749 = vmatpush1.msra.mxu0 0.0
        %1750 = vmatprep.subr.mxu0 0.0
        %1751 = vmatpush1.msra.mxu0 0.0
        %1752 = vmatprep.subr.mxu0 0.0
        %1753 = vmatpush1.msra.mxu0 0.0
        %1754 = vmatprep.subr.mxu0 0.0
        %1755 = vmatpush1.msra.mxu0 0.0
        %1756 = vmatprep.subr.mxu0 0.0
        %1757 = vmatpush1.msra.mxu0 0.0
        %1758 = vmatprep.subr.mxu0 0.0
        %1759 = vmatpush1.msra.mxu0 0.0
        %1760 = vmatprep.mubr.f32.mxu0 0.0
        %1761 = vmatmul.mubr.f32.gmra.mrb[0].mxu0 %v1670
        %v1762 = vpop.f32.mrb[0].mxu0
        %v1763 = vadd.f32 0.0, %v1762
        %v1764 = vpop.f32.mrb[0].mxu0
        %1765 = vmatprep.mubr.f32.mxu0 0.0
        %1766 = vmatmul.mubr.f32.gmra.mrb[0].mxu0 %v1673
        %v1767 = vpop.f32.mrb[0].mxu0
        %v1768 = vadd.f32 0.0, %v1767
        %v1769 = vpop.f32.mrb[0].mxu0
        %1770 = vmatprep.mubr.f32.mxu0 0.0
        %1771 = vmatmul.mubr.f32.gmra.mrb[0].mxu0 %v1676
        %v1772 = vpop.f32.mrb[0].mxu0
        %v1773 = vadd.f32 0.0, %v1772
        %v1774 = vpop.f32.mrb[0].mxu0
        %1775 = vmatprep.mubr.f32.mxu0 0.0
        %1776 = vmatmul.mubr.f32.gmra.mrb[0].mxu0 %v1679
        %v1777 = vpop.f32.mrb[0].mxu0
        %v1778 = vadd.f32 0.0, %v1777
        %v1779 = vpop.f32.mrb[0].mxu0
        %1780 = vmatprep.mubr.f32.mxu0 0.0
        %1781 = vmatmul.mubr.f32.gmra.mrb[0].mxu0 %v1682
        %v1782 = vpop.f32.mrb[0].mxu0
        %v1783 = vadd.f32 0.0, %v1782
        %v1784 = vpop.f32.mrb[0].mxu0
        %1785 = vmatprep.mubr.f32.mxu0 0.0
        %1786 = vmatmul.mubr.f32.gmra.mrb[0].mxu0 %v1685
        %v1787 = vpop.f32.mrb[0].mxu0
        %v1788 = vadd.f32 0.0, %v1787
        %v1789 = vpop.f32.mrb[0].mxu0
        %1790 = vmatprep.mubr.f32.mxu0 0.0
        %1791 = vmatmul.mubr.f32.gmra.mrb[0].mxu0 %v1688
        %v1792 = vpop.f32.mrb[0].mxu0
        %v1793 = vadd.f32 0.0, %v1792
        %v1794 = vpop.f32.mrb[0].mxu0
        %1795 = vmatprep.mubr.f32.mxu0 0.0
        %1796 = vmatmul.mubr.f32.gmra.mrb[0].mxu0 %v1691
        %v1797 = vpop.f32.mrb[0].mxu0
        %v1798 = vadd.f32 0.0, %v1797
        %v1799 = vpop.f32.mrb[0].mxu0
        %1800 = vdwg.mxu0
        %v1801 = vmul.f32 %v1763, 0.5
        %v1802 = vmul.f32 %v1768, 0.5
        %v1803 = vmul.f32 %v1773, 0.5
        %v1804 = vmul.f32 %v1778, 0.5
        %v1805 = vmul.f32 %v1783, 0.5
        %v1806 = vmul.f32 %v1788, 0.5
        %v1807 = vmul.f32 %v1793, 0.5
        %v1808 = vmul.f32 %v1798, 0.5
        %v1809 = vsel %vm1091, %v1801, -inf
        %1810 = vmax.xlane.f32.xlu0 %v1809
        %v1811 = vpop.xlane.xlu0 %1810
        %v1812 = vsel %vm1091, %v1802, -inf
        %1813 = vmax.xlane.f32.xlu0 %v1812
        %v1814 = vpop.xlane.xlu0 %1813
        %v1815 = vsel %vm1091, %v1803, -inf
        %1816 = vmax.xlane.f32.xlu0 %v1815
        %v1817 = vpop.xlane.xlu0 %1816
        %v1818 = vsel %vm1091, %v1804, -inf
        %1819 = vmax.xlane.f32.xlu0 %v1818
        %v1820 = vpop.xlane.xlu0 %1819
        %v1821 = vsel %vm1091, %v1805, -inf
        %1822 = vmax.xlane.f32.xlu0 %v1821
        %v1823 = vpop.xlane.xlu0 %1822
        %v1824 = vsel %vm1091, %v1806, -inf
        %1825 = vmax.xlane.f32.xlu0 %v1824
        %v1826 = vpop.xlane.xlu0 %1825
        %v1827 = vsel %vm1091, %v1807, -inf
        %1828 = vmax.xlane.f32.xlu0 %v1827
        %v1829 = vpop.xlane.xlu0 %1828
        %v1830 = vsel %vm1091, %v1808, -inf
        %1831 = vmax.xlane.f32.xlu0 %v1830
        %v1832 = vpop.xlane.xlu0 %1831
        %v1833 = vsub.f32 %v1801, %v1811
        %v1834 = vsub.f32 %v1802, %v1814
        %v1835 = vsub.f32 %v1803, %v1817
        %v1836 = vsub.f32 %v1804, %v1820
        %v1837 = vsub.f32 %v1805, %v1823
        %v1838 = vsub.f32 %v1806, %v1826
        %v1839 = vsub.f32 %v1807, %v1829
        %v1840 = vsub.f32 %v1808, %v1832
        %v1841 = vmul.f32 %v1833, 1.442695
        %v1842 = vpow.pop %v1841
        %v1843 = vmul.f32 %v1834, 1.442695
        %v1844 = vpow.pop %v1843
        %v1845 = vmul.f32 %v1835, 1.442695
        %v1846 = vpow.pop %v1845
        %v1847 = vmul.f32 %v1836, 1.442695
        %v1848 = vpow.pop %v1847
        %v1849 = vmul.f32 %v1837, 1.442695
        %v1850 = vpow.pop %v1849
        %v1851 = vmul.f32 %v1838, 1.442695
        %v1852 = vpow.pop %v1851
        %v1853 = vmul.f32 %v1839, 1.442695
        %v1854 = vpow.pop %v1853
        %v1855 = vmul.f32 %v1840, 1.442695
        %v1856 = vpow.pop %v1855
        %v1857 = vsel %vm1091, %v1842, 0.0
        %1858 = vadd.xlane.f32.xlu0 %v1857
        %v1859 = vpop.xlane.xlu0 %1858
        %v1860 = vsel %vm1091, %v1844, 0.0
        %1861 = vadd.xlane.f32.xlu0 %v1860
        %v1862 = vpop.xlane.xlu0 %1861
        %v1863 = vsel %vm1091, %v1846, 0.0
        %1864 = vadd.xlane.f32.xlu0 %v1863
        %v1865 = vpop.xlane.xlu0 %1864
        %v1866 = vsel %vm1091, %v1848, 0.0
        %1867 = vadd.xlane.f32.xlu0 %v1866
        %v1868 = vpop.xlane.xlu0 %1867
        %v1869 = vsel %vm1091, %v1850, 0.0
        %1870 = vadd.xlane.f32.xlu0 %v1869
        %v1871 = vpop.xlane.xlu0 %1870
        %v1872 = vsel %vm1091, %v1852, 0.0
        %1873 = vadd.xlane.f32.xlu0 %v1872
        %v1874 = vpop.xlane.xlu0 %1873
        %v1875 = vsel %vm1091, %v1854, 0.0
        %1876 = vadd.xlane.f32.xlu0 %v1875
        %v1877 = vpop.xlane.xlu0 %1876
        %v1878 = vsel %vm1091, %v1856, 0.0
        %1879 = vadd.xlane.f32.xlu0 %v1878
        %v1880 = vpop.xlane.xlu0 %1879
        %v1881 = vrcp.pop %v1859
        %v1882 = vrcp.pop %v1862
        %v1883 = vrcp.pop %v1865
        %v1884 = vrcp.pop %v1868
        %v1885 = vrcp.pop %v1871
        %v1886 = vrcp.pop %v1874
        %v1887 = vrcp.pop %v1877
        %v1888 = vrcp.pop %v1880
        %v1889 = vmul.f32 %v1842, %v1881
        %v1890 = vmul.f32 %v1844, %v1882
        %v1891 = vmul.f32 %v1846, %v1883
        %v1892 = vmul.f32 %v1848, %v1884
        %v1893 = vmul.f32 %v1850, %v1885
        %v1894 = vmul.f32 %v1852, %v1886
        %v1895 = vmul.f32 %v1854, %v1887
        %v1896 = vmul.f32 %v1856, %v1888
        %v1898 = vsel %vm1091, %v904, 0
        %v1901 = vsel %vm1091, %v1889, 0
        %v1904 = vsel %vm1091, %v1890, 0
        %v1907 = vsel %vm1091, %v1891, 0
        %v1910 = vsel %vm1091, %v1892, 0
        %v1913 = vsel %vm1091, %v1893, 0
        %v1916 = vsel %vm1091, %v1894, 0
        %v1919 = vsel %vm1091, %v1895, 0
        %v1922 = vsel %vm1091, %v1896, 0
        %1924 = vmatprep.subr.mxu0 0.0
        %1925 = vmatpush1.xpose.msra.mxu0 %v1901
        %1926 = vmatprep.subr.mxu0 0.0
        %1927 = vmatpush1.xpose.msra.mxu0 %v1904
        %1928 = vmatprep.subr.mxu0 0.0
        %1929 = vmatpush1.xpose.msra.mxu0 %v1907
        %1930 = vmatprep.subr.mxu0 0.0
        %1931 = vmatpush1.xpose.msra.mxu0 %v1910
        %1932 = vmatprep.subr.mxu0 0.0
        %1933 = vmatpush1.xpose.msra.mxu0 %v1913
        %1934 = vmatprep.subr.mxu0 0.0
        %1935 = vmatpush1.xpose.msra.mxu0 %v1916
        %1936 = vmatprep.subr.mxu0 0.0
        %1937 = vmatpush1.xpose.msra.mxu0 %v1919
        %1938 = vmatprep.subr.mxu0 0.0
        %1939 = vmatpush1.xpose.msra.mxu0 %v1922
        %1940 = vmatprep.subr.mxu0 0.0
        %1941 = vmatpush1.xpose.msra.mxu0 0.0
        %1942 = vmatprep.subr.mxu0 0.0
        %1943 = vmatpush1.xpose.msra.mxu0 0.0
        %1944 = vmatprep.subr.mxu0 0.0
        %1945 = vmatpush1.xpose.msra.mxu0 0.0
        %1946 = vmatprep.subr.mxu0 0.0
        %1947 = vmatpush1.xpose.msra.mxu0 0.0
        %1948 = vmatprep.subr.mxu0 0.0
        %1949 = vmatpush1.xpose.msra.mxu0 0.0
        %1950 = vmatprep.subr.mxu0 0.0
        %1951 = vmatpush1.xpose.msra.mxu0 0.0
        %1952 = vmatprep.subr.mxu0 0.0
        %1953 = vmatpush1.xpose.msra.mxu0 0.0
        %1954 = vmatprep.subr.mxu0 0.0
        %1955 = vmatpush1.xpose.msra.mxu0 0.0
        %1956 = vmatprep.subr.mxu0 0.0
        %1957 = vmatpush1.xpose.msra.mxu0 0.0
        %1958 = vmatprep.subr.mxu0 0.0
        %1959 = vmatpush1.xpose.msra.mxu0 0.0
        %1960 = vmatprep.subr.mxu0 0.0
        %1961 = vmatpush1.xpose.msra.mxu0 0.0
        %1962 = vmatprep.subr.mxu0 0.0
        %1963 = vmatpush1.xpose.msra.mxu0 0.0
        %1964 = vmatprep.subr.mxu0 0.0
        %1965 = vmatpush1.xpose.msra.mxu0 0.0
        %1966 = vmatprep.subr.mxu0 0.0
        %1967 = vmatpush1.xpose.msra.mxu0 0.0
        %1968 = vmatprep.subr.mxu0 0.0
        %1969 = vmatpush1.xpose.msra.mxu0 0.0
        %1970 = vmatprep.subr.mxu0 0.0
        %1971 = vmatpush1.xpose.msra.mxu0 0.0
        %1972 = vmatprep.subr.mxu0 0.0
        %1973 = vmatpush1.xpose.msra.mxu0 0.0
        %1974 = vmatprep.subr.mxu0 0.0
        %1975 = vmatpush1.xpose.msra.mxu0 0.0
        %1976 = vmatprep.subr.mxu0 0.0
        %1977 = vmatpush1.xpose.msra.mxu0 0.0
        %1978 = vmatprep.subr.mxu0 0.0
        %1979 = vmatpush1.xpose.msra.mxu0 0.0
        %1980 = vmatprep.subr.mxu0 0.0
        %1981 = vmatpush1.xpose.msra.mxu0 0.0
        %1982 = vmatprep.subr.mxu0 0.0
        %1983 = vmatpush1.xpose.msra.mxu0 0.0
        %1984 = vmatprep.subr.mxu0 0.0
        %1985 = vmatpush1.xpose.msra.mxu0 0.0
        %1986 = vmatprep.subr.mxu0 0.0
        %1987 = vmatpush1.xpose.msra.mxu0 0.0
        %1988 = vmatprep.mubr.f32.mxu0 0.0
        %1989 = vmatmul.mubr.f32.gmra.mrb[0].mxu0 %v1898
        %v1990 = vpop.f32.mrb[0].mxu0
        %v1991 = vadd.f32 0.0, %v1990
        %v1992 = vpop.f32.mrb[0].mxu0
        %1993 = vdwg.mxu0
        %v1995 = vrot.slane %v702, 4
        %1997 = vxpose.xlu0.b32.start [1/16] %v1995, 128
        %1998 = vxpose.xlu0.b32.cont [2/16] 0.0, 128
        %1999 = vxpose.xlu0.b32.cont [3/16] 0.0, 128
        %2000 = vxpose.xlu0.b32.cont [4/16] 0.0, 128
        %2001 = vxpose.xlu0.b32.cont [5/16] 0.0, 128
        %2002 = vxpose.xlu0.b32.cont [6/16] 0.0, 128
        %2003 = vxpose.xlu0.b32.cont [7/16] 0.0, 128
        %2004 = vxpose.xlu0.b32.cont [8/16] 0.0, 128
        %2005 = vxpose.xlu0.b32.cont [9/16] 0.0, 128
        %2006 = vxpose.xlu0.b32.cont [10/16] 0.0, 128
        %2007 = vxpose.xlu0.b32.cont [11/16] 0.0, 128
        %2008 = vxpose.xlu0.b32.cont [12/16] 0.0, 128
        %2009 = vxpose.xlu0.b32.cont [13/16] 0.0, 128
        %2010 = vxpose.xlu0.b32.cont [14/16] 0.0, 128
        %2011 = vxpose.xlu0.b32.cont [15/16] 0.0, 128
        %2012 = vxpose.xlu0.b32.end [16/16] 0.0, 128
        %v2013 = vpop.trf.xlu0
        %v2014 = vpop.trf.xlu0
        %v2015 = vpop.trf.xlu0
        %v2016 = vpop.trf.xlu0
        %v2017 = vpop.trf.xlu0
        %v2018 = vpop.trf.xlu0
        %v2019 = vpop.trf.xlu0
        %v2020 = vpop.trf.xlu0
        %v2021 = vpop.trf.xlu0
        %v2022 = vpop.trf.xlu0
        %v2023 = vpop.trf.xlu0
        %v2024 = vpop.trf.xlu0
        %v2025 = vpop.trf.xlu0
        %v2026 = vpop.trf.xlu0
        %v2027 = vpop.trf.xlu0
        %v2028 = vpop.trf.xlu0
        %v2029 = vrot.slane %v803, 4
        %v2031 = vsel %vm949, %v2013, 0
        %v2034 = vsel %vm949, %v2014, 0
        %v2037 = vsel %vm949, %v2015, 0
        %v2040 = vsel %vm949, %v2016, 0
        %v2043 = vsel %vm949, %v2017, 0
        %v2046 = vsel %vm949, %v2018, 0
        %v2049 = vsel %vm949, %v2019, 0
        %v2052 = vsel %vm949, %v2020, 0
        %v2054 = vsel %vm974, %v2029, 0
        %2056 = vmatprep.subr.mxu0 0.0
        %2057 = vmatpush1.msra.mxu0 %v2054
        %2058 = vmatprep.subr.mxu0 0.0
        %2059 = vmatpush1.msra.mxu0 0.0
        %2060 = vmatprep.subr.mxu0 0.0
        %2061 = vmatpush1.msra.mxu0 0.0
        %2062 = vmatprep.subr.mxu0 0.0
        %2063 = vmatpush1.msra.mxu0 0.0
        %2064 = vmatprep.subr.mxu0 0.0
        %2065 = vmatpush1.msra.mxu0 0.0
        %2066 = vmatprep.subr.mxu0 0.0
        %2067 = vmatpush1.msra.mxu0 0.0
        %2068 = vmatprep.subr.mxu0 0.0
        %2069 = vmatpush1.msra.mxu0 0.0
        %2070 = vmatprep.subr.mxu0 0.0
        %2071 = vmatpush1.msra.mxu0 0.0
        %2072 = vmatprep.subr.mxu0 0.0
        %2073 = vmatpush1.msra.mxu0 0.0
        %2074 = vmatprep.subr.mxu0 0.0
        %2075 = vmatpush1.msra.mxu0 0.0
        %2076 = vmatprep.subr.mxu0 0.0
        %2077 = vmatpush1.msra.mxu0 0.0
        %2078 = vmatprep.subr.mxu0 0.0
        %2079 = vmatpush1.msra.mxu0 0.0
        %2080 = vmatprep.subr.mxu0 0.0
        %2081 = vmatpush1.msra.mxu0 0.0
        %2082 = vmatprep.subr.mxu0 0.0
        %2083 = vmatpush1.msra.mxu0 0.0
        %2084 = vmatprep.subr.mxu0 0.0
        %2085 = vmatpush1.msra.mxu0 0.0
        %2086 = vmatprep.subr.mxu0 0.0
        %2087 = vmatpush1.msra.mxu0 0.0
        %2088 = vmatprep.subr.mxu0 0.0
        %2089 = vmatpush1.msra.mxu0 0.0
        %2090 = vmatprep.subr.mxu0 0.0
        %2091 = vmatpush1.msra.mxu0 0.0
        %2092 = vmatprep.subr.mxu0 0.0
        %2093 = vmatpush1.msra.mxu0 0.0
        %2094 = vmatprep.subr.mxu0 0.0
        %2095 = vmatpush1.msra.mxu0 0.0
        %2096 = vmatprep.subr.mxu0 0.0
        %2097 = vmatpush1.msra.mxu0 0.0
        %2098 = vmatprep.subr.mxu0 0.0
        %2099 = vmatpush1.msra.mxu0 0.0
        %2100 = vmatprep.subr.mxu0 0.0
        %2101 = vmatpush1.msra.mxu0 0.0
        %2102 = vmatprep.subr.mxu0 0.0
        %2103 = vmatpush1.msra.mxu0 0.0
        %2104 = vmatprep.subr.mxu0 0.0
        %2105 = vmatpush1.msra.mxu0 0.0
        %2106 = vmatprep.subr.mxu0 0.0
        %2107 = vmatpush1.msra.mxu0 0.0
        %2108 = vmatprep.subr.mxu0 0.0
        %2109 = vmatpush1.msra.mxu0 0.0
        %2110 = vmatprep.subr.mxu0 0.0
        %2111 = vmatpush1.msra.mxu0 0.0
        %2112 = vmatprep.subr.mxu0 0.0
        %2113 = vmatpush1.msra.mxu0 0.0
        %2114 = vmatprep.subr.mxu0 0.0
        %2115 = vmatpush1.msra.mxu0 0.0
        %2116 = vmatprep.subr.mxu0 0.0
        %2117 = vmatpush1.msra.mxu0 0.0
        %2118 = vmatprep.subr.mxu0 0.0
        %2119 = vmatpush1.msra.mxu0 0.0
        %2120 = vmatprep.mubr.f32.mxu0 0.0
        %2121 = vmatmul.mubr.f32.gmra.mrb[0].mxu0 %v2031
        %v2122 = vpop.f32.mrb[0].mxu0
        %v2123 = vadd.f32 0.0, %v2122
        %v2124 = vpop.f32.mrb[0].mxu0
        %2125 = vmatprep.mubr.f32.mxu0 0.0
        %2126 = vmatmul.mubr.f32.gmra.mrb[0].mxu0 %v2034
        %v2127 = vpop.f32.mrb[0].mxu0
        %v2128 = vadd.f32 0.0, %v2127
        %v2129 = vpop.f32.mrb[0].mxu0
        %2130 = vmatprep.mubr.f32.mxu0 0.0
        %2131 = vmatmul.mubr.f32.gmra.mrb[0].mxu0 %v2037
        %v2132 = vpop.f32.mrb[0].mxu0
        %v2133 = vadd.f32 0.0, %v2132
        %v2134 = vpop.f32.mrb[0].mxu0
        %2135 = vmatprep.mubr.f32.mxu0 0.0
        %2136 = vmatmul.mubr.f32.gmra.mrb[0].mxu0 %v2040
        %v2137 = vpop.f32.mrb[0].mxu0
        %v2138 = vadd.f32 0.0, %v2137
        %v2139 = vpop.f32.mrb[0].mxu0
        %2140 = vmatprep.mubr.f32.mxu0 0.0
        %2141 = vmatmul.mubr.f32.gmra.mrb[0].mxu0 %v2043
        %v2142 = vpop.f32.mrb[0].mxu0
        %v2143 = vadd.f32 0.0, %v2142
        %v2144 = vpop.f32.mrb[0].mxu0
        %2145 = vmatprep.mubr.f32.mxu0 0.0
        %2146 = vmatmul.mubr.f32.gmra.mrb[0].mxu0 %v2046
        %v2147 = vpop.f32.mrb[0].mxu0
        %v2148 = vadd.f32 0.0, %v2147
        %v2149 = vpop.f32.mrb[0].mxu0
        %2150 = vmatprep.mubr.f32.mxu0 0.0
        %2151 = vmatmul.mubr.f32.gmra.mrb[0].mxu0 %v2049
        %v2152 = vpop.f32.mrb[0].mxu0
        %v2153 = vadd.f32 0.0, %v2152
        %v2154 = vpop.f32.mrb[0].mxu0
        %2155 = vmatprep.mubr.f32.mxu0 0.0
        %2156 = vmatmul.mubr.f32.gmra.mrb[0].mxu0 %v2052
        %v2157 = vpop.f32.mrb[0].mxu0
        %v2158 = vadd.f32 0.0, %v2157
        %v2159 = vpop.f32.mrb[0].mxu0
        %2160 = vdwg.mxu0
        %v2161 = vmul.f32 %v2123, 0.5
        %v2162 = vmul.f32 %v2128, 0.5
        %v2163 = vmul.f32 %v2133, 0.5
        %v2164 = vmul.f32 %v2138, 0.5
        %v2165 = vmul.f32 %v2143, 0.5
        %v2166 = vmul.f32 %v2148, 0.5
        %v2167 = vmul.f32 %v2153, 0.5
        %v2168 = vmul.f32 %v2158, 0.5
        %v2169 = vsel %vm1091, %v2161, -inf
        %2170 = vmax.xlane.f32.xlu0 %v2169
        %v2171 = vpop.xlane.xlu0 %2170
        %v2172 = vsel %vm1091, %v2162, -inf
        %2173 = vmax.xlane.f32.xlu0 %v2172
        %v2174 = vpop.xlane.xlu0 %2173
        %v2175 = vsel %vm1091, %v2163, -inf
        %2176 = vmax.xlane.f32.xlu0 %v2175
        %v2177 = vpop.xlane.xlu0 %2176
        %v2178 = vsel %vm1091, %v2164, -inf
        %2179 = vmax.xlane.f32.xlu0 %v2178
        %v2180 = vpop.xlane.xlu0 %2179
        %v2181 = vsel %vm1091, %v2165, -inf
        %2182 = vmax.xlane.f32.xlu0 %v2181
        %v2183 = vpop.xlane.xlu0 %2182
        %v2184 = vsel %vm1091, %v2166, -inf
        %2185 = vmax.xlane.f32.xlu0 %v2184
        %v2186 = vpop.xlane.xlu0 %2185
        %v2187 = vsel %vm1091, %v2167, -inf
        %2188 = vmax.xlane.f32.xlu0 %v2187
        %v2189 = vpop.xlane.xlu0 %2188
        %v2190 = vsel %vm1091, %v2168, -inf
        %2191 = vmax.xlane.f32.xlu0 %v2190
        %v2192 = vpop.xlane.xlu0 %2191
        %v2193 = vsub.f32 %v2161, %v2171
        %v2194 = vsub.f32 %v2162, %v2174
        %v2195 = vsub.f32 %v2163, %v2177
        %v2196 = vsub.f32 %v2164, %v2180
        %v2197 = vsub.f32 %v2165, %v2183
        %v2198 = vsub.f32 %v2166, %v2186
        %v2199 = vsub.f32 %v2167, %v2189
        %v2200 = vsub.f32 %v2168, %v2192
        %v2201 = vmul.f32 %v2193, 1.442695
        %v2202 = vpow.pop %v2201
        %v2203 = vmul.f32 %v2194, 1.442695
        %v2204 = vpow.pop %v2203
        %v2205 = vmul.f32 %v2195, 1.442695
        %v2206 = vpow.pop %v2205
        %v2207 = vmul.f32 %v2196, 1.442695
        %v2208 = vpow.pop %v2207
        %v2209 = vmul.f32 %v2197, 1.442695
        %v2210 = vpow.pop %v2209
        %v2211 = vmul.f32 %v2198, 1.442695
        %v2212 = vpow.pop %v2211
        %v2213 = vmul.f32 %v2199, 1.442695
        %v2214 = vpow.pop %v2213
        %v2215 = vmul.f32 %v2200, 1.442695
        %v2216 = vpow.pop %v2215
        %v2217 = vsel %vm1091, %v2202, 0.0
        %2218 = vadd.xlane.f32.xlu0 %v2217
        %v2219 = vpop.xlane.xlu0 %2218
        %v2220 = vsel %vm1091, %v2204, 0.0
        %2221 = vadd.xlane.f32.xlu0 %v2220
        %v2222 = vpop.xlane.xlu0 %2221
        %v2223 = vsel %vm1091, %v2206, 0.0
        %2224 = vadd.xlane.f32.xlu0 %v2223
        %v2225 = vpop.xlane.xlu0 %2224
        %v2226 = vsel %vm1091, %v2208, 0.0
        %2227 = vadd.xlane.f32.xlu0 %v2226
        %v2228 = vpop.xlane.xlu0 %2227
        %v2229 = vsel %vm1091, %v2210, 0.0
        %2230 = vadd.xlane.f32.xlu0 %v2229
        %v2231 = vpop.xlane.xlu0 %2230
        %v2232 = vsel %vm1091, %v2212, 0.0
        %2233 = vadd.xlane.f32.xlu0 %v2232
        %v2234 = vpop.xlane.xlu0 %2233
        %v2235 = vsel %vm1091, %v2214, 0.0
        %2236 = vadd.xlane.f32.xlu0 %v2235
        %v2237 = vpop.xlane.xlu0 %2236
        %v2238 = vsel %vm1091, %v2216, 0.0
        %2239 = vadd.xlane.f32.xlu0 %v2238
        %v2240 = vpop.xlane.xlu0 %2239
        %v2241 = vrcp.pop %v2219
        %v2242 = vrcp.pop %v2222
        %v2243 = vrcp.pop %v2225
        %v2244 = vrcp.pop %v2228
        %v2245 = vrcp.pop %v2231
        %v2246 = vrcp.pop %v2234
        %v2247 = vrcp.pop %v2237
        %v2248 = vrcp.pop %v2240
        %v2249 = vmul.f32 %v2202, %v2241
        %v2250 = vmul.f32 %v2204, %v2242
        %v2251 = vmul.f32 %v2206, %v2243
        %v2252 = vmul.f32 %v2208, %v2244
        %v2253 = vmul.f32 %v2210, %v2245
        %v2254 = vmul.f32 %v2212, %v2246
        %v2255 = vmul.f32 %v2214, %v2247
        %v2256 = vmul.f32 %v2216, %v2248
        %v2257 = vrot.slane %v904, 4
        %v2258 = vsel %vm1091, %v2257, 0
        %v2261 = vsel %vm1091, %v2249, 0
        %v2264 = vsel %vm1091, %v2250, 0
        %v2267 = vsel %vm1091, %v2251, 0
        %v2270 = vsel %vm1091, %v2252, 0
        %v2273 = vsel %vm1091, %v2253, 0
        %v2276 = vsel %vm1091, %v2254, 0
        %v2279 = vsel %vm1091, %v2255, 0
        %v2282 = vsel %vm1091, %v2256, 0
        %2284 = vmatprep.subr.mxu0 0.0
        %2285 = vmatpush1.xpose.msra.mxu0 %v2261
        %2286 = vmatprep.subr.mxu0 0.0
        %2287 = vmatpush1.xpose.msra.mxu0 %v2264
        %2288 = vmatprep.subr.mxu0 0.0
        %2289 = vmatpush1.xpose.msra.mxu0 %v2267
        %2290 = vmatprep.subr.mxu0 0.0
        %2291 = vmatpush1.xpose.msra.mxu0 %v2270
        %2292 = vmatprep.subr.mxu0 0.0
        %2293 = vmatpush1.xpose.msra.mxu0 %v2273
        %2294 = vmatprep.subr.mxu0 0.0
        %2295 = vmatpush1.xpose.msra.mxu0 %v2276
        %2296 = vmatprep.subr.mxu0 0.0
        %2297 = vmatpush1.xpose.msra.mxu0 %v2279
        %2298 = vmatprep.subr.mxu0 0.0
        %2299 = vmatpush1.xpose.msra.mxu0 %v2282
        %2300 = vmatprep.subr.mxu0 0.0
        %2301 = vmatpush1.xpose.msra.mxu0 0.0
        %2302 = vmatprep.subr.mxu0 0.0
        %2303 = vmatpush1.xpose.msra.mxu0 0.0
        %2304 = vmatprep.subr.mxu0 0.0
        %2305 = vmatpush1.xpose.msra.mxu0 0.0
        %2306 = vmatprep.subr.mxu0 0.0
        %2307 = vmatpush1.xpose.msra.mxu0 0.0
        %2308 = vmatprep.subr.mxu0 0.0
        %2309 = vmatpush1.xpose.msra.mxu0 0.0
        %2310 = vmatprep.subr.mxu0 0.0
        %2311 = vmatpush1.xpose.msra.mxu0 0.0
        %2312 = vmatprep.subr.mxu0 0.0
        %2313 = vmatpush1.xpose.msra.mxu0 0.0
        %2314 = vmatprep.subr.mxu0 0.0
        %2315 = vmatpush1.xpose.msra.mxu0 0.0
        %2316 = vmatprep.subr.mxu0 0.0
        %2317 = vmatpush1.xpose.msra.mxu0 0.0
        %2318 = vmatprep.subr.mxu0 0.0
        %2319 = vmatpush1.xpose.msra.mxu0 0.0
        %2320 = vmatprep.subr.mxu0 0.0
        %2321 = vmatpush1.xpose.msra.mxu0 0.0
        %2322 = vmatprep.subr.mxu0 0.0
        %2323 = vmatpush1.xpose.msra.mxu0 0.0
        %2324 = vmatprep.subr.mxu0 0.0
        %2325 = vmatpush1.xpose.msra.mxu0 0.0
        %2326 = vmatprep.subr.mxu0 0.0
        %2327 = vmatpush1.xpose.msra.mxu0 0.0
        %2328 = vmatprep.subr.mxu0 0.0
        %2329 = vmatpush1.xpose.msra.mxu0 0.0
        %2330 = vmatprep.subr.mxu0 0.0
        %2331 = vmatpush1.xpose.msra.mxu0 0.0
        %2332 = vmatprep.subr.mxu0 0.0
        %2333 = vmatpush1.xpose.msra.mxu0 0.0
        %2334 = vmatprep.subr.mxu0 0.0
        %2335 = vmatpush1.xpose.msra.mxu0 0.0
        %2336 = vmatprep.subr.mxu0 0.0
        %2337 = vmatpush1.xpose.msra.mxu0 0.0
        %2338 = vmatprep.subr.mxu0 0.0
        %2339 = vmatpush1.xpose.msra.mxu0 0.0
        %2340 = vmatprep.subr.mxu0 0.0
        %2341 = vmatpush1.xpose.msra.mxu0 0.0
        %2342 = vmatprep.subr.mxu0 0.0
        %2343 = vmatpush1.xpose.msra.mxu0 0.0
        %2344 = vmatprep.subr.mxu0 0.0
        %2345 = vmatpush1.xpose.msra.mxu0 0.0
        %2346 = vmatprep.subr.mxu0 0.0
        %2347 = vmatpush1.xpose.msra.mxu0 0.0
        %2348 = vmatprep.mubr.f32.mxu0 0.0
        %2349 = vmatmul.mubr.f32.gmra.mrb[0].mxu0 %v2258
        %v2350 = vpop.f32.mrb[0].mxu0
        %v2351 = vadd.f32 0.0, %v2350
        %v2352 = vpop.f32.mrb[0].mxu0
        %2353 = vdwg.mxu0
        %2354 = vxpose.xlu0.b32.start [1/16] %v707, 128
        %2355 = vxpose.xlu0.b32.cont [2/16] 0.0, 128
        %2356 = vxpose.xlu0.b32.cont [3/16] 0.0, 128
        %2357 = vxpose.xlu0.b32.cont [4/16] 0.0, 128
        %2358 = vxpose.xlu0.b32.cont [5/16] 0.0, 128
        %2359 = vxpose.xlu0.b32.cont [6/16] 0.0, 128
        %2360 = vxpose.xlu0.b32.cont [7/16] 0.0, 128
        %2361 = vxpose.xlu0.b32.cont [8/16] 0.0, 128
        %2362 = vxpose.xlu0.b32.cont [9/16] 0.0, 128
        %2363 = vxpose.xlu0.b32.cont [10/16] 0.0, 128
        %2364 = vxpose.xlu0.b32.cont [11/16] 0.0, 128
        %2365 = vxpose.xlu0.b32.cont [12/16] 0.0, 128
        %2366 = vxpose.xlu0.b32.cont [13/16] 0.0, 128
        %2367 = vxpose.xlu0.b32.cont [14/16] 0.0, 128
        %2368 = vxpose.xlu0.b32.cont [15/16] 0.0, 128
        %2369 = vxpose.xlu0.b32.end [16/16] 0.0, 128
        %v2370 = vpop.trf.xlu0
        %v2371 = vpop.trf.xlu0
        %v2372 = vpop.trf.xlu0
        %v2373 = vpop.trf.xlu0
        %v2374 = vpop.trf.xlu0
        %v2375 = vpop.trf.xlu0
        %v2376 = vpop.trf.xlu0
        %v2377 = vpop.trf.xlu0
        %v2378 = vpop.trf.xlu0
        %v2379 = vpop.trf.xlu0
        %v2380 = vpop.trf.xlu0
        %v2381 = vpop.trf.xlu0
        %v2382 = vpop.trf.xlu0
        %v2383 = vpop.trf.xlu0
        %v2384 = vpop.trf.xlu0
        %v2385 = vpop.trf.xlu0
        %v2387 = vsel %vm949, %v2370, 0
        %v2390 = vsel %vm949, %v2371, 0
        %v2393 = vsel %vm949, %v2372, 0
        %v2396 = vsel %vm949, %v2373, 0
        %v2399 = vsel %vm949, %v2374, 0
        %v2402 = vsel %vm949, %v2375, 0
        %v2405 = vsel %vm949, %v2376, 0
        %v2408 = vsel %vm949, %v2377, 0
        %v2411 = vsel %vm974, %v808, 0
        %2413 = vmatprep.subr.mxu0 0.0
        %2414 = vmatpush1.msra.mxu0 %v2411
        %2415 = vmatprep.subr.mxu0 0.0
        %2416 = vmatpush1.msra.mxu0 0.0
        %2417 = vmatprep.subr.mxu0 0.0
        %2418 = vmatpush1.msra.mxu0 0.0
        %2419 = vmatprep.subr.mxu0 0.0
        %2420 = vmatpush1.msra.mxu0 0.0
        %2421 = vmatprep.subr.mxu0 0.0
        %2422 = vmatpush1.msra.mxu0 0.0
        %2423 = vmatprep.subr.mxu0 0.0
        %2424 = vmatpush1.msra.mxu0 0.0
        %2425 = vmatprep.subr.mxu0 0.0
        %2426 = vmatpush1.msra.mxu0 0.0
        %2427 = vmatprep.subr.mxu0 0.0
        %2428 = vmatpush1.msra.mxu0 0.0
        %2429 = vmatprep.subr.mxu0 0.0
        %2430 = vmatpush1.msra.mxu0 0.0
        %2431 = vmatprep.subr.mxu0 0.0
        %2432 = vmatpush1.msra.mxu0 0.0
        %2433 = vmatprep.subr.mxu0 0.0
        %2434 = vmatpush1.msra.mxu0 0.0
        %2435 = vmatprep.subr.mxu0 0.0
        %2436 = vmatpush1.msra.mxu0 0.0
        %2437 = vmatprep.subr.mxu0 0.0
        %2438 = vmatpush1.msra.mxu0 0.0
        %2439 = vmatprep.subr.mxu0 0.0
        %2440 = vmatpush1.msra.mxu0 0.0
        %2441 = vmatprep.subr.mxu0 0.0
        %2442 = vmatpush1.msra.mxu0 0.0
        %2443 = vmatprep.subr.mxu0 0.0
        %2444 = vmatpush1.msra.mxu0 0.0
        %2445 = vmatprep.subr.mxu0 0.0
        %2446 = vmatpush1.msra.mxu0 0.0
        %2447 = vmatprep.subr.mxu0 0.0
        %2448 = vmatpush1.msra.mxu0 0.0
        %2449 = vmatprep.subr.mxu0 0.0
        %2450 = vmatpush1.msra.mxu0 0.0
        %2451 = vmatprep.subr.mxu0 0.0
        %2452 = vmatpush1.msra.mxu0 0.0
        %2453 = vmatprep.subr.mxu0 0.0
        %2454 = vmatpush1.msra.mxu0 0.0
        %2455 = vmatprep.subr.mxu0 0.0
        %2456 = vmatpush1.msra.mxu0 0.0
        %2457 = vmatprep.subr.mxu0 0.0
        %2458 = vmatpush1.msra.mxu0 0.0
        %2459 = vmatprep.subr.mxu0 0.0
        %2460 = vmatpush1.msra.mxu0 0.0
        %2461 = vmatprep.subr.mxu0 0.0
        %2462 = vmatpush1.msra.mxu0 0.0
        %2463 = vmatprep.subr.mxu0 0.0
        %2464 = vmatpush1.msra.mxu0 0.0
        %2465 = vmatprep.subr.mxu0 0.0
        %2466 = vmatpush1.msra.mxu0 0.0
        %2467 = vmatprep.subr.mxu0 0.0
        %2468 = vmatpush1.msra.mxu0 0.0
        %2469 = vmatprep.subr.mxu0 0.0
        %2470 = vmatpush1.msra.mxu0 0.0
        %2471 = vmatprep.subr.mxu0 0.0
        %2472 = vmatpush1.msra.mxu0 0.0
        %2473 = vmatprep.subr.mxu0 0.0
        %2474 = vmatpush1.msra.mxu0 0.0
        %2475 = vmatprep.subr.mxu0 0.0
        %2476 = vmatpush1.msra.mxu0 0.0
        %2477 = vmatprep.mubr.f32.mxu0 0.0
        %2478 = vmatmul.mubr.f32.gmra.mrb[0].mxu0 %v2387
        %v2479 = vpop.f32.mrb[0].mxu0
        %v2480 = vadd.f32 0.0, %v2479
        %v2481 = vpop.f32.mrb[0].mxu0
        %2482 = vmatprep.mubr.f32.mxu0 0.0
        %2483 = vmatmul.mubr.f32.gmra.mrb[0].mxu0 %v2390
        %v2484 = vpop.f32.mrb[0].mxu0
        %v2485 = vadd.f32 0.0, %v2484
        %v2486 = vpop.f32.mrb[0].mxu0
        %2487 = vmatprep.mubr.f32.mxu0 0.0
        %2488 = vmatmul.mubr.f32.gmra.mrb[0].mxu0 %v2393
        %v2489 = vpop.f32.mrb[0].mxu0
        %v2490 = vadd.f32 0.0, %v2489
        %v2491 = vpop.f32.mrb[0].mxu0
        %2492 = vmatprep.mubr.f32.mxu0 0.0
        %2493 = vmatmul.mubr.f32.gmra.mrb[0].mxu0 %v2396
        %v2494 = vpop.f32.mrb[0].mxu0
        %v2495 = vadd.f32 0.0, %v2494
        %v2496 = vpop.f32.mrb[0].mxu0
        %2497 = vmatprep.mubr.f32.mxu0 0.0
        %2498 = vmatmul.mubr.f32.gmra.mrb[0].mxu0 %v2399
        %v2499 = vpop.f32.mrb[0].mxu0
        %v2500 = vadd.f32 0.0, %v2499
        %v2501 = vpop.f32.mrb[0].mxu0
        %2502 = vmatprep.mubr.f32.mxu0 0.0
        %2503 = vmatmul.mubr.f32.gmra.mrb[0].mxu0 %v2402
        %v2504 = vpop.f32.mrb[0].mxu0
        %v2505 = vadd.f32 0.0, %v2504
        %v2506 = vpop.f32.mrb[0].mxu0
        %2507 = vmatprep.mubr.f32.mxu0 0.0
        %2508 = vmatmul.mubr.f32.gmra.mrb[0].mxu0 %v2405
        %v2509 = vpop.f32.mrb[0].mxu0
        %v2510 = vadd.f32 0.0, %v2509
        %v2511 = vpop.f32.mrb[0].mxu0
        %2512 = vmatprep.mubr.f32.mxu0 0.0
        %2513 = vmatmul.mubr.f32.gmra.mrb[0].mxu0 %v2408
        %v2514 = vpop.f32.mrb[0].mxu0
        %v2515 = vadd.f32 0.0, %v2514
        %v2516 = vpop.f32.mrb[0].mxu0
        %2517 = vdwg.mxu0
        %v2518 = vmul.f32 %v2480, 0.5
        %v2519 = vmul.f32 %v2485, 0.5
        %v2520 = vmul.f32 %v2490, 0.5
        %v2521 = vmul.f32 %v2495, 0.5
        %v2522 = vmul.f32 %v2500, 0.5
        %v2523 = vmul.f32 %v2505, 0.5
        %v2524 = vmul.f32 %v2510, 0.5
        %v2525 = vmul.f32 %v2515, 0.5
        %v2526 = vsel %vm1091, %v2518, -inf
        %2527 = vmax.xlane.f32.xlu0 %v2526
        %v2528 = vpop.xlane.xlu0 %2527
        %v2529 = vsel %vm1091, %v2519, -inf
        %2530 = vmax.xlane.f32.xlu0 %v2529
        %v2531 = vpop.xlane.xlu0 %2530
        %v2532 = vsel %vm1091, %v2520, -inf
        %2533 = vmax.xlane.f32.xlu0 %v2532
        %v2534 = vpop.xlane.xlu0 %2533
        %v2535 = vsel %vm1091, %v2521, -inf
        %2536 = vmax.xlane.f32.xlu0 %v2535
        %v2537 = vpop.xlane.xlu0 %2536
        %v2538 = vsel %vm1091, %v2522, -inf
        %2539 = vmax.xlane.f32.xlu0 %v2538
        %v2540 = vpop.xlane.xlu0 %2539
        %v2541 = vsel %vm1091, %v2523, -inf
        %2542 = vmax.xlane.f32.xlu0 %v2541
        %v2543 = vpop.xlane.xlu0 %2542
        %v2544 = vsel %vm1091, %v2524, -inf
        %2545 = vmax.xlane.f32.xlu0 %v2544
        %v2546 = vpop.xlane.xlu0 %2545
        %v2547 = vsel %vm1091, %v2525, -inf
        %2548 = vmax.xlane.f32.xlu0 %v2547
        %v2549 = vpop.xlane.xlu0 %2548
        %v2550 = vsub.f32 %v2518, %v2528
        %v2551 = vsub.f32 %v2519, %v2531
        %v2552 = vsub.f32 %v2520, %v2534
        %v2553 = vsub.f32 %v2521, %v2537
        %v2554 = vsub.f32 %v2522, %v2540
        %v2555 = vsub.f32 %v2523, %v2543
        %v2556 = vsub.f32 %v2524, %v2546
        %v2557 = vsub.f32 %v2525, %v2549
        %v2558 = vmul.f32 %v2550, 1.442695
        %v2559 = vpow.pop %v2558
        %v2560 = vmul.f32 %v2551, 1.442695
        %v2561 = vpow.pop %v2560
        %v2562 = vmul.f32 %v2552, 1.442695
        %v2563 = vpow.pop %v2562
        %v2564 = vmul.f32 %v2553, 1.442695
        %v2565 = vpow.pop %v2564
        %v2566 = vmul.f32 %v2554, 1.442695
        %v2567 = vpow.pop %v2566
        %v2568 = vmul.f32 %v2555, 1.442695
        %v2569 = vpow.pop %v2568
        %v2570 = vmul.f32 %v2556, 1.442695
        %v2571 = vpow.pop %v2570
        %v2572 = vmul.f32 %v2557, 1.442695
        %v2573 = vpow.pop %v2572
        %v2574 = vsel %vm1091, %v2559, 0.0
        %2575 = vadd.xlane.f32.xlu0 %v2574
        %v2576 = vpop.xlane.xlu0 %2575
        %v2577 = vsel %vm1091, %v2561, 0.0
        %2578 = vadd.xlane.f32.xlu0 %v2577
        %v2579 = vpop.xlane.xlu0 %2578
        %v2580 = vsel %vm1091, %v2563, 0.0
        %2581 = vadd.xlane.f32.xlu0 %v2580
        %v2582 = vpop.xlane.xlu0 %2581
        %v2583 = vsel %vm1091, %v2565, 0.0
        %2584 = vadd.xlane.f32.xlu0 %v2583
        %v2585 = vpop.xlane.xlu0 %2584
        %v2586 = vsel %vm1091, %v2567, 0.0
        %2587 = vadd.xlane.f32.xlu0 %v2586
        %v2588 = vpop.xlane.xlu0 %2587
        %v2589 = vsel %vm1091, %v2569, 0.0
        %2590 = vadd.xlane.f32.xlu0 %v2589
        %v2591 = vpop.xlane.xlu0 %2590
        %v2592 = vsel %vm1091, %v2571, 0.0
        %2593 = vadd.xlane.f32.xlu0 %v2592
        %v2594 = vpop.xlane.xlu0 %2593
        %v2595 = vsel %vm1091, %v2573, 0.0
        %2596 = vadd.xlane.f32.xlu0 %v2595
        %v2597 = vpop.xlane.xlu0 %2596
        %v2598 = vrcp.pop %v2576
        %v2599 = vrcp.pop %v2579
        %v2600 = vrcp.pop %v2582
        %v2601 = vrcp.pop %v2585
        %v2602 = vrcp.pop %v2588
        %v2603 = vrcp.pop %v2591
        %v2604 = vrcp.pop %v2594
        %v2605 = vrcp.pop %v2597
        %v2606 = vmul.f32 %v2559, %v2598
        %v2607 = vmul.f32 %v2561, %v2599
        %v2608 = vmul.f32 %v2563, %v2600
        %v2609 = vmul.f32 %v2565, %v2601
        %v2610 = vmul.f32 %v2567, %v2602
        %v2611 = vmul.f32 %v2569, %v2603
        %v2612 = vmul.f32 %v2571, %v2604
        %v2613 = vmul.f32 %v2573, %v2605
        %v2615 = vsel %vm1091, %v909, 0
        %v2618 = vsel %vm1091, %v2606, 0
        %v2621 = vsel %vm1091, %v2607, 0
        %v2624 = vsel %vm1091, %v2608, 0
        %v2627 = vsel %vm1091, %v2609, 0
        %v2630 = vsel %vm1091, %v2610, 0
        %v2633 = vsel %vm1091, %v2611, 0
        %v2636 = vsel %vm1091, %v2612, 0
        %v2639 = vsel %vm1091, %v2613, 0
        %2641 = vmatprep.subr.mxu0 0.0
        %2642 = vmatpush1.xpose.msra.mxu0 %v2618
        %2643 = vmatprep.subr.mxu0 0.0
        %2644 = vmatpush1.xpose.msra.mxu0 %v2621
        %2645 = vmatprep.subr.mxu0 0.0
        %2646 = vmatpush1.xpose.msra.mxu0 %v2624
        %2647 = vmatprep.subr.mxu0 0.0
        %2648 = vmatpush1.xpose.msra.mxu0 %v2627
        %2649 = vmatprep.subr.mxu0 0.0
        %2650 = vmatpush1.xpose.msra.mxu0 %v2630
        %2651 = vmatprep.subr.mxu0 0.0
        %2652 = vmatpush1.xpose.msra.mxu0 %v2633
        %2653 = vmatprep.subr.mxu0 0.0
        %2654 = vmatpush1.xpose.msra.mxu0 %v2636
        %2655 = vmatprep.subr.mxu0 0.0
        %2656 = vmatpush1.xpose.msra.mxu0 %v2639
        %2657 = vmatprep.subr.mxu0 0.0
        %2658 = vmatpush1.xpose.msra.mxu0 0.0
        %2659 = vmatprep.subr.mxu0 0.0
        %2660 = vmatpush1.xpose.msra.mxu0 0.0
        %2661 = vmatprep.subr.mxu0 0.0
        %2662 = vmatpush1.xpose.msra.mxu0 0.0
        %2663 = vmatprep.subr.mxu0 0.0
        %2664 = vmatpush1.xpose.msra.mxu0 0.0
        %2665 = vmatprep.subr.mxu0 0.0
        %2666 = vmatpush1.xpose.msra.mxu0 0.0
        %2667 = vmatprep.subr.mxu0 0.0
        %2668 = vmatpush1.xpose.msra.mxu0 0.0
        %2669 = vmatprep.subr.mxu0 0.0
        %2670 = vmatpush1.xpose.msra.mxu0 0.0
        %2671 = vmatprep.subr.mxu0 0.0
        %2672 = vmatpush1.xpose.msra.mxu0 0.0
        %2673 = vmatprep.subr.mxu0 0.0
        %2674 = vmatpush1.xpose.msra.mxu0 0.0
        %2675 = vmatprep.subr.mxu0 0.0
        %2676 = vmatpush1.xpose.msra.mxu0 0.0
        %2677 = vmatprep.subr.mxu0 0.0
        %2678 = vmatpush1.xpose.msra.mxu0 0.0
        %2679 = vmatprep.subr.mxu0 0.0
        %2680 = vmatpush1.xpose.msra.mxu0 0.0
        %2681 = vmatprep.subr.mxu0 0.0
        %2682 = vmatpush1.xpose.msra.mxu0 0.0
        %2683 = vmatprep.subr.mxu0 0.0
        %2684 = vmatpush1.xpose.msra.mxu0 0.0
        %2685 = vmatprep.subr.mxu0 0.0
        %2686 = vmatpush1.xpose.msra.mxu0 0.0
        %2687 = vmatprep.subr.mxu0 0.0
        %2688 = vmatpush1.xpose.msra.mxu0 0.0
        %2689 = vmatprep.subr.mxu0 0.0
        %2690 = vmatpush1.xpose.msra.mxu0 0.0
        %2691 = vmatprep.subr.mxu0 0.0
        %2692 = vmatpush1.xpose.msra.mxu0 0.0
        %2693 = vmatprep.subr.mxu0 0.0
        %2694 = vmatpush1.xpose.msra.mxu0 0.0
        %2695 = vmatprep.subr.mxu0 0.0
        %2696 = vmatpush1.xpose.msra.mxu0 0.0
        %2697 = vmatprep.subr.mxu0 0.0
        %2698 = vmatpush1.xpose.msra.mxu0 0.0
        %2699 = vmatprep.subr.mxu0 0.0
        %2700 = vmatpush1.xpose.msra.mxu0 0.0
        %2701 = vmatprep.subr.mxu0 0.0
        %2702 = vmatpush1.xpose.msra.mxu0 0.0
        %2703 = vmatprep.subr.mxu0 0.0
        %2704 = vmatpush1.xpose.msra.mxu0 0.0
        %2705 = vmatprep.mubr.f32.mxu0 0.0
        %2706 = vmatmul.mubr.f32.gmra.mrb[0].mxu0 %v2615
        %v2707 = vpop.f32.mrb[0].mxu0
        %v2708 = vadd.f32 0.0, %v2707
        %v2709 = vpop.f32.mrb[0].mxu0
        %2710 = vdwg.mxu0
        %v2712 = vrot.slane %v707, 4
        %2714 = vxpose.xlu0.b32.start [1/16] %v2712, 128
        %2715 = vxpose.xlu0.b32.cont [2/16] 0.0, 128
        %2716 = vxpose.xlu0.b32.cont [3/16] 0.0, 128
        %2717 = vxpose.xlu0.b32.cont [4/16] 0.0, 128
        %2718 = vxpose.xlu0.b32.cont [5/16] 0.0, 128
        %2719 = vxpose.xlu0.b32.cont [6/16] 0.0, 128
        %2720 = vxpose.xlu0.b32.cont [7/16] 0.0, 128
        %2721 = vxpose.xlu0.b32.cont [8/16] 0.0, 128
        %2722 = vxpose.xlu0.b32.cont [9/16] 0.0, 128
        %2723 = vxpose.xlu0.b32.cont [10/16] 0.0, 128
        %2724 = vxpose.xlu0.b32.cont [11/16] 0.0, 128
        %2725 = vxpose.xlu0.b32.cont [12/16] 0.0, 128
        %2726 = vxpose.xlu0.b32.cont [13/16] 0.0, 128
        %2727 = vxpose.xlu0.b32.cont [14/16] 0.0, 128
        %2728 = vxpose.xlu0.b32.cont [15/16] 0.0, 128
        %2729 = vxpose.xlu0.b32.end [16/16] 0.0, 128
        %v2730 = vpop.trf.xlu0
        %v2731 = vpop.trf.xlu0
        %v2732 = vpop.trf.xlu0
        %v2733 = vpop.trf.xlu0
        %v2734 = vpop.trf.xlu0
        %v2735 = vpop.trf.xlu0
        %v2736 = vpop.trf.xlu0
        %v2737 = vpop.trf.xlu0
        %v2738 = vpop.trf.xlu0
        %v2739 = vpop.trf.xlu0
        %v2740 = vpop.trf.xlu0
        %v2741 = vpop.trf.xlu0
        %v2742 = vpop.trf.xlu0
        %v2743 = vpop.trf.xlu0
        %v2744 = vpop.trf.xlu0
        %v2745 = vpop.trf.xlu0
        %v2746 = vrot.slane %v808, 4
        %v2748 = vsel %vm949, %v2730, 0
        %v2751 = vsel %vm949, %v2731, 0
        %v2754 = vsel %vm949, %v2732, 0
        %v2757 = vsel %vm949, %v2733, 0
        %v2760 = vsel %vm949, %v2734, 0
        %v2763 = vsel %vm949, %v2735, 0
        %v2766 = vsel %vm949, %v2736, 0
        %v2769 = vsel %vm949, %v2737, 0
        %v2771 = vsel %vm974, %v2746, 0
        %2773 = vmatprep.subr.mxu0 0.0
        %2774 = vmatpush1.msra.mxu0 %v2771
        %2775 = vmatprep.subr.mxu0 0.0
        %2776 = vmatpush1.msra.mxu0 0.0
        %2777 = vmatprep.subr.mxu0 0.0
        %2778 = vmatpush1.msra.mxu0 0.0
        %2779 = vmatprep.subr.mxu0 0.0
        %2780 = vmatpush1.msra.mxu0 0.0
        %2781 = vmatprep.subr.mxu0 0.0
        %2782 = vmatpush1.msra.mxu0 0.0
        %2783 = vmatprep.subr.mxu0 0.0
        %2784 = vmatpush1.msra.mxu0 0.0
        %2785 = vmatprep.subr.mxu0 0.0
        %2786 = vmatpush1.msra.mxu0 0.0
        %2787 = vmatprep.subr.mxu0 0.0
        %2788 = vmatpush1.msra.mxu0 0.0
        %2789 = vmatprep.subr.mxu0 0.0
        %2790 = vmatpush1.msra.mxu0 0.0
        %2791 = vmatprep.subr.mxu0 0.0
        %2792 = vmatpush1.msra.mxu0 0.0
        %2793 = vmatprep.subr.mxu0 0.0
        %2794 = vmatpush1.msra.mxu0 0.0
        %2795 = vmatprep.subr.mxu0 0.0
        %2796 = vmatpush1.msra.mxu0 0.0
        %2797 = vmatprep.subr.mxu0 0.0
        %2798 = vmatpush1.msra.mxu0 0.0
        %2799 = vmatprep.subr.mxu0 0.0
        %2800 = vmatpush1.msra.mxu0 0.0
        %2801 = vmatprep.subr.mxu0 0.0
        %2802 = vmatpush1.msra.mxu0 0.0
        %2803 = vmatprep.subr.mxu0 0.0
        %2804 = vmatpush1.msra.mxu0 0.0
        %2805 = vmatprep.subr.mxu0 0.0
        %2806 = vmatpush1.msra.mxu0 0.0
        %2807 = vmatprep.subr.mxu0 0.0
        %2808 = vmatpush1.msra.mxu0 0.0
        %2809 = vmatprep.subr.mxu0 0.0
        %2810 = vmatpush1.msra.mxu0 0.0
        %2811 = vmatprep.subr.mxu0 0.0
        %2812 = vmatpush1.msra.mxu0 0.0
        %2813 = vmatprep.subr.mxu0 0.0
        %2814 = vmatpush1.msra.mxu0 0.0
        %2815 = vmatprep.subr.mxu0 0.0
        %2816 = vmatpush1.msra.mxu0 0.0
        %2817 = vmatprep.subr.mxu0 0.0
        %2818 = vmatpush1.msra.mxu0 0.0
        %2819 = vmatprep.subr.mxu0 0.0
        %2820 = vmatpush1.msra.mxu0 0.0
        %2821 = vmatprep.subr.mxu0 0.0
        %2822 = vmatpush1.msra.mxu0 0.0
        %2823 = vmatprep.subr.mxu0 0.0
        %2824 = vmatpush1.msra.mxu0 0.0
        %2825 = vmatprep.subr.mxu0 0.0
        %2826 = vmatpush1.msra.mxu0 0.0
        %2827 = vmatprep.subr.mxu0 0.0
        %2828 = vmatpush1.msra.mxu0 0.0
        %2829 = vmatprep.subr.mxu0 0.0
        %2830 = vmatpush1.msra.mxu0 0.0
        %2831 = vmatprep.subr.mxu0 0.0
        %2832 = vmatpush1.msra.mxu0 0.0
        %2833 = vmatprep.subr.mxu0 0.0
        %2834 = vmatpush1.msra.mxu0 0.0
        %2835 = vmatprep.subr.mxu0 0.0
        %2836 = vmatpush1.msra.mxu0 0.0
        %2837 = vmatprep.mubr.f32.mxu0 0.0
        %2838 = vmatmul.mubr.f32.gmra.mrb[0].mxu0 %v2748
        %v2839 = vpop.f32.mrb[0].mxu0
        %v2840 = vadd.f32 0.0, %v2839
        %v2841 = vpop.f32.mrb[0].mxu0
        %2842 = vmatprep.mubr.f32.mxu0 0.0
        %2843 = vmatmul.mubr.f32.gmra.mrb[0].mxu0 %v2751
        %v2844 = vpop.f32.mrb[0].mxu0
        %v2845 = vadd.f32 0.0, %v2844
        %v2846 = vpop.f32.mrb[0].mxu0
        %2847 = vmatprep.mubr.f32.mxu0 0.0
        %2848 = vmatmul.mubr.f32.gmra.mrb[0].mxu0 %v2754
        %v2849 = vpop.f32.mrb[0].mxu0
        %v2850 = vadd.f32 0.0, %v2849
        %v2851 = vpop.f32.mrb[0].mxu0
        %2852 = vmatprep.mubr.f32.mxu0 0.0
        %2853 = vmatmul.mubr.f32.gmra.mrb[0].mxu0 %v2757
        %v2854 = vpop.f32.mrb[0].mxu0
        %v2855 = vadd.f32 0.0, %v2854
        %v2856 = vpop.f32.mrb[0].mxu0
        %2857 = vmatprep.mubr.f32.mxu0 0.0
        %2858 = vmatmul.mubr.f32.gmra.mrb[0].mxu0 %v2760
        %v2859 = vpop.f32.mrb[0].mxu0
        %v2860 = vadd.f32 0.0, %v2859
        %v2861 = vpop.f32.mrb[0].mxu0
        %2862 = vmatprep.mubr.f32.mxu0 0.0
        %2863 = vmatmul.mubr.f32.gmra.mrb[0].mxu0 %v2763
        %v2864 = vpop.f32.mrb[0].mxu0
        %v2865 = vadd.f32 0.0, %v2864
        %v2866 = vpop.f32.mrb[0].mxu0
        %2867 = vmatprep.mubr.f32.mxu0 0.0
        %2868 = vmatmul.mubr.f32.gmra.mrb[0].mxu0 %v2766
        %v2869 = vpop.f32.mrb[0].mxu0
        %v2870 = vadd.f32 0.0, %v2869
        %v2871 = vpop.f32.mrb[0].mxu0
        %2872 = vmatprep.mubr.f32.mxu0 0.0
        %2873 = vmatmul.mubr.f32.gmra.mrb[0].mxu0 %v2769
        %v2874 = vpop.f32.mrb[0].mxu0
        %v2875 = vadd.f32 0.0, %v2874
        %v2876 = vpop.f32.mrb[0].mxu0
        %2877 = vdwg.mxu0
        %v2878 = vmul.f32 %v2840, 0.5
        %v2879 = vmul.f32 %v2845, 0.5
        %v2880 = vmul.f32 %v2850, 0.5
        %v2881 = vmul.f32 %v2855, 0.5
        %v2882 = vmul.f32 %v2860, 0.5
        %v2883 = vmul.f32 %v2865, 0.5
        %v2884 = vmul.f32 %v2870, 0.5
        %v2885 = vmul.f32 %v2875, 0.5
        %v2886 = vsel %vm1091, %v2878, -inf
        %2887 = vmax.xlane.f32.xlu0 %v2886
        %v2888 = vpop.xlane.xlu0 %2887
        %v2889 = vsel %vm1091, %v2879, -inf
        %2890 = vmax.xlane.f32.xlu0 %v2889
        %v2891 = vpop.xlane.xlu0 %2890
        %v2892 = vsel %vm1091, %v2880, -inf
        %2893 = vmax.xlane.f32.xlu0 %v2892
        %v2894 = vpop.xlane.xlu0 %2893
        %v2895 = vsel %vm1091, %v2881, -inf
        %2896 = vmax.xlane.f32.xlu0 %v2895
        %v2897 = vpop.xlane.xlu0 %2896
        %v2898 = vsel %vm1091, %v2882, -inf
        %2899 = vmax.xlane.f32.xlu0 %v2898
        %v2900 = vpop.xlane.xlu0 %2899
        %v2901 = vsel %vm1091, %v2883, -inf
        %2902 = vmax.xlane.f32.xlu0 %v2901
        %v2903 = vpop.xlane.xlu0 %2902
        %v2904 = vsel %vm1091, %v2884, -inf
        %2905 = vmax.xlane.f32.xlu0 %v2904
        %v2906 = vpop.xlane.xlu0 %2905
        %v2907 = vsel %vm1091, %v2885, -inf
        %2908 = vmax.xlane.f32.xlu0 %v2907
        %v2909 = vpop.xlane.xlu0 %2908
        %v2910 = vsub.f32 %v2878, %v2888
        %v2911 = vsub.f32 %v2879, %v2891
        %v2912 = vsub.f32 %v2880, %v2894
        %v2913 = vsub.f32 %v2881, %v2897
        %v2914 = vsub.f32 %v2882, %v2900
        %v2915 = vsub.f32 %v2883, %v2903
        %v2916 = vsub.f32 %v2884, %v2906
        %v2917 = vsub.f32 %v2885, %v2909
        %v2918 = vmul.f32 %v2910, 1.442695
        %v2919 = vpow.pop %v2918
        %v2920 = vmul.f32 %v2911, 1.442695
        %v2921 = vpow.pop %v2920
        %v2922 = vmul.f32 %v2912, 1.442695
        %v2923 = vpow.pop %v2922
        %v2924 = vmul.f32 %v2913, 1.442695
        %v2925 = vpow.pop %v2924
        %v2926 = vmul.f32 %v2914, 1.442695
        %v2927 = vpow.pop %v2926
        %v2928 = vmul.f32 %v2915, 1.442695
        %v2929 = vpow.pop %v2928
        %v2930 = vmul.f32 %v2916, 1.442695
        %v2931 = vpow.pop %v2930
        %v2932 = vmul.f32 %v2917, 1.442695
        %v2933 = vpow.pop %v2932
        %v2934 = vsel %vm1091, %v2919, 0.0
        %2935 = vadd.xlane.f32.xlu0 %v2934
        %v2936 = vpop.xlane.xlu0 %2935
        %v2937 = vsel %vm1091, %v2921, 0.0
        %2938 = vadd.xlane.f32.xlu0 %v2937
        %v2939 = vpop.xlane.xlu0 %2938
        %v2940 = vsel %vm1091, %v2923, 0.0
        %2941 = vadd.xlane.f32.xlu0 %v2940
        %v2942 = vpop.xlane.xlu0 %2941
        %v2943 = vsel %vm1091, %v2925, 0.0
        %2944 = vadd.xlane.f32.xlu0 %v2943
        %v2945 = vpop.xlane.xlu0 %2944
        %v2946 = vsel %vm1091, %v2927, 0.0
        %2947 = vadd.xlane.f32.xlu0 %v2946
        %v2948 = vpop.xlane.xlu0 %2947
        %v2949 = vsel %vm1091, %v2929, 0.0
        %2950 = vadd.xlane.f32.xlu0 %v2949
        %v2951 = vpop.xlane.xlu0 %2950
        %v2952 = vsel %vm1091, %v2931, 0.0
        %2953 = vadd.xlane.f32.xlu0 %v2952
        %v2954 = vpop.xlane.xlu0 %2953
        %v2955 = vsel %vm1091, %v2933, 0.0
        %2956 = vadd.xlane.f32.xlu0 %v2955
        %v2957 = vpop.xlane.xlu0 %2956
        %v2958 = vrcp.pop %v2936
        %v2959 = vrcp.pop %v2939
        %v2960 = vrcp.pop %v2942
        %v2961 = vrcp.pop %v2945
        %v2962 = vrcp.pop %v2948
        %v2963 = vrcp.pop %v2951
        %v2964 = vrcp.pop %v2954
        %v2965 = vrcp.pop %v2957
        %v2966 = vmul.f32 %v2919, %v2958
        %v2967 = vmul.f32 %v2921, %v2959
        %v2968 = vmul.f32 %v2923, %v2960
        %v2969 = vmul.f32 %v2925, %v2961
        %v2970 = vmul.f32 %v2927, %v2962
        %v2971 = vmul.f32 %v2929, %v2963
        %v2972 = vmul.f32 %v2931, %v2964
        %v2973 = vmul.f32 %v2933, %v2965
        %v2974 = vrot.slane %v909, 4
        %v2975 = vsel %vm1091, %v2974, 0
        %v2978 = vsel %vm1091, %v2966, 0
        %v2981 = vsel %vm1091, %v2967, 0
        %v2984 = vsel %vm1091, %v2968, 0
        %v2987 = vsel %vm1091, %v2969, 0
        %v2990 = vsel %vm1091, %v2970, 0
        %v2993 = vsel %vm1091, %v2971, 0
        %v2996 = vsel %vm1091, %v2972, 0
        %v2999 = vsel %vm1091, %v2973, 0
        %3001 = vmatprep.subr.mxu0 0.0
        %3002 = vmatpush1.xpose.msra.mxu0 %v2978
        %3003 = vmatprep.subr.mxu0 0.0
        %3004 = vmatpush1.xpose.msra.mxu0 %v2981
        %3005 = vmatprep.subr.mxu0 0.0
        %3006 = vmatpush1.xpose.msra.mxu0 %v2984
        %3007 = vmatprep.subr.mxu0 0.0
        %3008 = vmatpush1.xpose.msra.mxu0 %v2987
        %3009 = vmatprep.subr.mxu0 0.0
        %3010 = vmatpush1.xpose.msra.mxu0 %v2990
        %3011 = vmatprep.subr.mxu0 0.0
        %3012 = vmatpush1.xpose.msra.mxu0 %v2993
        %3013 = vmatprep.subr.mxu0 0.0
        %3014 = vmatpush1.xpose.msra.mxu0 %v2996
        %3015 = vmatprep.subr.mxu0 0.0
        %3016 = vmatpush1.xpose.msra.mxu0 %v2999
        %3017 = vmatprep.subr.mxu0 0.0
        %3018 = vmatpush1.xpose.msra.mxu0 0.0
        %3019 = vmatprep.subr.mxu0 0.0
        %3020 = vmatpush1.xpose.msra.mxu0 0.0
        %3021 = vmatprep.subr.mxu0 0.0
        %3022 = vmatpush1.xpose.msra.mxu0 0.0
        %3023 = vmatprep.subr.mxu0 0.0
        %3024 = vmatpush1.xpose.msra.mxu0 0.0
        %3025 = vmatprep.subr.mxu0 0.0
        %3026 = vmatpush1.xpose.msra.mxu0 0.0
        %3027 = vmatprep.subr.mxu0 0.0
        %3028 = vmatpush1.xpose.msra.mxu0 0.0
        %3029 = vmatprep.subr.mxu0 0.0
        %3030 = vmatpush1.xpose.msra.mxu0 0.0
        %3031 = vmatprep.subr.mxu0 0.0
        %3032 = vmatpush1.xpose.msra.mxu0 0.0
        %3033 = vmatprep.subr.mxu0 0.0
        %3034 = vmatpush1.xpose.msra.mxu0 0.0
        %3035 = vmatprep.subr.mxu0 0.0
        %3036 = vmatpush1.xpose.msra.mxu0 0.0
        %3037 = vmatprep.subr.mxu0 0.0
        %3038 = vmatpush1.xpose.msra.mxu0 0.0
        %3039 = vmatprep.subr.mxu0 0.0
        %3040 = vmatpush1.xpose.msra.mxu0 0.0
        %3041 = vmatprep.subr.mxu0 0.0
        %3042 = vmatpush1.xpose.msra.mxu0 0.0
        %3043 = vmatprep.subr.mxu0 0.0
        %3044 = vmatpush1.xpose.msra.mxu0 0.0
        %3045 = vmatprep.subr.mxu0 0.0
        %3046 = vmatpush1.xpose.msra.mxu0 0.0
        %3047 = vmatprep.subr.mxu0 0.0
        %3048 = vmatpush1.xpose.msra.mxu0 0.0
        %3049 = vmatprep.subr.mxu0 0.0
        %3050 = vmatpush1.xpose.msra.mxu0 0.0
        %3051 = vmatprep.subr.mxu0 0.0
        %3052 = vmatpush1.xpose.msra.mxu0 0.0
        %3053 = vmatprep.subr.mxu0 0.0
        %3054 = vmatpush1.xpose.msra.mxu0 0.0
        %3055 = vmatprep.subr.mxu0 0.0
        %3056 = vmatpush1.xpose.msra.mxu0 0.0
        %3057 = vmatprep.subr.mxu0 0.0
        %3058 = vmatpush1.xpose.msra.mxu0 0.0
        %3059 = vmatprep.subr.mxu0 0.0
        %3060 = vmatpush1.xpose.msra.mxu0 0.0
        %3061 = vmatprep.subr.mxu0 0.0
        %3062 = vmatpush1.xpose.msra.mxu0 0.0
        %3063 = vmatprep.subr.mxu0 0.0
        %3064 = vmatpush1.xpose.msra.mxu0 0.0
        %3065 = vmatprep.mubr.f32.mxu0 0.0
        %3066 = vmatmul.mubr.f32.gmra.mrb[0].mxu0 %v2975
        %v3067 = vpop.f32.mrb[0].mxu0
        %v3068 = vadd.f32 0.0, %v3067
        %v3069 = vpop.f32.mrb[0].mxu0
        %3070 = vdwg.mxu0
        %3071 = vxpose.xlu0.b32.start [1/16] %v712, 128
        %3072 = vxpose.xlu0.b32.cont [2/16] 0.0, 128
        %3073 = vxpose.xlu0.b32.cont [3/16] 0.0, 128
        %3074 = vxpose.xlu0.b32.cont [4/16] 0.0, 128
        %3075 = vxpose.xlu0.b32.cont [5/16] 0.0, 128
        %3076 = vxpose.xlu0.b32.cont [6/16] 0.0, 128
        %3077 = vxpose.xlu0.b32.cont [7/16] 0.0, 128
        %3078 = vxpose.xlu0.b32.cont [8/16] 0.0, 128
        %3079 = vxpose.xlu0.b32.cont [9/16] 0.0, 128
        %3080 = vxpose.xlu0.b32.cont [10/16] 0.0, 128
        %3081 = vxpose.xlu0.b32.cont [11/16] 0.0, 128
        %3082 = vxpose.xlu0.b32.cont [12/16] 0.0, 128
        %3083 = vxpose.xlu0.b32.cont [13/16] 0.0, 128
        %3084 = vxpose.xlu0.b32.cont [14/16] 0.0, 128
        %3085 = vxpose.xlu0.b32.cont [15/16] 0.0, 128
        %3086 = vxpose.xlu0.b32.end [16/16] 0.0, 128
        %v3087 = vpop.trf.xlu0
        %v3088 = vpop.trf.xlu0
        %v3089 = vpop.trf.xlu0
        %v3090 = vpop.trf.xlu0
        %v3091 = vpop.trf.xlu0
        %v3092 = vpop.trf.xlu0
        %v3093 = vpop.trf.xlu0
        %v3094 = vpop.trf.xlu0
        %v3095 = vpop.trf.xlu0
        %v3096 = vpop.trf.xlu0
        %v3097 = vpop.trf.xlu0
        %v3098 = vpop.trf.xlu0
        %v3099 = vpop.trf.xlu0
        %v3100 = vpop.trf.xlu0
        %v3101 = vpop.trf.xlu0
        %v3102 = vpop.trf.xlu0
        %v3104 = vsel %vm949, %v3087, 0
        %v3107 = vsel %vm949, %v3088, 0
        %v3110 = vsel %vm949, %v3089, 0
        %v3113 = vsel %vm949, %v3090, 0
        %v3116 = vsel %vm949, %v3091, 0
        %v3119 = vsel %vm949, %v3092, 0
        %v3122 = vsel %vm949, %v3093, 0
        %v3125 = vsel %vm949, %v3094, 0
        %v3128 = vsel %vm974, %v813, 0
        %3130 = vmatprep.subr.mxu0 0.0
        %3131 = vmatpush1.msra.mxu0 %v3128
        %3132 = vmatprep.subr.mxu0 0.0
        %3133 = vmatpush1.msra.mxu0 0.0
        %3134 = vmatprep.subr.mxu0 0.0
        %3135 = vmatpush1.msra.mxu0 0.0
        %3136 = vmatprep.subr.mxu0 0.0
        %3137 = vmatpush1.msra.mxu0 0.0
        %3138 = vmatprep.subr.mxu0 0.0
        %3139 = vmatpush1.msra.mxu0 0.0
        %3140 = vmatprep.subr.mxu0 0.0
        %3141 = vmatpush1.msra.mxu0 0.0
        %3142 = vmatprep.subr.mxu0 0.0
        %3143 = vmatpush1.msra.mxu0 0.0
        %3144 = vmatprep.subr.mxu0 0.0
        %3145 = vmatpush1.msra.mxu0 0.0
        %3146 = vmatprep.subr.mxu0 0.0
        %3147 = vmatpush1.msra.mxu0 0.0
        %3148 = vmatprep.subr.mxu0 0.0
        %3149 = vmatpush1.msra.mxu0 0.0
        %3150 = vmatprep.subr.mxu0 0.0
        %3151 = vmatpush1.msra.mxu0 0.0
        %3152 = vmatprep.subr.mxu0 0.0
        %3153 = vmatpush1.msra.mxu0 0.0
        %3154 = vmatprep.subr.mxu0 0.0
        %3155 = vmatpush1.msra.mxu0 0.0
        %3156 = vmatprep.subr.mxu0 0.0
        %3157 = vmatpush1.msra.mxu0 0.0
        %3158 = vmatprep.subr.mxu0 0.0
        %3159 = vmatpush1.msra.mxu0 0.0
        %3160 = vmatprep.subr.mxu0 0.0
        %3161 = vmatpush1.msra.mxu0 0.0
        %3162 = vmatprep.subr.mxu0 0.0
        %3163 = vmatpush1.msra.mxu0 0.0
        %3164 = vmatprep.subr.mxu0 0.0
        %3165 = vmatpush1.msra.mxu0 0.0
        %3166 = vmatprep.subr.mxu0 0.0
        %3167 = vmatpush1.msra.mxu0 0.0
        %3168 = vmatprep.subr.mxu0 0.0
        %3169 = vmatpush1.msra.mxu0 0.0
        %3170 = vmatprep.subr.mxu0 0.0
        %3171 = vmatpush1.msra.mxu0 0.0
        %3172 = vmatprep.subr.mxu0 0.0
        %3173 = vmatpush1.msra.mxu0 0.0
        %3174 = vmatprep.subr.mxu0 0.0
        %3175 = vmatpush1.msra.mxu0 0.0
        %3176 = vmatprep.subr.mxu0 0.0
        %3177 = vmatpush1.msra.mxu0 0.0
        %3178 = vmatprep.subr.mxu0 0.0
        %3179 = vmatpush1.msra.mxu0 0.0
        %3180 = vmatprep.subr.mxu0 0.0
        %3181 = vmatpush1.msra.mxu0 0.0
        %3182 = vmatprep.subr.mxu0 0.0
        %3183 = vmatpush1.msra.mxu0 0.0
        %3184 = vmatprep.subr.mxu0 0.0
        %3185 = vmatpush1.msra.mxu0 0.0
        %3186 = vmatprep.subr.mxu0 0.0
        %3187 = vmatpush1.msra.mxu0 0.0
        %3188 = vmatprep.subr.mxu0 0.0
        %3189 = vmatpush1.msra.mxu0 0.0
        %3190 = vmatprep.subr.mxu0 0.0
        %3191 = vmatpush1.msra.mxu0 0.0
        %3192 = vmatprep.subr.mxu0 0.0
        %3193 = vmatpush1.msra.mxu0 0.0
        %3194 = vmatprep.mubr.f32.mxu0 0.0
        %3195 = vmatmul.mubr.f32.gmra.mrb[0].mxu0 %v3104
        %v3196 = vpop.f32.mrb[0].mxu0
        %v3197 = vadd.f32 0.0, %v3196
        %v3198 = vpop.f32.mrb[0].mxu0
        %3199 = vmatprep.mubr.f32.mxu0 0.0
        %3200 = vmatmul.mubr.f32.gmra.mrb[0].mxu0 %v3107
        %v3201 = vpop.f32.mrb[0].mxu0
        %v3202 = vadd.f32 0.0, %v3201
        %v3203 = vpop.f32.mrb[0].mxu0
        %3204 = vmatprep.mubr.f32.mxu0 0.0
        %3205 = vmatmul.mubr.f32.gmra.mrb[0].mxu0 %v3110
        %v3206 = vpop.f32.mrb[0].mxu0
        %v3207 = vadd.f32 0.0, %v3206
        %v3208 = vpop.f32.mrb[0].mxu0
        %3209 = vmatprep.mubr.f32.mxu0 0.0
        %3210 = vmatmul.mubr.f32.gmra.mrb[0].mxu0 %v3113
        %v3211 = vpop.f32.mrb[0].mxu0
        %v3212 = vadd.f32 0.0, %v3211
        %v3213 = vpop.f32.mrb[0].mxu0
        %3214 = vmatprep.mubr.f32.mxu0 0.0
        %3215 = vmatmul.mubr.f32.gmra.mrb[0].mxu0 %v3116
        %v3216 = vpop.f32.mrb[0].mxu0
        %v3217 = vadd.f32 0.0, %v3216
        %v3218 = vpop.f32.mrb[0].mxu0
        %3219 = vmatprep.mubr.f32.mxu0 0.0
        %3220 = vmatmul.mubr.f32.gmra.mrb[0].mxu0 %v3119
        %v3221 = vpop.f32.mrb[0].mxu0
        %v3222 = vadd.f32 0.0, %v3221
        %v3223 = vpop.f32.mrb[0].mxu0
        %3224 = vmatprep.mubr.f32.mxu0 0.0
        %3225 = vmatmul.mubr.f32.gmra.mrb[0].mxu0 %v3122
        %v3226 = vpop.f32.mrb[0].mxu0
        %v3227 = vadd.f32 0.0, %v3226
        %v3228 = vpop.f32.mrb[0].mxu0
        %3229 = vmatprep.mubr.f32.mxu0 0.0
        %3230 = vmatmul.mubr.f32.gmra.mrb[0].mxu0 %v3125
        %v3231 = vpop.f32.mrb[0].mxu0
        %v3232 = vadd.f32 0.0, %v3231
        %v3233 = vpop.f32.mrb[0].mxu0
        %3234 = vdwg.mxu0
        %v3235 = vmul.f32 %v3197, 0.5
        %v3236 = vmul.f32 %v3202, 0.5
        %v3237 = vmul.f32 %v3207, 0.5
        %v3238 = vmul.f32 %v3212, 0.5
        %v3239 = vmul.f32 %v3217, 0.5
        %v3240 = vmul.f32 %v3222, 0.5
        %v3241 = vmul.f32 %v3227, 0.5
        %v3242 = vmul.f32 %v3232, 0.5
        %v3243 = vsel %vm1091, %v3235, -inf
        %3244 = vmax.xlane.f32.xlu0 %v3243
        %v3245 = vpop.xlane.xlu0 %3244
        %v3246 = vsel %vm1091, %v3236, -inf
        %3247 = vmax.xlane.f32.xlu0 %v3246
        %v3248 = vpop.xlane.xlu0 %3247
        %v3249 = vsel %vm1091, %v3237, -inf
        %3250 = vmax.xlane.f32.xlu0 %v3249
        %v3251 = vpop.xlane.xlu0 %3250
        %v3252 = vsel %vm1091, %v3238, -inf
        %3253 = vmax.xlane.f32.xlu0 %v3252
        %v3254 = vpop.xlane.xlu0 %3253
        %v3255 = vsel %vm1091, %v3239, -inf
        %3256 = vmax.xlane.f32.xlu0 %v3255
        %v3257 = vpop.xlane.xlu0 %3256
        %v3258 = vsel %vm1091, %v3240, -inf
        %3259 = vmax.xlane.f32.xlu0 %v3258
        %v3260 = vpop.xlane.xlu0 %3259
        %v3261 = vsel %vm1091, %v3241, -inf
        %3262 = vmax.xlane.f32.xlu0 %v3261
        %v3263 = vpop.xlane.xlu0 %3262
        %v3264 = vsel %vm1091, %v3242, -inf
        %3265 = vmax.xlane.f32.xlu0 %v3264
        %v3266 = vpop.xlane.xlu0 %3265
        %v3267 = vsub.f32 %v3235, %v3245
        %v3268 = vsub.f32 %v3236, %v3248
        %v3269 = vsub.f32 %v3237, %v3251
        %v3270 = vsub.f32 %v3238, %v3254
        %v3271 = vsub.f32 %v3239, %v3257
        %v3272 = vsub.f32 %v3240, %v3260
        %v3273 = vsub.f32 %v3241, %v3263
        %v3274 = vsub.f32 %v3242, %v3266
        %v3275 = vmul.f32 %v3267, 1.442695
        %v3276 = vpow.pop %v3275
        %v3277 = vmul.f32 %v3268, 1.442695
        %v3278 = vpow.pop %v3277
        %v3279 = vmul.f32 %v3269, 1.442695
        %v3280 = vpow.pop %v3279
        %v3281 = vmul.f32 %v3270, 1.442695
        %v3282 = vpow.pop %v3281
        %v3283 = vmul.f32 %v3271, 1.442695
        %v3284 = vpow.pop %v3283
        %v3285 = vmul.f32 %v3272, 1.442695
        %v3286 = vpow.pop %v3285
        %v3287 = vmul.f32 %v3273, 1.442695
        %v3288 = vpow.pop %v3287
        %v3289 = vmul.f32 %v3274, 1.442695
        %v3290 = vpow.pop %v3289
        %v3291 = vsel %vm1091, %v3276, 0.0
        %3292 = vadd.xlane.f32.xlu0 %v3291
        %v3293 = vpop.xlane.xlu0 %3292
        %v3294 = vsel %vm1091, %v3278, 0.0
        %3295 = vadd.xlane.f32.xlu0 %v3294
        %v3296 = vpop.xlane.xlu0 %3295
        %v3297 = vsel %vm1091, %v3280, 0.0
        %3298 = vadd.xlane.f32.xlu0 %v3297
        %v3299 = vpop.xlane.xlu0 %3298
        %v3300 = vsel %vm1091, %v3282, 0.0
        %3301 = vadd.xlane.f32.xlu0 %v3300
        %v3302 = vpop.xlane.xlu0 %3301
        %v3303 = vsel %vm1091, %v3284, 0.0
        %3304 = vadd.xlane.f32.xlu0 %v3303
        %v3305 = vpop.xlane.xlu0 %3304
        %v3306 = vsel %vm1091, %v3286, 0.0
        %3307 = vadd.xlane.f32.xlu0 %v3306
        %v3308 = vpop.xlane.xlu0 %3307
        %v3309 = vsel %vm1091, %v3288, 0.0
        %3310 = vadd.xlane.f32.xlu0 %v3309
        %v3311 = vpop.xlane.xlu0 %3310
        %v3312 = vsel %vm1091, %v3290, 0.0
        %3313 = vadd.xlane.f32.xlu0 %v3312
        %v3314 = vpop.xlane.xlu0 %3313
        %v3315 = vrcp.pop %v3293
        %v3316 = vrcp.pop %v3296
        %v3317 = vrcp.pop %v3299
        %v3318 = vrcp.pop %v3302
        %v3319 = vrcp.pop %v3305
        %v3320 = vrcp.pop %v3308
        %v3321 = vrcp.pop %v3311
        %v3322 = vrcp.pop %v3314
        %v3323 = vmul.f32 %v3276, %v3315
        %v3324 = vmul.f32 %v3278, %v3316
        %v3325 = vmul.f32 %v3280, %v3317
        %v3326 = vmul.f32 %v3282, %v3318
        %v3327 = vmul.f32 %v3284, %v3319
        %v3328 = vmul.f32 %v3286, %v3320
        %v3329 = vmul.f32 %v3288, %v3321
        %v3330 = vmul.f32 %v3290, %v3322
        %v3332 = vsel %vm1091, %v914, 0
        %v3335 = vsel %vm1091, %v3323, 0
        %v3338 = vsel %vm1091, %v3324, 0
        %v3341 = vsel %vm1091, %v3325, 0
        %v3344 = vsel %vm1091, %v3326, 0
        %v3347 = vsel %vm1091, %v3327, 0
        %v3350 = vsel %vm1091, %v3328, 0
        %v3353 = vsel %vm1091, %v3329, 0
        %v3356 = vsel %vm1091, %v3330, 0
        %3358 = vmatprep.subr.mxu0 0.0
        %3359 = vmatpush1.xpose.msra.mxu0 %v3335
        %3360 = vmatprep.subr.mxu0 0.0
        %3361 = vmatpush1.xpose.msra.mxu0 %v3338
        %3362 = vmatprep.subr.mxu0 0.0
        %3363 = vmatpush1.xpose.msra.mxu0 %v3341
        %3364 = vmatprep.subr.mxu0 0.0
        %3365 = vmatpush1.xpose.msra.mxu0 %v3344
        %3366 = vmatprep.subr.mxu0 0.0
        %3367 = vmatpush1.xpose.msra.mxu0 %v3347
        %3368 = vmatprep.subr.mxu0 0.0
        %3369 = vmatpush1.xpose.msra.mxu0 %v3350
        %3370 = vmatprep.subr.mxu0 0.0
        %3371 = vmatpush1.xpose.msra.mxu0 %v3353
        %3372 = vmatprep.subr.mxu0 0.0
        %3373 = vmatpush1.xpose.msra.mxu0 %v3356
        %3374 = vmatprep.subr.mxu0 0.0
        %3375 = vmatpush1.xpose.msra.mxu0 0.0
        %3376 = vmatprep.subr.mxu0 0.0
        %3377 = vmatpush1.xpose.msra.mxu0 0.0
        %3378 = vmatprep.subr.mxu0 0.0
        %3379 = vmatpush1.xpose.msra.mxu0 0.0
        %3380 = vmatprep.subr.mxu0 0.0
        %3381 = vmatpush1.xpose.msra.mxu0 0.0
        %3382 = vmatprep.subr.mxu0 0.0
        %3383 = vmatpush1.xpose.msra.mxu0 0.0
        %3384 = vmatprep.subr.mxu0 0.0
        %3385 = vmatpush1.xpose.msra.mxu0 0.0
        %3386 = vmatprep.subr.mxu0 0.0
        %3387 = vmatpush1.xpose.msra.mxu0 0.0
        %3388 = vmatprep.subr.mxu0 0.0
        %3389 = vmatpush1.xpose.msra.mxu0 0.0
        %3390 = vmatprep.subr.mxu0 0.0
        %3391 = vmatpush1.xpose.msra.mxu0 0.0
        %3392 = vmatprep.subr.mxu0 0.0
        %3393 = vmatpush1.xpose.msra.mxu0 0.0
        %3394 = vmatprep.subr.mxu0 0.0
        %3395 = vmatpush1.xpose.msra.mxu0 0.0
        %3396 = vmatprep.subr.mxu0 0.0
        %3397 = vmatpush1.xpose.msra.mxu0 0.0
        %3398 = vmatprep.subr.mxu0 0.0
        %3399 = vmatpush1.xpose.msra.mxu0 0.0
        %3400 = vmatprep.subr.mxu0 0.0
        %3401 = vmatpush1.xpose.msra.mxu0 0.0
        %3402 = vmatprep.subr.mxu0 0.0
        %3403 = vmatpush1.xpose.msra.mxu0 0.0
        %3404 = vmatprep.subr.mxu0 0.0
        %3405 = vmatpush1.xpose.msra.mxu0 0.0
        %3406 = vmatprep.subr.mxu0 0.0
        %3407 = vmatpush1.xpose.msra.mxu0 0.0
        %3408 = vmatprep.subr.mxu0 0.0
        %3409 = vmatpush1.xpose.msra.mxu0 0.0
        %3410 = vmatprep.subr.mxu0 0.0
        %3411 = vmatpush1.xpose.msra.mxu0 0.0
        %3412 = vmatprep.subr.mxu0 0.0
        %3413 = vmatpush1.xpose.msra.mxu0 0.0
        %3414 = vmatprep.subr.mxu0 0.0
        %3415 = vmatpush1.xpose.msra.mxu0 0.0
        %3416 = vmatprep.subr.mxu0 0.0
        %3417 = vmatpush1.xpose.msra.mxu0 0.0
        %3418 = vmatprep.subr.mxu0 0.0
        %3419 = vmatpush1.xpose.msra.mxu0 0.0
        %3420 = vmatprep.subr.mxu0 0.0
        %3421 = vmatpush1.xpose.msra.mxu0 0.0
        %3422 = vmatprep.mubr.f32.mxu0 0.0
        %3423 = vmatmul.mubr.f32.gmra.mrb[0].mxu0 %v3332
        %v3424 = vpop.f32.mrb[0].mxu0
        %v3425 = vadd.f32 0.0, %v3424
        %v3426 = vpop.f32.mrb[0].mxu0
        %3427 = vdwg.mxu0
        %v3429 = vrot.slane %v712, 4
        %3431 = vxpose.xlu0.b32.start [1/16] %v3429, 128
        %3432 = vxpose.xlu0.b32.cont [2/16] 0.0, 128
        %3433 = vxpose.xlu0.b32.cont [3/16] 0.0, 128
        %3434 = vxpose.xlu0.b32.cont [4/16] 0.0, 128
        %3435 = vxpose.xlu0.b32.cont [5/16] 0.0, 128
        %3436 = vxpose.xlu0.b32.cont [6/16] 0.0, 128
        %3437 = vxpose.xlu0.b32.cont [7/16] 0.0, 128
        %3438 = vxpose.xlu0.b32.cont [8/16] 0.0, 128
        %3439 = vxpose.xlu0.b32.cont [9/16] 0.0, 128
        %3440 = vxpose.xlu0.b32.cont [10/16] 0.0, 128
        %3441 = vxpose.xlu0.b32.cont [11/16] 0.0, 128
        %3442 = vxpose.xlu0.b32.cont [12/16] 0.0, 128
        %3443 = vxpose.xlu0.b32.cont [13/16] 0.0, 128
        %3444 = vxpose.xlu0.b32.cont [14/16] 0.0, 128
        %3445 = vxpose.xlu0.b32.cont [15/16] 0.0, 128
        %3446 = vxpose.xlu0.b32.end [16/16] 0.0, 128
        %v3447 = vpop.trf.xlu0
        %v3448 = vpop.trf.xlu0
        %v3449 = vpop.trf.xlu0
        %v3450 = vpop.trf.xlu0
        %v3451 = vpop.trf.xlu0
        %v3452 = vpop.trf.xlu0
        %v3453 = vpop.trf.xlu0
        %v3454 = vpop.trf.xlu0
        %v3455 = vpop.trf.xlu0
        %v3456 = vpop.trf.xlu0
        %v3457 = vpop.trf.xlu0
        %v3458 = vpop.trf.xlu0
        %v3459 = vpop.trf.xlu0
        %v3460 = vpop.trf.xlu0
        %v3461 = vpop.trf.xlu0
        %v3462 = vpop.trf.xlu0
        %v3463 = vrot.slane %v813, 4
        %v3465 = vsel %vm949, %v3447, 0
        %v3468 = vsel %vm949, %v3448, 0
        %v3471 = vsel %vm949, %v3449, 0
        %v3474 = vsel %vm949, %v3450, 0
        %v3477 = vsel %vm949, %v3451, 0
        %v3480 = vsel %vm949, %v3452, 0
        %v3483 = vsel %vm949, %v3453, 0
        %v3486 = vsel %vm949, %v3454, 0
        %v3488 = vsel %vm974, %v3463, 0
        %3490 = vmatprep.subr.mxu0 0.0
        %3491 = vmatpush1.msra.mxu0 %v3488
        %3492 = vmatprep.subr.mxu0 0.0
        %3493 = vmatpush1.msra.mxu0 0.0
        %3494 = vmatprep.subr.mxu0 0.0
        %3495 = vmatpush1.msra.mxu0 0.0
        %3496 = vmatprep.subr.mxu0 0.0
        %3497 = vmatpush1.msra.mxu0 0.0
        %3498 = vmatprep.subr.mxu0 0.0
        %3499 = vmatpush1.msra.mxu0 0.0
        %3500 = vmatprep.subr.mxu0 0.0
        %3501 = vmatpush1.msra.mxu0 0.0
        %3502 = vmatprep.subr.mxu0 0.0
        %3503 = vmatpush1.msra.mxu0 0.0
        %3504 = vmatprep.subr.mxu0 0.0
        %3505 = vmatpush1.msra.mxu0 0.0
        %3506 = vmatprep.subr.mxu0 0.0
        %3507 = vmatpush1.msra.mxu0 0.0
        %3508 = vmatprep.subr.mxu0 0.0
        %3509 = vmatpush1.msra.mxu0 0.0
        %3510 = vmatprep.subr.mxu0 0.0
        %3511 = vmatpush1.msra.mxu0 0.0
        %3512 = vmatprep.subr.mxu0 0.0
        %3513 = vmatpush1.msra.mxu0 0.0
        %3514 = vmatprep.subr.mxu0 0.0
        %3515 = vmatpush1.msra.mxu0 0.0
        %3516 = vmatprep.subr.mxu0 0.0
        %3517 = vmatpush1.msra.mxu0 0.0
        %3518 = vmatprep.subr.mxu0 0.0
        %3519 = vmatpush1.msra.mxu0 0.0
        %3520 = vmatprep.subr.mxu0 0.0
        %3521 = vmatpush1.msra.mxu0 0.0
        %3522 = vmatprep.subr.mxu0 0.0
        %3523 = vmatpush1.msra.mxu0 0.0
        %3524 = vmatprep.subr.mxu0 0.0
        %3525 = vmatpush1.msra.mxu0 0.0
        %3526 = vmatprep.subr.mxu0 0.0
        %3527 = vmatpush1.msra.mxu0 0.0
        %3528 = vmatprep.subr.mxu0 0.0
        %3529 = vmatpush1.msra.mxu0 0.0
        %3530 = vmatprep.subr.mxu0 0.0
        %3531 = vmatpush1.msra.mxu0 0.0
        %3532 = vmatprep.subr.mxu0 0.0
        %3533 = vmatpush1.msra.mxu0 0.0
        %3534 = vmatprep.subr.mxu0 0.0
        %3535 = vmatpush1.msra.mxu0 0.0
        %3536 = vmatprep.subr.mxu0 0.0
        %3537 = vmatpush1.msra.mxu0 0.0
        %3538 = vmatprep.subr.mxu0 0.0
        %3539 = vmatpush1.msra.mxu0 0.0
        %3540 = vmatprep.subr.mxu0 0.0
        %3541 = vmatpush1.msra.mxu0 0.0
        %3542 = vmatprep.subr.mxu0 0.0
        %3543 = vmatpush1.msra.mxu0 0.0
        %3544 = vmatprep.subr.mxu0 0.0
        %3545 = vmatpush1.msra.mxu0 0.0
        %3546 = vmatprep.subr.mxu0 0.0
        %3547 = vmatpush1.msra.mxu0 0.0
        %3548 = vmatprep.subr.mxu0 0.0
        %3549 = vmatpush1.msra.mxu0 0.0
        %3550 = vmatprep.subr.mxu0 0.0
        %3551 = vmatpush1.msra.mxu0 0.0
        %3552 = vmatprep.subr.mxu0 0.0
        %3553 = vmatpush1.msra.mxu0 0.0
        %3554 = vmatprep.mubr.f32.mxu0 0.0
        %3555 = vmatmul.mubr.f32.gmra.mrb[0].mxu0 %v3465
        %v3556 = vpop.f32.mrb[0].mxu0
        %v3557 = vadd.f32 0.0, %v3556
        %v3558 = vpop.f32.mrb[0].mxu0
        %3559 = vmatprep.mubr.f32.mxu0 0.0
        %3560 = vmatmul.mubr.f32.gmra.mrb[0].mxu0 %v3468
        %v3561 = vpop.f32.mrb[0].mxu0
        %v3562 = vadd.f32 0.0, %v3561
        %v3563 = vpop.f32.mrb[0].mxu0
        %3564 = vmatprep.mubr.f32.mxu0 0.0
        %3565 = vmatmul.mubr.f32.gmra.mrb[0].mxu0 %v3471
        %v3566 = vpop.f32.mrb[0].mxu0
        %v3567 = vadd.f32 0.0, %v3566
        %v3568 = vpop.f32.mrb[0].mxu0
        %3569 = vmatprep.mubr.f32.mxu0 0.0
        %3570 = vmatmul.mubr.f32.gmra.mrb[0].mxu0 %v3474
        %v3571 = vpop.f32.mrb[0].mxu0
        %v3572 = vadd.f32 0.0, %v3571
        %v3573 = vpop.f32.mrb[0].mxu0
        %3574 = vmatprep.mubr.f32.mxu0 0.0
        %3575 = vmatmul.mubr.f32.gmra.mrb[0].mxu0 %v3477
        %v3576 = vpop.f32.mrb[0].mxu0
        %v3577 = vadd.f32 0.0, %v3576
        %v3578 = vpop.f32.mrb[0].mxu0
        %3579 = vmatprep.mubr.f32.mxu0 0.0
        %3580 = vmatmul.mubr.f32.gmra.mrb[0].mxu0 %v3480
        %v3581 = vpop.f32.mrb[0].mxu0
        %v3582 = vadd.f32 0.0, %v3581
        %v3583 = vpop.f32.mrb[0].mxu0
        %3584 = vmatprep.mubr.f32.mxu0 0.0
        %3585 = vmatmul.mubr.f32.gmra.mrb[0].mxu0 %v3483
        %v3586 = vpop.f32.mrb[0].mxu0
        %v3587 = vadd.f32 0.0, %v3586
        %v3588 = vpop.f32.mrb[0].mxu0
        %3589 = vmatprep.mubr.f32.mxu0 0.0
        %3590 = vmatmul.mubr.f32.gmra.mrb[0].mxu0 %v3486
        %v3591 = vpop.f32.mrb[0].mxu0
        %v3592 = vadd.f32 0.0, %v3591
        %v3593 = vpop.f32.mrb[0].mxu0
        %3594 = vdwg.mxu0
        %v3595 = vmul.f32 %v3557, 0.5
        %v3596 = vmul.f32 %v3562, 0.5
        %v3597 = vmul.f32 %v3567, 0.5
        %v3598 = vmul.f32 %v3572, 0.5
        %v3599 = vmul.f32 %v3577, 0.5
        %v3600 = vmul.f32 %v3582, 0.5
        %v3601 = vmul.f32 %v3587, 0.5
        %v3602 = vmul.f32 %v3592, 0.5
        %v3603 = vsel %vm1091, %v3595, -inf
        %3604 = vmax.xlane.f32.xlu0 %v3603
        %v3605 = vpop.xlane.xlu0 %3604
        %v3606 = vsel %vm1091, %v3596, -inf
        %3607 = vmax.xlane.f32.xlu0 %v3606
        %v3608 = vpop.xlane.xlu0 %3607
        %v3609 = vsel %vm1091, %v3597, -inf
        %3610 = vmax.xlane.f32.xlu0 %v3609
        %v3611 = vpop.xlane.xlu0 %3610
        %v3612 = vsel %vm1091, %v3598, -inf
        %3613 = vmax.xlane.f32.xlu0 %v3612
        %v3614 = vpop.xlane.xlu0 %3613
        %v3615 = vsel %vm1091, %v3599, -inf
        %3616 = vmax.xlane.f32.xlu0 %v3615
        %v3617 = vpop.xlane.xlu0 %3616
        %v3618 = vsel %vm1091, %v3600, -inf
        %3619 = vmax.xlane.f32.xlu0 %v3618
        %v3620 = vpop.xlane.xlu0 %3619
        %v3621 = vsel %vm1091, %v3601, -inf
        %3622 = vmax.xlane.f32.xlu0 %v3621
        %v3623 = vpop.xlane.xlu0 %3622
        %v3624 = vsel %vm1091, %v3602, -inf
        %3625 = vmax.xlane.f32.xlu0 %v3624
        %v3626 = vpop.xlane.xlu0 %3625
        %v3627 = vsub.f32 %v3595, %v3605
        %v3628 = vsub.f32 %v3596, %v3608
        %v3629 = vsub.f32 %v3597, %v3611
        %v3630 = vsub.f32 %v3598, %v3614
        %v3631 = vsub.f32 %v3599, %v3617
        %v3632 = vsub.f32 %v3600, %v3620
        %v3633 = vsub.f32 %v3601, %v3623
        %v3634 = vsub.f32 %v3602, %v3626
        %v3635 = vmul.f32 %v3627, 1.442695
        %v3636 = vpow.pop %v3635
        %v3637 = vmul.f32 %v3628, 1.442695
        %v3638 = vpow.pop %v3637
        %v3639 = vmul.f32 %v3629, 1.442695
        %v3640 = vpow.pop %v3639
        %v3641 = vmul.f32 %v3630, 1.442695
        %v3642 = vpow.pop %v3641
        %v3643 = vmul.f32 %v3631, 1.442695
        %v3644 = vpow.pop %v3643
        %v3645 = vmul.f32 %v3632, 1.442695
        %v3646 = vpow.pop %v3645
        %v3647 = vmul.f32 %v3633, 1.442695
        %v3648 = vpow.pop %v3647
        %v3649 = vmul.f32 %v3634, 1.442695
        %v3650 = vpow.pop %v3649
        %v3651 = vsel %vm1091, %v3636, 0.0
        %3652 = vadd.xlane.f32.xlu0 %v3651
        %v3653 = vpop.xlane.xlu0 %3652
        %v3654 = vsel %vm1091, %v3638, 0.0
        %3655 = vadd.xlane.f32.xlu0 %v3654
        %v3656 = vpop.xlane.xlu0 %3655
        %v3657 = vsel %vm1091, %v3640, 0.0
        %3658 = vadd.xlane.f32.xlu0 %v3657
        %v3659 = vpop.xlane.xlu0 %3658
        %v3660 = vsel %vm1091, %v3642, 0.0
        %3661 = vadd.xlane.f32.xlu0 %v3660
        %v3662 = vpop.xlane.xlu0 %3661
        %v3663 = vsel %vm1091, %v3644, 0.0
        %3664 = vadd.xlane.f32.xlu0 %v3663
        %v3665 = vpop.xlane.xlu0 %3664
        %v3666 = vsel %vm1091, %v3646, 0.0
        %3667 = vadd.xlane.f32.xlu0 %v3666
        %v3668 = vpop.xlane.xlu0 %3667
        %v3669 = vsel %vm1091, %v3648, 0.0
        %3670 = vadd.xlane.f32.xlu0 %v3669
        %v3671 = vpop.xlane.xlu0 %3670
        %v3672 = vsel %vm1091, %v3650, 0.0
        %3673 = vadd.xlane.f32.xlu0 %v3672
        %v3674 = vpop.xlane.xlu0 %3673
        %v3675 = vrcp.pop %v3653
        %v3676 = vrcp.pop %v3656
        %v3677 = vrcp.pop %v3659
        %v3678 = vrcp.pop %v3662
        %v3679 = vrcp.pop %v3665
        %v3680 = vrcp.pop %v3668
        %v3681 = vrcp.pop %v3671
        %v3682 = vrcp.pop %v3674
        %v3683 = vmul.f32 %v3636, %v3675
        %v3684 = vmul.f32 %v3638, %v3676
        %v3685 = vmul.f32 %v3640, %v3677
        %v3686 = vmul.f32 %v3642, %v3678
        %v3687 = vmul.f32 %v3644, %v3679
        %v3688 = vmul.f32 %v3646, %v3680
        %v3689 = vmul.f32 %v3648, %v3681
        %v3690 = vmul.f32 %v3650, %v3682
        %v3691 = vrot.slane %v914, 4
        %v3692 = vsel %vm1091, %v3691, 0
        %v3695 = vsel %vm1091, %v3683, 0
        %v3698 = vsel %vm1091, %v3684, 0
        %v3701 = vsel %vm1091, %v3685, 0
        %v3704 = vsel %vm1091, %v3686, 0
        %v3707 = vsel %vm1091, %v3687, 0
        %v3710 = vsel %vm1091, %v3688, 0
        %v3713 = vsel %vm1091, %v3689, 0
        %v3716 = vsel %vm1091, %v3690, 0
        %3718 = vmatprep.subr.mxu0 0.0
        %3719 = vmatpush1.xpose.msra.mxu0 %v3695
        %3720 = vmatprep.subr.mxu0 0.0
        %3721 = vmatpush1.xpose.msra.mxu0 %v3698
        %3722 = vmatprep.subr.mxu0 0.0
        %3723 = vmatpush1.xpose.msra.mxu0 %v3701
        %3724 = vmatprep.subr.mxu0 0.0
        %3725 = vmatpush1.xpose.msra.mxu0 %v3704
        %3726 = vmatprep.subr.mxu0 0.0
        %3727 = vmatpush1.xpose.msra.mxu0 %v3707
        %3728 = vmatprep.subr.mxu0 0.0
        %3729 = vmatpush1.xpose.msra.mxu0 %v3710
        %3730 = vmatprep.subr.mxu0 0.0
        %3731 = vmatpush1.xpose.msra.mxu0 %v3713
        %3732 = vmatprep.subr.mxu0 0.0
        %3733 = vmatpush1.xpose.msra.mxu0 %v3716
        %3734 = vmatprep.subr.mxu0 0.0
        %3735 = vmatpush1.xpose.msra.mxu0 0.0
        %3736 = vmatprep.subr.mxu0 0.0
        %3737 = vmatpush1.xpose.msra.mxu0 0.0
        %3738 = vmatprep.subr.mxu0 0.0
        %3739 = vmatpush1.xpose.msra.mxu0 0.0
        %3740 = vmatprep.subr.mxu0 0.0
        %3741 = vmatpush1.xpose.msra.mxu0 0.0
        %3742 = vmatprep.subr.mxu0 0.0
        %3743 = vmatpush1.xpose.msra.mxu0 0.0
        %3744 = vmatprep.subr.mxu0 0.0
        %3745 = vmatpush1.xpose.msra.mxu0 0.0
        %3746 = vmatprep.subr.mxu0 0.0
        %3747 = vmatpush1.xpose.msra.mxu0 0.0
        %3748 = vmatprep.subr.mxu0 0.0
        %3749 = vmatpush1.xpose.msra.mxu0 0.0
        %3750 = vmatprep.subr.mxu0 0.0
        %3751 = vmatpush1.xpose.msra.mxu0 0.0
        %3752 = vmatprep.subr.mxu0 0.0
        %3753 = vmatpush1.xpose.msra.mxu0 0.0
        %3754 = vmatprep.subr.mxu0 0.0
        %3755 = vmatpush1.xpose.msra.mxu0 0.0
        %3756 = vmatprep.subr.mxu0 0.0
        %3757 = vmatpush1.xpose.msra.mxu0 0.0
        %3758 = vmatprep.subr.mxu0 0.0
        %3759 = vmatpush1.xpose.msra.mxu0 0.0
        %3760 = vmatprep.subr.mxu0 0.0
        %3761 = vmatpush1.xpose.msra.mxu0 0.0
        %3762 = vmatprep.subr.mxu0 0.0
        %3763 = vmatpush1.xpose.msra.mxu0 0.0
        %3764 = vmatprep.subr.mxu0 0.0
        %3765 = vmatpush1.xpose.msra.mxu0 0.0
        %3766 = vmatprep.subr.mxu0 0.0
        %3767 = vmatpush1.xpose.msra.mxu0 0.0
        %3768 = vmatprep.subr.mxu0 0.0
        %3769 = vmatpush1.xpose.msra.mxu0 0.0
        %3770 = vmatprep.subr.mxu0 0.0
        %3771 = vmatpush1.xpose.msra.mxu0 0.0
        %3772 = vmatprep.subr.mxu0 0.0
        %3773 = vmatpush1.xpose.msra.mxu0 0.0
        %3774 = vmatprep.subr.mxu0 0.0
        %3775 = vmatpush1.xpose.msra.mxu0 0.0
        %3776 = vmatprep.subr.mxu0 0.0
        %3777 = vmatpush1.xpose.msra.mxu0 0.0
        %3778 = vmatprep.subr.mxu0 0.0
        %3779 = vmatpush1.xpose.msra.mxu0 0.0
        %3780 = vmatprep.subr.mxu0 0.0
        %3781 = vmatpush1.xpose.msra.mxu0 0.0
        %3782 = vmatprep.mubr.f32.mxu0 0.0
        %3783 = vmatmul.mubr.f32.gmra.mrb[0].mxu0 %v3692
        %v3784 = vpop.f32.mrb[0].mxu0
        %v3785 = vadd.f32 0.0, %v3784
        %v3786 = vpop.f32.mrb[0].mxu0
        %3787 = vdwg.mxu0
        %v3789 = vrot.slane %v1634, 4
        %v3792 = vrot.slane %v2351, 4
        %v3795 = vrot.slane %v3068, 4
        %v3798 = vrot.slane %v3785, 4
        %v3800 = vsel %vm974, %v1274, %v3789
        %v3801 = vsel %vm974, %v1991, %v3792
        %v3802 = vsel %vm974, %v2708, %v3795
        %v3803 = vsel %vm974, %v3425, %v3798
        %v3804 = vld [vmem:[%s8] sm:$0xff]
        %v3805 = vld [vmem:[%s8 + $0x8] sm:$0xff]
        %v3806 = vld [vmem:[%s8 + $0x10] sm:$0xff]
        %v3807 = vld [vmem:[%s8 + $0x18] sm:$0xff]
        %v3808 = vld [vmem:[%s9] sm:$0xff]
        %v3809 = vld [vmem:[%s9 + $0x8] sm:$0xff]
        %v3810 = vld [vmem:[%s9 + $0x10] sm:$0xff]
        %v3811 = vld [vmem:[%s9 + $0x18] sm:$0xff]
        %3813 = vset.pattern.permute.xlu0 0
        %3814 = vperm.xlu0 %3813, %v3808
        %v3815 = vpop.permute.xlu0 %3814
        %3818 = vset.pattern.permute.xlu0 0
        %3819 = vperm.xlu0 %3818, %v3809
        %v3820 = vpop.permute.xlu0 %3819
        %3823 = vset.pattern.permute.xlu0 0
        %3824 = vperm.xlu0 %3823, %v3810
        %v3825 = vpop.permute.xlu0 %3824
        %3828 = vset.pattern.permute.xlu0 0
        %3829 = vperm.xlu0 %3828, %v3811
        %v3830 = vpop.permute.xlu0 %3829
        %v3833 = vsel %vm617, %v3804, 0
        %v3836 = vsel %vm617, %v3805, 0
        %v3839 = vsel %vm617, %v3806, 0
        %v3842 = vsel %vm617, %v3807, 0
        %3844 = vmatprep.subr.mxu0 0.0
        %3845 = vmatpush1.msra.mxu0 %v3800
        %3846 = vmatprep.subr.mxu0 0.0
        %3847 = vmatpush1.msra.mxu0 %v3801
        %3848 = vmatprep.subr.mxu0 0.0
        %3849 = vmatpush1.msra.mxu0 %v3802
        %3850 = vmatprep.subr.mxu0 0.0
        %3851 = vmatpush1.msra.mxu0 %v3803
        %3852 = vmatprep.subr.mxu0 0.0
        %3853 = vmatpush1.msra.mxu0 0.0
        %3854 = vmatprep.subr.mxu0 0.0
        %3855 = vmatpush1.msra.mxu0 0.0
        %3856 = vmatprep.subr.mxu0 0.0
        %3857 = vmatpush1.msra.mxu0 0.0
        %3858 = vmatprep.subr.mxu0 0.0
        %3859 = vmatpush1.msra.mxu0 0.0
        %3860 = vmatprep.subr.mxu0 0.0
        %3861 = vmatpush1.msra.mxu0 0.0
        %3862 = vmatprep.subr.mxu0 0.0
        %3863 = vmatpush1.msra.mxu0 0.0
        %3864 = vmatprep.subr.mxu0 0.0
        %3865 = vmatpush1.msra.mxu0 0.0
        %3866 = vmatprep.subr.mxu0 0.0
        %3867 = vmatpush1.msra.mxu0 0.0
        %3868 = vmatprep.subr.mxu0 0.0
        %3869 = vmatpush1.msra.mxu0 0.0
        %3870 = vmatprep.subr.mxu0 0.0
        %3871 = vmatpush1.msra.mxu0 0.0
        %3872 = vmatprep.subr.mxu0 0.0
        %3873 = vmatpush1.msra.mxu0 0.0
        %3874 = vmatprep.subr.mxu0 0.0
        %3875 = vmatpush1.msra.mxu0 0.0
        %3876 = vmatprep.subr.mxu0 0.0
        %3877 = vmatpush1.msra.mxu0 0.0
        %3878 = vmatprep.subr.mxu0 0.0
        %3879 = vmatpush1.msra.mxu0 0.0
        %3880 = vmatprep.subr.mxu0 0.0
        %3881 = vmatpush1.msra.mxu0 0.0
        %3882 = vmatprep.subr.mxu0 0.0
        %3883 = vmatpush1.msra.mxu0 0.0
        %3884 = vmatprep.subr.mxu0 0.0
        %3885 = vmatpush1.msra.mxu0 0.0
        %3886 = vmatprep.subr.mxu0 0.0
        %3887 = vmatpush1.msra.mxu0 0.0
        %3888 = vmatprep.subr.mxu0 0.0
        %3889 = vmatpush1.msra.mxu0 0.0
        %3890 = vmatprep.subr.mxu0 0.0
        %3891 = vmatpush1.msra.mxu0 0.0
        %3892 = vmatprep.subr.mxu0 0.0
        %3893 = vmatpush1.msra.mxu0 0.0
        %3894 = vmatprep.subr.mxu0 0.0
        %3895 = vmatpush1.msra.mxu0 0.0
        %3896 = vmatprep.subr.mxu0 0.0
        %3897 = vmatpush1.msra.mxu0 0.0
        %3898 = vmatprep.subr.mxu0 0.0
        %3899 = vmatpush1.msra.mxu0 0.0
        %3900 = vmatprep.subr.mxu0 0.0
        %3901 = vmatpush1.msra.mxu0 0.0
        %3902 = vmatprep.subr.mxu0 0.0
        %3903 = vmatpush1.msra.mxu0 0.0
        %3904 = vmatprep.subr.mxu0 0.0
        %3905 = vmatpush1.msra.mxu0 0.0
        %3906 = vmatprep.subr.mxu0 0.0
        %3907 = vmatpush1.msra.mxu0 0.0
        %3908 = vmatprep.mubr.f32.mxu0 0.0
        %3909 = vmatmul.mubr.f32.gmra.mrb[0].mxu0 %v3833
        %v3910 = vpop.f32.mrb[0].mxu0
        %v3911 = vadd.f32 %v3815, %v3910
        %v3912 = vpop.f32.mrb[0].mxu0
        %3913 = vmatprep.mubr.f32.mxu0 0.0
        %3914 = vmatmul.mubr.f32.gmra.mrb[0].mxu0 %v3836
        %v3915 = vpop.f32.mrb[0].mxu0
        %v3916 = vadd.f32 %v3820, %v3915
        %v3917 = vpop.f32.mrb[0].mxu0
        %3918 = vmatprep.mubr.f32.mxu0 0.0
        %3919 = vmatmul.mubr.f32.gmra.mrb[0].mxu0 %v3839
        %v3920 = vpop.f32.mrb[0].mxu0
        %v3921 = vadd.f32 %v3825, %v3920
        %v3922 = vpop.f32.mrb[0].mxu0
        %3923 = vmatprep.mubr.f32.mxu0 0.0
        %3924 = vmatmul.mubr.f32.gmra.mrb[0].mxu0 %v3842
        %v3925 = vpop.f32.mrb[0].mxu0
        %v3926 = vadd.f32 %v3830, %v3925
        %v3927 = vpop.f32.mrb[0].mxu0
        %3928 = vdwg.mxu0
        %v3929 = vld [vmem:[%s4] sm:$0xff]
        %v3930 = vld [vmem:[%s4 + $0x8] sm:$0xff]
        %v3931 = vld [vmem:[%s4 + $0x10] sm:$0xff]
        %v3932 = vld [vmem:[%s4 + $0x18] sm:$0xff]
        %v3933 = vld [vmem:[%s4 + $0x20] sm:$0xff]
        %v3934 = vld [vmem:[%s4 + $0x28] sm:$0xff]
        %v3935 = vld [vmem:[%s4 + $0x30] sm:$0xff]
        %v3936 = vld [vmem:[%s4 + $0x38] sm:$0xff]
        %v3937 = vld [vmem:[%s4 + $0x40] sm:$0xff]
        %v3938 = vld [vmem:[%s4 + $0x48] sm:$0xff]
        %v3939 = vld [vmem:[%s4 + $0x50] sm:$0xff]
        %v3940 = vld [vmem:[%s4 + $0x58] sm:$0xff]
        %v3941 = vld [vmem:[%s4 + $0x60] sm:$0xff]
        %v3942 = vld [vmem:[%s4 + $0x68] sm:$0xff]
        %v3943 = vld [vmem:[%s4 + $0x70] sm:$0xff]
        %v3944 = vld [vmem:[%s4 + $0x78] sm:$0xff]
        %v3946 = vsel %vm398, %v3911, 0
        %v3949 = vsel %vm398, %v3916, 0
        %v3952 = vsel %vm398, %v3921, 0
        %v3955 = vsel %vm398, %v3926, 0
        %3957 = vmatprep.subr.mxu0 %v3930
        %3958 = vmatpush1.msra.mxu0 %v3929
        %3959 = vmatprep.subr.mxu0 %v3932
        %3960 = vmatpush1.msra.mxu0 %v3931
        %3961 = vmatprep.subr.mxu0 %v3934
        %3962 = vmatpush1.msra.mxu0 %v3933
        %3963 = vmatprep.subr.mxu0 %v3936
        %3964 = vmatpush1.msra.mxu0 %v3935
        %3965 = vmatprep.subr.mxu0 %v3938
        %3966 = vmatpush1.msra.mxu0 %v3937
        %3967 = vmatprep.subr.mxu0 %v3940
        %3968 = vmatpush1.msra.mxu0 %v3939
        %3969 = vmatprep.subr.mxu0 %v3942
        %3970 = vmatpush1.msra.mxu0 %v3941
        %3971 = vmatprep.subr.mxu0 %v3944
        %3972 = vmatpush1.msra.mxu0 %v3943
        %3973 = vmatprep.subr.mxu0 0.0
        %3974 = vmatpush1.msra.mxu0 0.0
        %3975 = vmatprep.subr.mxu0 0.0
        %3976 = vmatpush1.msra.mxu0 0.0
        %3977 = vmatprep.subr.mxu0 0.0
        %3978 = vmatpush1.msra.mxu0 0.0
        %3979 = vmatprep.subr.mxu0 0.0
        %3980 = vmatpush1.msra.mxu0 0.0
        %3981 = vmatprep.subr.mxu0 0.0
        %3982 = vmatpush1.msra.mxu0 0.0
        %3983 = vmatprep.subr.mxu0 0.0
        %3984 = vmatpush1.msra.mxu0 0.0
        %3985 = vmatprep.subr.mxu0 0.0
        %3986 = vmatpush1.msra.mxu0 0.0
        %3987 = vmatprep.subr.mxu0 0.0
        %3988 = vmatpush1.msra.mxu0 0.0
        %3989 = vmatprep.subr.mxu0 0.0
        %3990 = vmatpush1.msra.mxu0 0.0
        %3991 = vmatprep.subr.mxu0 0.0
        %3992 = vmatpush1.msra.mxu0 0.0
        %3993 = vmatprep.subr.mxu0 0.0
        %3994 = vmatpush1.msra.mxu0 0.0
        %3995 = vmatprep.subr.mxu0 0.0
        %3996 = vmatpush1.msra.mxu0 0.0
        %3997 = vmatprep.subr.mxu0 0.0
        %3998 = vmatpush1.msra.mxu0 0.0
        %3999 = vmatprep.subr.mxu0 0.0
        %4000 = vmatpush1.msra.mxu0 0.0
        %4001 = vmatprep.subr.mxu0 0.0
        %4002 = vmatpush1.msra.mxu0 0.0
        %4003 = vmatprep.subr.mxu0 0.0
        %4004 = vmatpush1.msra.mxu0 0.0
        %4005 = vmatprep.subr.mxu0 0.0
        %4006 = vmatpush1.msra.mxu0 0.0
        %4007 = vmatprep.subr.mxu0 0.0
        %4008 = vmatpush1.msra.mxu0 0.0
        %4009 = vmatprep.subr.mxu0 0.0
        %4010 = vmatpush1.msra.mxu0 0.0
        %4011 = vmatprep.subr.mxu0 0.0
        %4012 = vmatpush1.msra.mxu0 0.0
        %4013 = vmatprep.subr.mxu0 0.0
        %4014 = vmatpush1.msra.mxu0 0.0
        %4015 = vmatprep.subr.mxu0 0.0
        %4016 = vmatpush1.msra.mxu0 0.0
        %4017 = vmatprep.subr.mxu0 0.0
        %4018 = vmatpush1.msra.mxu0 0.0
        %4019 = vmatprep.subr.mxu0 0.0
        %4020 = vmatpush1.msra.mxu0 0.0
        %4021 = vmatprep.mubr.f32.mxu0 0.0
        %4022 = vmatmul.mubr.f32.gmra.mrb[0].mxu0 %v3946
        %v4023 = vpop.f32.mrb[0].mxu0
        %v4024 = vadd.f32 %v382, %v4023
        %v4025 = vpop.f32.mrb[0].mxu0
        %v4026 = vadd.f32 %v383, %v4025
        %4027 = vmatprep.mubr.f32.mxu0 0.0
        %4028 = vmatmul.mubr.f32.gmra.mrb[0].mxu0 %v3949
        %v4029 = vpop.f32.mrb[0].mxu0
        %v4030 = vadd.f32 %v384, %v4029
        %v4031 = vpop.f32.mrb[0].mxu0
        %v4032 = vadd.f32 %v385, %v4031
        %4033 = vmatprep.mubr.f32.mxu0 0.0
        %4034 = vmatmul.mubr.f32.gmra.mrb[0].mxu0 %v3952
        %v4035 = vpop.f32.mrb[0].mxu0
        %v4036 = vadd.f32 %v386, %v4035
        %v4037 = vpop.f32.mrb[0].mxu0
        %v4038 = vadd.f32 %v387, %v4037
        %4039 = vmatprep.mubr.f32.mxu0 0.0
        %4040 = vmatmul.mubr.f32.gmra.mrb[0].mxu0 %v3955
        %v4041 = vpop.f32.mrb[0].mxu0
        %v4042 = vadd.f32 %v388, %v4041
        %v4043 = vpop.f32.mrb[0].mxu0
        %v4044 = vadd.f32 %v389, %v4043
        %4045 = vdwg.mxu0
        %4046 = vst [vmem:[%s367] sm:$0xff] %v4024
        %4047 = vst [vmem:[%s367 + $0x8] sm:$0xff] %v4026
        %4048 = vst [vmem:[%s367 + $0x10] sm:$0xff] %v4030
        %4049 = vst [vmem:[%s367 + $0x18] sm:$0xff] %v4032
        %4050 = vst [vmem:[%s367 + $0x20] sm:$0xff] %v4036
        %4051 = vst [vmem:[%s367 + $0x28] sm:$0xff] %v4038
        %4052 = vst [vmem:[%s367 + $0x30] sm:$0xff] %v4042
        %4053 = vst [vmem:[%s367 + $0x38] sm:$0xff] %v4044
        %s4054 = sand.u32 %s252, 1
        %s4055 = scalar_lea.sflag [#allocation3], %s4054
        %s4056 = sand.u32 %s252, 1
        %s4057 = smul.addr %s4056, 64
        %s4058 = scalar_lea.vmem [#allocation2], %s4057
        // Predicated region
        $region61: #{tpu_custom_call.1} parent=59 // pred_check
          %p4059 = pneg %p262
        $region62: #{tpu_custom_call.1} parent=59 // pred_check_branch
          %4061 = sbr.rel (%p4059) target = $region64
        $region63: #{tpu_custom_call.1} parent=59 // pred_region
          %s4063 = ssub.s32 1024, 1024
          %4064 = vsyncadd %s4055, %s4063
          %s4065 = smul.addr %s24, 8
          %s4066 = smul.addr %s4065, 128
          %s4067 = scalar_lea.hbm %s10, %s4066
          %s4068 = sshll.u32 %s4058, 4
          %s4069 = int_to_ptr.vmem [resolvable:$true] %s4068
          %4074 = dma.vmem_to_hbm [thread:$0]  %s4069, 1024, %s4067, %s4055, 256, 256, 16
        $region64: #{tpu_custom_call.1} parent=59 // pred_fallthru
          _
      $region60: #{tpu_custom_call.1} parent=5 // pred_fallthru
        _
      %p4075 = scmp.le.s32.totalorder 2, %s19
      // Predicated region
      $region65: #{tpu_custom_call.1} parent=5 // pred_check
        %p4076 = pneg %p4075
      $region66: #{tpu_custom_call.1} parent=5 // pred_check_branch
        %4078 = sbr.rel (%p4076) target = $region68
      $region67: #{tpu_custom_call.1} parent=5 // pred_region
        %s4079 = ssub.s32 %s19, 2
        // Predicated region
        $region69: #{tpu_custom_call.1} parent=67 // pred_check
          %p4080 = pneg %p268
        $region70: #{tpu_custom_call.1} parent=67 // pred_check_branch
          %4082 = sbr.rel (%p4080) target = $region72
        $region71: #{tpu_custom_call.1} parent=67 // pred_region
          %s4083 = sand.u32 %s253, 1
          %s4084 = scalar_lea.sflag [#allocation3], %s4083
          %s4085 = sand.u32 %s253, 1
          %s4086 = smul.addr %s4085, 64
          %s4087 = scalar_lea.vmem [#allocation2], %s4086
          %4088 = dma.done %s4084, 1024
        $region72: #{tpu_custom_call.1} parent=67 // pred_fallthru
          _
      $region68: #{tpu_custom_call.1} parent=5 // pred_fallthru
        _
    $region6: #{tpu_custom_call.1} parent=1 // loop_footer
      %s23 = sadd.s32 1, %s19
    $region7: #{tpu_custom_call.1} parent=1 // loop_footer_branch
      %18 = sbr.rel target = $region3
    $region8: #{tpu_custom_call.1} parent=1 // loop_exit
      _
    %4089 = vsyncpa [#allocation3], 1
    %s4090 = scalar_lea.sflag [#allocation3], 1
    %4091 = vsyncpa %s4090, 1

</llo_original>
